<compile_context>
chip_gen: v5e
topology: v5e:2x2
jax: 0.10.0
libtpu: 0.0.40
codegen_flags: <defaults>
</compile_context>

<pallas_src>
import jax
import jax.numpy as jnp
from jax.experimental import pallas as pl
from jax.experimental.pallas import tpu as pltpu


def fused_kernel(x_ref, res_ref, w1_ref, bias_ref, w2_ref, o_ref):
    # x_ref:    (Cin,  tp)   f32   pixel tile of conv103 input (channel-major)
    # res_ref:  (Cmid, tp)   f32   pixel tile of the residual (x334)
    # w1_ref:   (Cmid, Cin)  bf16  conv103 weight with BN scale folded in
    # bias_ref: (Cmid, 1)    f32   folded BN bias
    # w2_ref:   (Cout, Cmid) bf16  conv104 weight
    # o_ref:    (Cout, tp)   f32
    x_bf = x_ref[...].astype(jnp.bfloat16)                     # in-kernel cast (VPU)
    h = jnp.dot(w1_ref[...], x_bf, preferred_element_type=jnp.float32)
    h = h + bias_ref[...] + res_ref[...]                       # f32 bias + residual
    h = jnp.maximum(h, 0.0)                                    # ReLU (f32)
    o_ref[...] = jnp.dot(w2_ref[...], h.astype(jnp.bfloat16),
                         preferred_element_type=jnp.float32).astype(o_ref.dtype)


def conv_bn_add_relu_conv(x340, x334, w1, gamma, beta, run_mean, run_var, w2,
                          eps=1e-5):
    """x340: (N, Cin, H, W), x334: (N, Cmid, H, W). Returns (N, Cout, H, W)."""
    N, Cin, H, W = x340.shape
    Cmid = w1.shape[0]          # w1: (Cmid, Cin) from PyTorch (Cmid, Cin, 1, 1)
    Cout = w2.shape[0]          # w2: (Cout, Cmid)
    HW = H * W

    # Fold eval-mode BN into the first conv weight + a per-channel bias.
    f32 = jnp.float32
    inv_std = 1.0 / jnp.sqrt(run_var.astype(f32) + eps)
    scale = gamma.astype(f32) * inv_std                          # (Cmid,)
    bias = beta.astype(f32) - run_mean.astype(f32) * scale       # (Cmid,)
    w1_s = (w1.astype(f32) * scale[:, None]).astype(jnp.bfloat16)   # (Cmid, Cin)
    w2_b = w2.astype(jnp.bfloat16)                                  # (Cout, Cmid)
    bias_col = bias.reshape(Cmid, 1)                                # (Cmid, 1) f32

    # NCHW -> channel-major (N, C, H*W): a pure reshape, no transpose, no cast,
    # no pad.  The pixel tail is handled by Pallas' masked partial block.
    x_cm = x340.reshape(N, Cin, HW)        # f32
    r_cm = x334.reshape(N, Cmid, HW)       # f32

    # Pixel tile (lane axis): 256 fills the 256-wide MXU on v6e/v7x and gives
    # an even, >1 step count at the real shape (HW=784 -> 4 steps).  Clamp for
    # tiny spatial extents so the block never exceeds one 128-lane multiple
    # past HW.
    tp = min(256, ((HW + 127) // 128) * 128)
    grid = (N, pl.cdiv(HW, tp))

    flops = 2 * N * HW * (Cmid * Cin + Cout * Cmid)
    bytes_accessed = (x_cm.size * 4 + r_cm.size * 4 + w1_s.size * 2
                      + w2_b.size * 2 + bias_col.size * 4 + N * Cout * HW * 4)

    out = pl.pallas_call(
        fused_kernel,
        out_shape=jax.ShapeDtypeStruct((N, Cout, HW), jnp.float32),
        grid_spec=pltpu.PrefetchScalarGridSpec(
            num_scalar_prefetch=0,
            grid=grid,
            in_specs=[
                pl.BlockSpec((None, Cin, tp), lambda n, j: (n, 0, j)),   # x tile (f32)
                pl.BlockSpec((None, Cmid, tp), lambda n, j: (n, 0, j)),  # res tile (f32)
                pl.BlockSpec((Cmid, Cin), lambda n, j: (0, 0)),    # W1*scale (resident)
                pl.BlockSpec((Cmid, 1), lambda n, j: (0, 0)),      # folded BN bias
                pl.BlockSpec((Cout, Cmid), lambda n, j: (0, 0)),   # W2 (resident)
            ],
            out_specs=pl.BlockSpec((None, Cout, tp), lambda n, j: (n, 0, j)),
        ),
        compiler_params=pltpu.CompilerParams(
            dimension_semantics=("parallel", "parallel")),
        cost_estimate=pl.CostEstimate(
            flops=flops, transcendentals=0, bytes_accessed=bytes_accessed),
    )(x_cm, r_cm, w1_s, bias_col, w2_b)

    # (N, Cout, HW) -> (N, Cout, H, W): free reshape, no slicing needed.
    return out.reshape(N, Cout, H, W)


if __name__ == "__main__":
    # Small shapes consistent with the module structure
    # (original: Cin=512, Cmid=2048, Cout=256, N=1, H=W=28).  Keep H=W=28 so
    # the masked pixel-tail path (784 = 3*256 + 16) is exercised.
    N, Cin, Cmid, Cout, H, W = 2, 128, 512, 128, 28, 28

    key = jax.random.PRNGKey(0)
    k = jax.random.split(key, 8)
    x340 = jax.random.normal(k[0], (N, Cin, H, W), jnp.float32)   # conv103 input
    x334 = jax.random.normal(k[1], (N, Cmid, H, W), jnp.float32)  # residual
    w1 = jax.random.normal(k[2], (Cmid, Cin), jnp.float32) * 0.05   # conv2d103 weight
    w2 = jax.random.normal(k[3], (Cout, Cmid), jnp.float32) * 0.05  # conv2d104 weight
    gamma = jax.random.normal(k[4], (Cmid,), jnp.float32) * 0.1 + 1.0
    beta = jax.random.normal(k[5], (Cmid,), jnp.float32) * 0.1
    run_mean = jax.random.normal(k[6], (Cmid,), jnp.float32) * 0.1
    run_var = jnp.abs(jax.random.normal(k[7], (Cmid,), jnp.float32)) * 0.1 + 1.0

    out = jax.jit(conv_bn_add_relu_conv)(x340, x334, w1, gamma, beta,
                                         run_mean, run_var, w2)
    out = jax.block_until_ready(out)

    # Pure-JAX f32 reference (NCHW math) for sanity.
    eps = 1e-5
    y1 = jnp.einsum("nchw,oc->nohw", x340, w1)
    y2 = (y1 - run_mean[None, :, None, None]) / jnp.sqrt(
        run_var[None, :, None, None] + eps)
    y2 = y2 * gamma[None, :, None, None] + beta[None, :, None, None]
    y3 = jnp.maximum(y2 + x334, 0.0)
    ref = jnp.einsum("nchw,oc->nohw", y3, w2)

    assert out.shape == (N, Cout, H, W)
    # Kernel uses bf16 MXU operands with f32 accumulation; compare at bf16 tol.
    max_err = float(jnp.max(jnp.abs(out - ref)))
    assert jnp.allclose(out, ref, atol=5e-2, rtol=5e-2), max_err

    print("KERNEL_OK")
</pallas_src>

<mosaic_0001>
module attributes {stable_mosaic.version = 11 : i64} {
  func.func @fused_kernel(%arg0: i32, %arg1: i32, %arg2: memref<1x128x256xf32, #tpu.memory_space<vmem>>, %arg3: memref<1x512x256xf32, #tpu.memory_space<vmem>>, %arg4: memref<512x128xbf16, #tpu.memory_space<vmem>>, %arg5: memref<512x1xf32, #tpu.memory_space<vmem>>, %arg6: memref<128x512xbf16, #tpu.memory_space<vmem>>, %arg7: memref<1x128x256xf32, #tpu.memory_space<vmem>>) attributes {dimension_semantics = [#tpu.dimension_semantics<parallel>, #tpu.dimension_semantics<parallel>], iteration_bounds = array<i64: 2, 4>, scalar_prefetch = 0 : i64, scratch_operands = 0 : i64, tpu.core_type = #tpu.core_type<tc>, window_params = [{transform_indices = @transform_0, window_bounds = array<i64: 1, 128, 256>}, {transform_indices = @transform_1, window_bounds = array<i64: 1, 512, 256>}, {pipeline_mode = #tpu.pipeline_mode<synchronous>, transform_indices = @transform_2, window_bounds = array<i64: 512, 128>}, {pipeline_mode = #tpu.pipeline_mode<synchronous>, transform_indices = @transform_3, window_bounds = array<i64: 512, 1>}, {pipeline_mode = #tpu.pipeline_mode<synchronous>, transform_indices = @transform_4, window_bounds = array<i64: 128, 512>}, {transform_indices = @transform_5, window_bounds = array<i64: 1, 128, 256>}]} {
    %c0 = arith.constant 0 : index
    %c0_0 = arith.constant 0 : index
    %c0_1 = arith.constant 0 : index
    %0 = vector.load %arg2[%c0, %c0_0, %c0_1] : memref<1x128x256xf32, #tpu.memory_space<vmem>>, vector<1x128x256xf32>
    %1 = vector.shape_cast %0 : vector<1x128x256xf32> to vector<128x256xf32>
    %2 = arith.truncf %1 : vector<128x256xf32> to vector<128x256xbf16>
    %c0_2 = arith.constant 0 : index
    %c0_3 = arith.constant 0 : index
    %3 = vector.load %arg4[%c0_2, %c0_3] : memref<512x128xbf16, #tpu.memory_space<vmem>>, vector<512x128xbf16>
    %cst = arith.constant dense<0.000000e+00> : vector<512x256xf32>
    %4 = tpu.matmul %3, %2, %cst {dimension_numbers = #tpu.dot_dimension_numbers<[1], [0], [0], [1], [0, 0, 1, 1], [], []>} : vector<512x128xbf16>, vector<128x256xbf16>, vector<512x256xf32> -> vector<512x256xf32>
    %c0_4 = arith.constant 0 : index
    %c0_5 = arith.constant 0 : index
    %5 = vector.load %arg5[%c0_4, %c0_5] : memref<512x1xf32, #tpu.memory_space<vmem>>, vector<512x1xf32>
    %6 = vector.broadcast %5 : vector<512x1xf32> to vector<512x256xf32>
    %7 = arith.addf %4, %6 : vector<512x256xf32>
    %c0_6 = arith.constant 0 : index
    %c0_7 = arith.constant 0 : index
    %c0_8 = arith.constant 0 : index
    %8 = vector.load %arg3[%c0_6, %c0_7, %c0_8] : memref<1x512x256xf32, #tpu.memory_space<vmem>>, vector<1x512x256xf32>
    %9 = vector.shape_cast %8 : vector<1x512x256xf32> to vector<512x256xf32>
    %10 = arith.addf %7, %9 : vector<512x256xf32>
    %cst_9 = arith.constant 0.000000e+00 : f32
    %11 = vector.broadcast %cst_9 : f32 to vector<512x256xf32>
    %12 = arith.maximumf %10, %11 : vector<512x256xf32>
    %c0_10 = arith.constant 0 : index
    %c0_11 = arith.constant 0 : index
    %13 = vector.load %arg6[%c0_10, %c0_11] : memref<128x512xbf16, #tpu.memory_space<vmem>>, vector<128x512xbf16>
    %14 = arith.truncf %12 : vector<512x256xf32> to vector<512x256xbf16>
    %cst_12 = arith.constant dense<0.000000e+00> : vector<128x256xf32>
    %15 = tpu.matmul %13, %14, %cst_12 {dimension_numbers = #tpu.dot_dimension_numbers<[1], [0], [0], [1], [0, 0, 1, 1], [], []>} : vector<128x512xbf16>, vector<512x256xbf16>, vector<128x256xf32> -> vector<128x256xf32>
    %c0_13 = arith.constant 0 : index
    %c0_14 = arith.constant 0 : index
    %c0_15 = arith.constant 0 : index
    %16 = vector.load %arg7[%c0_13, %c0_14, %c0_15] : memref<1x128x256xf32, #tpu.memory_space<vmem>>, vector<1x128x256xf32>
    %17 = vector.shape_cast %16 : vector<1x128x256xf32> to vector<128x256xf32>
    %18 = vector.shape_cast %15 : vector<128x256xf32> to vector<1x128x256xf32>
    tpu.vector_store %arg7[%c0_13, %c0_14, %c0_15], %18 {strides = array<i32>} : memref<1x128x256xf32, #tpu.memory_space<vmem>>, vector<1x128x256xf32>,
    return
  }
  func.func @transform_0(%arg0: i32, %arg1: i32) -> (i32, i32, i32) {
    %c0_i32 = arith.constant 0 : i32
    %c0_i32_0 = arith.constant 0 : i32
    return %arg0, %c0_i32, %arg1 : i32, i32, i32
  }
  func.func @transform_1(%arg0: i32, %arg1: i32) -> (i32, i32, i32) {
    %c0_i32 = arith.constant 0 : i32
    %c0_i32_0 = arith.constant 0 : i32
    return %arg0, %c0_i32, %arg1 : i32, i32, i32
  }
  func.func @transform_2(%arg0: i32, %arg1: i32) -> (i32, i32) {
    %c0_i32 = arith.constant 0 : i32
    %c0_i32_0 = arith.constant 0 : i32
    %c0_i32_1 = arith.constant 0 : i32
    return %c0_i32, %c0_i32_0 : i32, i32
  }
  func.func @transform_3(%arg0: i32, %arg1: i32) -> (i32, i32) {
    %c0_i32 = arith.constant 0 : i32
    %c0_i32_0 = arith.constant 0 : i32
    %c0_i32_1 = arith.constant 0 : i32
    return %c0_i32, %c0_i32_0 : i32, i32
  }
  func.func @transform_4(%arg0: i32, %arg1: i32) -> (i32, i32) {
    %c0_i32 = arith.constant 0 : i32
    %c0_i32_0 = arith.constant 0 : i32
    %c0_i32_1 = arith.constant 0 : i32
    return %c0_i32, %c0_i32_0 : i32, i32
  }
  func.func @transform_5(%arg0: i32, %arg1: i32) -> (i32, i32, i32) {
    %c0_i32 = arith.constant 0 : i32
    %c0_i32_0 = arith.constant 0 : i32
    return %arg0, %c0_i32, %arg1 : i32, i32, i32
  }
}

</mosaic_0001>

<llo_original>
// kernel: conv_bn_add_relu_conv.1
$region0: #{conv_bn_add_relu_conv.1}
  #allocation0 [shape = 'u32[]', space=smem, size = 0x4, offset = 0x4, fixed_abs, tag = 'smem constant byte address 0x4 - core index']
  #allocation1 [shape = 'u32[72,128]{1,0:T(1,128)}', space=vmem, size = 0x9000, scoped, tag = 'internal scratch']
  %s0 = inlined_call_operand.vmem [shape: f32[2,128,784], index: 0, kind: input, shape index: {}]
  %s1 = inlined_call_operand.vmem [shape: f32[2,512,784], index: 1, kind: input, shape index: {}]
  %s2 = inlined_call_operand.vmem [shape: bf16[512,128], index: 2, kind: input, shape index: {}]
  %s3 = inlined_call_operand.vmem [shape: f32[512,1], index: 3, kind: input, shape index: {}]
  %s4 = inlined_call_operand.vmem [shape: bf16[128,512], index: 4, kind: input, shape index: {}]
  %s5 = inlined_call_operand.vmem [shape: f32[2,128,784], index: 5, kind: output, shape index: {}]
  %s6 = sld [smem:[#allocation0]]
  $region233: #{conv_bn_add_relu_conv.1} parent=0
    _
  %s8 = ssub.s32 1, %s6
  %s9 = scalar_select 0, %s8, %s6
  $region1: #{conv_bn_add_relu_conv.1} parent=0
    #allocation2 [shape = 'u8[262144]{0}', space=vmem, size = 0x40000, scoped, tag = 'input window, operand 0']
    #allocation3 [shape = 'u8[1048576]{0}', space=vmem, size = 0x100000, scoped, tag = 'input window, operand 1']
    #allocation4 [shape = 'u8[262144]{0}', space=vmem, size = 0x40000, scoped, tag = 'output window, operand 0']
    loop: start=0, step=1, limit=10
    $region2: #{conv_bn_add_relu_conv.1} parent=1 // loop_pre_header
      _
    $region3: #{conv_bn_add_relu_conv.1} parent=1 // loop_header
      %s11 = sphi 0, %s15
      %p12 = scmp.ge.s32.totalorder %s11, 10
      %s18 = sphi 0, %s30
      %s19 = sphi 0, %s26
      %s20 = sphi 0, %s18
      %s21 = sphi 0, %s19
      %s22 = sphi 0, %s20
      %s23 = sphi 0, %s21
      %s35 = sphi 0, %s37
      %s38 = sphi 0, %s35
      %s39 = sphi 0, %s38
      %s55 = sphi 0, %s39
      %s63 = sphi 0, %s65
      %s66 = sphi 0, %s63
      %s67 = sphi 0, %s66
      %s83 = sphi 0, %s67
      %s87 = sphi 0, %s87
      %s89 = sphi 0, %s87
      %s90 = sphi 0, %s89
      %s104 = sphi 0, %s90
      %s108 = sphi 0, %s108
      %s110 = sphi 0, %s108
      %s111 = sphi 0, %s110
      %s125 = sphi 0, %s111
      %s129 = sphi 0, %s129
      %s131 = sphi 0, %s129
      %s132 = sphi 0, %s131
      %s146 = sphi 0, %s132
      %s154 = sphi 0, %s156
      %s157 = sphi 0, %s154
      %s158 = sphi 0, %s157
      %s174 = sphi 0, %s158
    $region4: #{conv_bn_add_relu_conv.1} parent=1 // loop_header_branch
      %14 = sbr.rel (%p12) target = $region8
    $region5: #{conv_bn_add_relu_conv.1} parent=1 // loop_body
      %s16 = ssub.s32 %s11, 1
      %s17 = ssub.s32 %s11, 2
      %s24 = sadd.s32 1, %s19
      %p25 = scmp.ge.s32.totalorder %s24, 4
      %s26 = scalar_select %p25, 0, %s24
      %s27 = sadd.s32 1, %s18
      %s28 = scalar_select %p25, %s27, %s18
      %p29 = scmp.ge.s32.totalorder %s28, 2
      %s30 = scalar_select %p29, 0, %s28
      %s31 = ssub.s32 %s18, %s30
      %s32 = ssub.s32 %s19, %s26
      %s33 = sor.u32 %s31, %s32
      %p34 = scmp.eq.s32.totalorder %s33, 0
      %s36 = sadd.s32 %s35, 1
      %s37 = scalar_select %p34, %s35, %s36
      %p40 = pneg %p34
      %p41 = scmp.eq.s32.totalorder %s11, 7
      %p42 = por %p40, %p41
      %p43 = scmp.ne.s32.totalorder %s35, %s38
      %p44 = scmp.eq.s32.totalorder %s11, 0
      %p45 = por %p43, %p44
      %p46 = scmp.ne.s32.totalorder %s35, %s38
      %p47 = scmp.eq.s32.totalorder %s16, 7
      %p48 = por %p46, %p47
      %p49 = scmp.ne.s32.totalorder %s38, %s39
      %p50 = scmp.eq.s32.totalorder %s16, 0
      %p51 = por %p49, %p50
      %p52 = scmp.ne.s32.totalorder %s38, %s39
      %p53 = scmp.eq.s32.totalorder %s17, 7
      %p54 = por %p52, %p53
      %p56 = scmp.ne.s32.totalorder %s39, %s55
      %p57 = scmp.eq.s32.totalorder %s17, 0
      %p58 = por %p56, %p57
      %s59 = ssub.s32 %s18, %s30
      %s60 = ssub.s32 %s19, %s26
      %s61 = sor.u32 %s59, %s60
      %p62 = scmp.eq.s32.totalorder %s61, 0
      %s64 = sadd.s32 %s63, 1
      %s65 = scalar_select %p62, %s63, %s64
      %p68 = pneg %p62
      %p69 = scmp.eq.s32.totalorder %s11, 7
      %p70 = por %p68, %p69
      %p71 = scmp.ne.s32.totalorder %s63, %s66
      %p72 = scmp.eq.s32.totalorder %s11, 0
      %p73 = por %p71, %p72
      %p74 = scmp.ne.s32.totalorder %s63, %s66
      %p75 = scmp.eq.s32.totalorder %s16, 7
      %p76 = por %p74, %p75
      %p77 = scmp.ne.s32.totalorder %s66, %s67
      %p78 = scmp.eq.s32.totalorder %s16, 0
      %p79 = por %p77, %p78
      %p80 = scmp.ne.s32.totalorder %s66, %s67
      %p81 = scmp.eq.s32.totalorder %s17, 7
      %p82 = por %p80, %p81
      %p84 = scmp.ne.s32.totalorder %s67, %s83
      %p85 = scmp.eq.s32.totalorder %s17, 0
      %p86 = por %p84, %p85
      %s88 = sadd.s32 %s87, 1
      %p91 = scmp.eq.s32.totalorder %s11, 7
      %p92 = scmp.ne.s32.totalorder %s87, %s89
      %p93 = scmp.eq.s32.totalorder %s11, 0
      %p94 = por %p92, %p93
      %p95 = scmp.ne.s32.totalorder %s87, %s89
      %p96 = scmp.eq.s32.totalorder %s16, 7
      %p97 = por %p95, %p96
      %p98 = scmp.ne.s32.totalorder %s89, %s90
      %p99 = scmp.eq.s32.totalorder %s16, 0
      %p100 = por %p98, %p99
      %p101 = scmp.ne.s32.totalorder %s89, %s90
      %p102 = scmp.eq.s32.totalorder %s17, 7
      %p103 = por %p101, %p102
      %p105 = scmp.ne.s32.totalorder %s90, %s104
      %p106 = scmp.eq.s32.totalorder %s17, 0
      %p107 = por %p105, %p106
      %s109 = sadd.s32 %s108, 1
      %p112 = scmp.eq.s32.totalorder %s11, 7
      %p113 = scmp.ne.s32.totalorder %s108, %s110
      %p114 = scmp.eq.s32.totalorder %s11, 0
      %p115 = por %p113, %p114
      %p116 = scmp.ne.s32.totalorder %s108, %s110
      %p117 = scmp.eq.s32.totalorder %s16, 7
      %p118 = por %p116, %p117
      %p119 = scmp.ne.s32.totalorder %s110, %s111
      %p120 = scmp.eq.s32.totalorder %s16, 0
      %p121 = por %p119, %p120
      %p122 = scmp.ne.s32.totalorder %s110, %s111
      %p123 = scmp.eq.s32.totalorder %s17, 7
      %p124 = por %p122, %p123
      %p126 = scmp.ne.s32.totalorder %s111, %s125
      %p127 = scmp.eq.s32.totalorder %s17, 0
      %p128 = por %p126, %p127
      %s130 = sadd.s32 %s129, 1
      %p133 = scmp.eq.s32.totalorder %s11, 7
      %p134 = scmp.ne.s32.totalorder %s129, %s131
      %p135 = scmp.eq.s32.totalorder %s11, 0
      %p136 = por %p134, %p135
      %p137 = scmp.ne.s32.totalorder %s129, %s131
      %p138 = scmp.eq.s32.totalorder %s16, 7
      %p139 = por %p137, %p138
      %p140 = scmp.ne.s32.totalorder %s131, %s132
      %p141 = scmp.eq.s32.totalorder %s16, 0
      %p142 = por %p140, %p141
      %p143 = scmp.ne.s32.totalorder %s131, %s132
      %p144 = scmp.eq.s32.totalorder %s17, 7
      %p145 = por %p143, %p144
      %p147 = scmp.ne.s32.totalorder %s132, %s146
      %p148 = scmp.eq.s32.totalorder %s17, 0
      %p149 = por %p147, %p148
      %s150 = ssub.s32 %s18, %s30
      %s151 = ssub.s32 %s19, %s26
      %s152 = sor.u32 %s150, %s151
      %p153 = scmp.eq.s32.totalorder %s152, 0
      %s155 = sadd.s32 %s154, 1
      %s156 = scalar_select %p153, %s154, %s155
      %p159 = pneg %p153
      %p160 = scmp.eq.s32.totalorder %s11, 7
      %p161 = por %p159, %p160
      %p162 = scmp.ne.s32.totalorder %s154, %s157
      %p163 = scmp.eq.s32.totalorder %s11, 0
      %p164 = por %p162, %p163
      %p165 = scmp.ne.s32.totalorder %s154, %s157
      %p166 = scmp.eq.s32.totalorder %s16, 7
      %p167 = por %p165, %p166
      %p168 = scmp.ne.s32.totalorder %s157, %s158
      %p169 = scmp.eq.s32.totalorder %s16, 0
      %p170 = por %p168, %p169
      %p171 = scmp.ne.s32.totalorder %s157, %s158
      %p172 = scmp.eq.s32.totalorder %s17, 7
      %p173 = por %p171, %p172
      %p175 = scmp.ne.s32.totalorder %s158, %s174
      %p176 = scmp.eq.s32.totalorder %s17, 0
      %p177 = por %p175, %p176
      %p178 = scmp.le.s32.totalorder 1, %s11
      %p179 = scmp.lt.s32.totalorder %s11, 9
      %p180 = pnand %p178, %p179
      %p181 = pneg %p180
      // Predicated region
      $region9: #{conv_bn_add_relu_conv.1} parent=5 // pred_check
        _
      $region10: #{conv_bn_add_relu_conv.1} parent=5 // pred_check_branch
        %183 = sbr.rel (%p180) target = $region12
      $region11: #{conv_bn_add_relu_conv.1} parent=5 // pred_region
        %s184 = ssub.s32 %s11, 1
        // Predicated region
        $region13: #{conv_bn_add_relu_conv.1} parent=11 // pred_check
          %p185 = pneg %p100
        $region14: #{conv_bn_add_relu_conv.1} parent=11 // pred_check_branch
          %187 = sbr.rel (%p185) target = $region16
        $region15: #{conv_bn_add_relu_conv.1} parent=11 // pred_region
          _
        $region16: #{conv_bn_add_relu_conv.1} parent=11 // pred_fallthru
          _
        // Predicated region
        $region17: #{conv_bn_add_relu_conv.1} parent=11 // pred_check
          %p188 = pneg %p121
        $region18: #{conv_bn_add_relu_conv.1} parent=11 // pred_check_branch
          %190 = sbr.rel (%p188) target = $region20
        $region19: #{conv_bn_add_relu_conv.1} parent=11 // pred_region
          _
        $region20: #{conv_bn_add_relu_conv.1} parent=11 // pred_fallthru
          _
        // Predicated region
        $region21: #{conv_bn_add_relu_conv.1} parent=11 // pred_check
          %p191 = pneg %p142
        $region22: #{conv_bn_add_relu_conv.1} parent=11 // pred_check_branch
          %193 = sbr.rel (%p191) target = $region24
        $region23: #{conv_bn_add_relu_conv.1} parent=11 // pred_region
          _
        $region24: #{conv_bn_add_relu_conv.1} parent=11 // pred_fallthru
          _
      $region12: #{conv_bn_add_relu_conv.1} parent=5 // pred_fallthru
        _
      %p194 = scmp.lt.s32.totalorder %s11, 8
      // Predicated region
      $region25: #{conv_bn_add_relu_conv.1} parent=5 // pred_check
        %p195 = pneg %p194
      $region26: #{conv_bn_add_relu_conv.1} parent=5 // pred_check_branch
        %197 = sbr.rel (%p195) target = $region28
      $region27: #{conv_bn_add_relu_conv.1} parent=5 // pred_region
        // Predicated region
        $region29: #{conv_bn_add_relu_conv.1} parent=27 // pred_check
          %p198 = pneg %p45
        $region30: #{conv_bn_add_relu_conv.1} parent=27 // pred_check_branch
          %200 = sbr.rel (%p198) target = $region32
        $region31: #{conv_bn_add_relu_conv.1} parent=27 // pred_region
          %s201 = sand.u32 %s35, 1
          %s202 = sand.u32 %s35, 1
          %s203 = smul.addr %s202, 256
          %s204 = scalar_lea.vmem [#allocation2], %s203
          %s205 = smul.u32 2, %s19
          %s206 = ssub.s32 7, %s205
          %p207 = scmp.lt.s32.totalorder %s206, 2
          %s208 = scalar_select %p207, %s206, 2
          %s209 = smul.u32 128, %s208
          %p210 = scmp.ne.s32.totalorder 0, %s209
          %s211 = smul.addr %s18, 112
          %s212 = sadd.s32 %s205, %s211
          %s213 = smul.addr %s212, 8
          %s214 = scalar_lea.vmem %s0, %s213
          %s215 = smul.u32 %s208, 8
          // Predicated region
          $region33: #{conv_bn_add_relu_conv.1} parent=31 // pred_check
            %p216 = pneg %p210
          $region34: #{conv_bn_add_relu_conv.1} parent=31 // pred_check_branch
            %218 = sbr.rel (%p216) target = $region36
          $region35: #{conv_bn_add_relu_conv.1} parent=31 // pred_region
            %p219 = scmp.lt.u32.totalorder %s215, 8
            %p220 = pneg %p219
            // Predicated region
            $region37: #{conv_bn_add_relu_conv.1} parent=35 // pred_check
              _
            $region38: #{conv_bn_add_relu_conv.1} parent=35 // pred_check_branch
              %222 = sbr.rel (%p219) target = $region40
            $region39: #{conv_bn_add_relu_conv.1} parent=35 // pred_region
              %s268 = sand.u32 %s215, 7
              %p269 = scmp.eq.s32.totalorder %s268, 0
              // Predicated region
              $region52: #{conv_bn_add_relu_conv.1} parent=39 // pred_check
                %p270 = pneg %p269
              $region53: #{conv_bn_add_relu_conv.1} parent=39 // pred_check_branch
                %272 = sbr.rel (%p270) target = $region55
              $region54: #{conv_bn_add_relu_conv.1} parent=39 // pred_region
                %s273 = sshrl.u32 %s215, 3
                %s274 = sshrl.u32 %s273, 1
                // While loop
                $region56: #{conv_bn_add_relu_conv.1} parent=54 // loop_pre_header
                  _
                $region57: #{conv_bn_add_relu_conv.1} parent=54 // loop_header
                  %s276 = sphi 0, %s278
                  %p277 = scmp.ge.s32.totalorder %s276, %s274
                  %s281 = sphi 0, %s350
                  %s282 = sphi %s214, %s353
                  %s283 = sphi %s204, %s354
                $region58: #{conv_bn_add_relu_conv.1} parent=54 // loop_header_branch
                  %280 = sbr.rel (%p277) target = $region62
                $region59: #{conv_bn_add_relu_conv.1} parent=54 // loop_body
                  %v284 = vld [vmem:[%s282] sm:$0xff]
                  %285 = vst [vmem:[%s283] sm:$0xff] %v284
                  %v286 = vld [vmem:[%s282 + $0x8] sm:$0xff]
                  %287 = vst [vmem:[%s283 + $0x8] sm:$0xff] %v286
                  %v288 = vld [vmem:[%s282 + $0x38] sm:$0xff]
                  %289 = vst [vmem:[%s283 + $0x10] sm:$0xff] %v288
                  %v290 = vld [vmem:[%s282 + $0x40] sm:$0xff]
                  %291 = vst [vmem:[%s283 + $0x18] sm:$0xff] %v290
                  %v292 = vld [vmem:[%s282 + $0x70] sm:$0xff]
                  %293 = vst [vmem:[%s283 + $0x20] sm:$0xff] %v292
                  %v294 = vld [vmem:[%s282 + $0x78] sm:$0xff]
                  %295 = vst [vmem:[%s283 + $0x28] sm:$0xff] %v294
                  %v296 = vld [vmem:[%s282 + $0xa8] sm:$0xff]
                  %297 = vst [vmem:[%s283 + $0x30] sm:$0xff] %v296
                  %v298 = vld [vmem:[%s282 + $0xb0] sm:$0xff]
                  %299 = vst [vmem:[%s283 + $0x38] sm:$0xff] %v298
                  %v300 = vld [vmem:[%s282 + $0xe0] sm:$0xff]
                  %301 = vst [vmem:[%s283 + $0x40] sm:$0xff] %v300
                  %v302 = vld [vmem:[%s282 + $0xe8] sm:$0xff]
                  %303 = vst [vmem:[%s283 + $0x48] sm:$0xff] %v302
                  %v304 = vld [vmem:[%s282 + $0x118] sm:$0xff]
                  %305 = vst [vmem:[%s283 + $0x50] sm:$0xff] %v304
                  %v306 = vld [vmem:[%s282 + $0x120] sm:$0xff]
                  %307 = vst [vmem:[%s283 + $0x58] sm:$0xff] %v306
                  %v308 = vld [vmem:[%s282 + $0x150] sm:$0xff]
                  %309 = vst [vmem:[%s283 + $0x60] sm:$0xff] %v308
                  %v310 = vld [vmem:[%s282 + $0x158] sm:$0xff]
                  %311 = vst [vmem:[%s283 + $0x68] sm:$0xff] %v310
                  %v312 = vld [vmem:[%s282 + $0x188] sm:$0xff]
                  %313 = vst [vmem:[%s283 + $0x70] sm:$0xff] %v312
                  %v314 = vld [vmem:[%s282 + $0x190] sm:$0xff]
                  %315 = vst [vmem:[%s283 + $0x78] sm:$0xff] %v314
                  %v316 = vld [vmem:[%s282 + $0x1c0] sm:$0xff]
                  %317 = vst [vmem:[%s283 + $0x80] sm:$0xff] %v316
                  %v318 = vld [vmem:[%s282 + $0x1c8] sm:$0xff]
                  %319 = vst [vmem:[%s283 + $0x88] sm:$0xff] %v318
                  %v320 = vld [vmem:[%s282 + $0x1f8] sm:$0xff]
                  %321 = vst [vmem:[%s283 + $0x90] sm:$0xff] %v320
                  %v322 = vld [vmem:[%s282 + $0x200] sm:$0xff]
                  %323 = vst [vmem:[%s283 + $0x98] sm:$0xff] %v322
                  %v324 = vld [vmem:[%s282 + $0x230] sm:$0xff]
                  %325 = vst [vmem:[%s283 + $0xa0] sm:$0xff] %v324
                  %v326 = vld [vmem:[%s282 + $0x238] sm:$0xff]
                  %327 = vst [vmem:[%s283 + $0xa8] sm:$0xff] %v326
                  %v328 = vld [vmem:[%s282 + $0x268] sm:$0xff]
                  %329 = vst [vmem:[%s283 + $0xb0] sm:$0xff] %v328
                  %v330 = vld [vmem:[%s282 + $0x270] sm:$0xff]
                  %331 = vst [vmem:[%s283 + $0xb8] sm:$0xff] %v330
                  %v332 = vld [vmem:[%s282 + $0x2a0] sm:$0xff]
                  %333 = vst [vmem:[%s283 + $0xc0] sm:$0xff] %v332
                  %v334 = vld [vmem:[%s282 + $0x2a8] sm:$0xff]
                  %335 = vst [vmem:[%s283 + $0xc8] sm:$0xff] %v334
                  %v336 = vld [vmem:[%s282 + $0x2d8] sm:$0xff]
                  %337 = vst [vmem:[%s283 + $0xd0] sm:$0xff] %v336
                  %v338 = vld [vmem:[%s282 + $0x2e0] sm:$0xff]
                  %339 = vst [vmem:[%s283 + $0xd8] sm:$0xff] %v338
                  %v340 = vld [vmem:[%s282 + $0x310] sm:$0xff]
                  %341 = vst [vmem:[%s283 + $0xe0] sm:$0xff] %v340
                  %v342 = vld [vmem:[%s282 + $0x318] sm:$0xff]
                  %343 = vst [vmem:[%s283 + $0xe8] sm:$0xff] %v342
                  %v344 = vld [vmem:[%s282 + $0x348] sm:$0xff]
                  %345 = vst [vmem:[%s283 + $0xf0] sm:$0xff] %v344
                  %v346 = vld [vmem:[%s282 + $0x350] sm:$0xff]
                  %347 = vst [vmem:[%s283 + $0xf8] sm:$0xff] %v346
                  %s348 = sadd.s32 1, %s281
                  %p349 = scmp.ge.s32.totalorder %s348, %s274
                  %s350 = scalar_select %p349, 0, %s348
                  %s351 = smul.u32 %s350, 16
                  %s352 = smul.u32 %s350, 16
                  %s353 = scalar_lea.vmem %s214, %s351
                  %s354 = scalar_lea.vmem %s204, %s352 [#allocation2]
                $region60: #{conv_bn_add_relu_conv.1} parent=54 // loop_footer
                  %s278 = sadd.s32 %s276, 1
                $region61: #{conv_bn_add_relu_conv.1} parent=54 // loop_footer_branch
                  %275 = sbr.rel target = $region57
                $region62: #{conv_bn_add_relu_conv.1} parent=54 // loop_exit
                  _
                %s355 = sshrl.u32 %s273, 1
                %s356 = sand.u32 %s273, 1
                %s357 = smul.u32 %s355, 2
                %s358 = smul.u32 8, %s357
                %s359 = scalar_lea.vmem %s214, %s358
                %s360 = smul.u32 8, %s357
                %s361 = scalar_lea.vmem %s204, %s360 [#allocation2]
                // While loop
                $region63: #{conv_bn_add_relu_conv.1} parent=54 // loop_pre_header
                  _
                $region64: #{conv_bn_add_relu_conv.1} parent=54 // loop_header
                  %s363 = sphi 0, %s365
                  %p364 = scmp.ge.s32.totalorder %s363, %s356
                  %s368 = sphi 0, %s405
                  %s369 = sphi %s359, %s408
                  %s370 = sphi %s361, %s409
                $region65: #{conv_bn_add_relu_conv.1} parent=54 // loop_header_branch
                  %367 = sbr.rel (%p364) target = $region69
                $region66: #{conv_bn_add_relu_conv.1} parent=54 // loop_body
                  %v371 = vld [vmem:[%s369] sm:$0xff]
                  %372 = vst [vmem:[%s370] sm:$0xff] %v371
                  %v373 = vld [vmem:[%s369 + $0x38] sm:$0xff]
                  %374 = vst [vmem:[%s370 + $0x10] sm:$0xff] %v373
                  %v375 = vld [vmem:[%s369 + $0x70] sm:$0xff]
                  %376 = vst [vmem:[%s370 + $0x20] sm:$0xff] %v375
                  %v377 = vld [vmem:[%s369 + $0xa8] sm:$0xff]
                  %378 = vst [vmem:[%s370 + $0x30] sm:$0xff] %v377
                  %v379 = vld [vmem:[%s369 + $0xe0] sm:$0xff]
                  %380 = vst [vmem:[%s370 + $0x40] sm:$0xff] %v379
                  %v381 = vld [vmem:[%s369 + $0x118] sm:$0xff]
                  %382 = vst [vmem:[%s370 + $0x50] sm:$0xff] %v381
                  %v383 = vld [vmem:[%s369 + $0x150] sm:$0xff]
                  %384 = vst [vmem:[%s370 + $0x60] sm:$0xff] %v383
                  %v385 = vld [vmem:[%s369 + $0x188] sm:$0xff]
                  %386 = vst [vmem:[%s370 + $0x70] sm:$0xff] %v385
                  %v387 = vld [vmem:[%s369 + $0x1c0] sm:$0xff]
                  %388 = vst [vmem:[%s370 + $0x80] sm:$0xff] %v387
                  %v389 = vld [vmem:[%s369 + $0x1f8] sm:$0xff]
                  %390 = vst [vmem:[%s370 + $0x90] sm:$0xff] %v389
                  %v391 = vld [vmem:[%s369 + $0x230] sm:$0xff]
                  %392 = vst [vmem:[%s370 + $0xa0] sm:$0xff] %v391
                  %v393 = vld [vmem:[%s369 + $0x268] sm:$0xff]
                  %394 = vst [vmem:[%s370 + $0xb0] sm:$0xff] %v393
                  %v395 = vld [vmem:[%s369 + $0x2a0] sm:$0xff]
                  %396 = vst [vmem:[%s370 + $0xc0] sm:$0xff] %v395
                  %v397 = vld [vmem:[%s369 + $0x2d8] sm:$0xff]
                  %398 = vst [vmem:[%s370 + $0xd0] sm:$0xff] %v397
                  %v399 = vld [vmem:[%s369 + $0x310] sm:$0xff]
                  %400 = vst [vmem:[%s370 + $0xe0] sm:$0xff] %v399
                  %v401 = vld [vmem:[%s369 + $0x348] sm:$0xff]
                  %402 = vst [vmem:[%s370 + $0xf0] sm:$0xff] %v401
                  %s403 = sadd.s32 1, %s368
                  %p404 = scmp.ge.s32.totalorder %s403, %s356
                  %s405 = scalar_select %p404, 0, %s403
                  %s406 = smul.u32 %s405, 8
                  %s407 = smul.u32 %s405, 8
                  %s408 = scalar_lea.vmem %s359, %s406
                  %s409 = scalar_lea.vmem %s361, %s407 [#allocation2]
                $region67: #{conv_bn_add_relu_conv.1} parent=54 // loop_footer
                  %s365 = sadd.s32 %s363, 1
                $region68: #{conv_bn_add_relu_conv.1} parent=54 // loop_footer_branch
                  %362 = sbr.rel target = $region64
                $region69: #{conv_bn_add_relu_conv.1} parent=54 // loop_exit
                  _
              $region55: #{conv_bn_add_relu_conv.1} parent=39 // pred_fallthru
                _
              %p410 = pneg %p269
              // Predicated region
              $region70: #{conv_bn_add_relu_conv.1} parent=39 // pred_check
                _
              $region71: #{conv_bn_add_relu_conv.1} parent=39 // pred_check_branch
                %412 = sbr.rel (%p269) target = $region73
              $region72: #{conv_bn_add_relu_conv.1} parent=39 // pred_region
                %s413 = sand.u32 %s215, 7
                %s414 = ssub.s32 %s215, %s413
                %s415 = scalar_lea.vmem %s214, %s414
                %s416 = ssub.s32 %s215, %s413
                %s417 = scalar_lea.vmem %s204, %s416 [#allocation2]
                %s418 = sshrl.u32 %s215, 3
                %s419 = sshrl.u32 %s418, 1
                // While loop
                $region74: #{conv_bn_add_relu_conv.1} parent=72 // loop_pre_header
                  _
                $region75: #{conv_bn_add_relu_conv.1} parent=72 // loop_header
                  %s421 = sphi 0, %s423
                  %p422 = scmp.ge.s32.totalorder %s421, %s419
                  %s426 = sphi 0, %s495
                  %s427 = sphi %s214, %s498
                  %s428 = sphi %s204, %s499
                $region76: #{conv_bn_add_relu_conv.1} parent=72 // loop_header_branch
                  %425 = sbr.rel (%p422) target = $region80
                $region77: #{conv_bn_add_relu_conv.1} parent=72 // loop_body
                  %v429 = vld [vmem:[%s427] sm:$0xff]
                  %430 = vst [vmem:[%s428] sm:$0xff] %v429
                  %v431 = vld [vmem:[%s427 + $0x8] sm:$0xff]
                  %432 = vst [vmem:[%s428 + $0x8] sm:$0xff] %v431
                  %v433 = vld [vmem:[%s427 + $0x38] sm:$0xff]
                  %434 = vst [vmem:[%s428 + $0x10] sm:$0xff] %v433
                  %v435 = vld [vmem:[%s427 + $0x40] sm:$0xff]
                  %436 = vst [vmem:[%s428 + $0x18] sm:$0xff] %v435
                  %v437 = vld [vmem:[%s427 + $0x70] sm:$0xff]
                  %438 = vst [vmem:[%s428 + $0x20] sm:$0xff] %v437
                  %v439 = vld [vmem:[%s427 + $0x78] sm:$0xff]
                  %440 = vst [vmem:[%s428 + $0x28] sm:$0xff] %v439
                  %v441 = vld [vmem:[%s427 + $0xa8] sm:$0xff]
                  %442 = vst [vmem:[%s428 + $0x30] sm:$0xff] %v441
                  %v443 = vld [vmem:[%s427 + $0xb0] sm:$0xff]
                  %444 = vst [vmem:[%s428 + $0x38] sm:$0xff] %v443
                  %v445 = vld [vmem:[%s427 + $0xe0] sm:$0xff]
                  %446 = vst [vmem:[%s428 + $0x40] sm:$0xff] %v445
                  %v447 = vld [vmem:[%s427 + $0xe8] sm:$0xff]
                  %448 = vst [vmem:[%s428 + $0x48] sm:$0xff] %v447
                  %v449 = vld [vmem:[%s427 + $0x118] sm:$0xff]
                  %450 = vst [vmem:[%s428 + $0x50] sm:$0xff] %v449
                  %v451 = vld [vmem:[%s427 + $0x120] sm:$0xff]
                  %452 = vst [vmem:[%s428 + $0x58] sm:$0xff] %v451
                  %v453 = vld [vmem:[%s427 + $0x150] sm:$0xff]
                  %454 = vst [vmem:[%s428 + $0x60] sm:$0xff] %v453
                  %v455 = vld [vmem:[%s427 + $0x158] sm:$0xff]
                  %456 = vst [vmem:[%s428 + $0x68] sm:$0xff] %v455
                  %v457 = vld [vmem:[%s427 + $0x188] sm:$0xff]
                  %458 = vst [vmem:[%s428 + $0x70] sm:$0xff] %v457
                  %v459 = vld [vmem:[%s427 + $0x190] sm:$0xff]
                  %460 = vst [vmem:[%s428 + $0x78] sm:$0xff] %v459
                  %v461 = vld [vmem:[%s427 + $0x1c0] sm:$0xff]
                  %462 = vst [vmem:[%s428 + $0x80] sm:$0xff] %v461
                  %v463 = vld [vmem:[%s427 + $0x1c8] sm:$0xff]
                  %464 = vst [vmem:[%s428 + $0x88] sm:$0xff] %v463
                  %v465 = vld [vmem:[%s427 + $0x1f8] sm:$0xff]
                  %466 = vst [vmem:[%s428 + $0x90] sm:$0xff] %v465
                  %v467 = vld [vmem:[%s427 + $0x200] sm:$0xff]
                  %468 = vst [vmem:[%s428 + $0x98] sm:$0xff] %v467
                  %v469 = vld [vmem:[%s427 + $0x230] sm:$0xff]
                  %470 = vst [vmem:[%s428 + $0xa0] sm:$0xff] %v469
                  %v471 = vld [vmem:[%s427 + $0x238] sm:$0xff]
                  %472 = vst [vmem:[%s428 + $0xa8] sm:$0xff] %v471
                  %v473 = vld [vmem:[%s427 + $0x268] sm:$0xff]
                  %474 = vst [vmem:[%s428 + $0xb0] sm:$0xff] %v473
                  %v475 = vld [vmem:[%s427 + $0x270] sm:$0xff]
                  %476 = vst [vmem:[%s428 + $0xb8] sm:$0xff] %v475
                  %v477 = vld [vmem:[%s427 + $0x2a0] sm:$0xff]
                  %478 = vst [vmem:[%s428 + $0xc0] sm:$0xff] %v477
                  %v479 = vld [vmem:[%s427 + $0x2a8] sm:$0xff]
                  %480 = vst [vmem:[%s428 + $0xc8] sm:$0xff] %v479
                  %v481 = vld [vmem:[%s427 + $0x2d8] sm:$0xff]
                  %482 = vst [vmem:[%s428 + $0xd0] sm:$0xff] %v481
                  %v483 = vld [vmem:[%s427 + $0x2e0] sm:$0xff]
                  %484 = vst [vmem:[%s428 + $0xd8] sm:$0xff] %v483
                  %v485 = vld [vmem:[%s427 + $0x310] sm:$0xff]
                  %486 = vst [vmem:[%s428 + $0xe0] sm:$0xff] %v485
                  %v487 = vld [vmem:[%s427 + $0x318] sm:$0xff]
                  %488 = vst [vmem:[%s428 + $0xe8] sm:$0xff] %v487
                  %v489 = vld [vmem:[%s427 + $0x348] sm:$0xff]
                  %490 = vst [vmem:[%s428 + $0xf0] sm:$0xff] %v489
                  %v491 = vld [vmem:[%s427 + $0x350] sm:$0xff]
                  %492 = vst [vmem:[%s428 + $0xf8] sm:$0xff] %v491
                  %s493 = sadd.s32 1, %s426
                  %p494 = scmp.ge.s32.totalorder %s493, %s419
                  %s495 = scalar_select %p494, 0, %s493
                  %s496 = smul.u32 %s495, 16
                  %s497 = smul.u32 %s495, 16
                  %s498 = scalar_lea.vmem %s214, %s496
                  %s499 = scalar_lea.vmem %s204, %s497 [#allocation2]
                $region78: #{conv_bn_add_relu_conv.1} parent=72 // loop_footer
                  %s423 = sadd.s32 %s421, 1
                $region79: #{conv_bn_add_relu_conv.1} parent=72 // loop_footer_branch
                  %420 = sbr.rel target = $region75
                $region80: #{conv_bn_add_relu_conv.1} parent=72 // loop_exit
                  _
                %s500 = sshrl.u32 %s418, 1
                %s501 = sand.u32 %s418, 1
                %s502 = smul.u32 %s500, 2
                %s503 = smul.u32 8, %s502
                %s504 = scalar_lea.vmem %s214, %s503
                %s505 = smul.u32 8, %s502
                %s506 = scalar_lea.vmem %s204, %s505 [#allocation2]
                // While loop
                $region81: #{conv_bn_add_relu_conv.1} parent=72 // loop_pre_header
                  _
                $region82: #{conv_bn_add_relu_conv.1} parent=72 // loop_header
                  %s508 = sphi 0, %s510
                  %p509 = scmp.ge.s32.totalorder %s508, %s501
                  %s513 = sphi 0, %s550
                  %s514 = sphi %s504, %s553
                  %s515 = sphi %s506, %s554
                $region83: #{conv_bn_add_relu_conv.1} parent=72 // loop_header_branch
                  %512 = sbr.rel (%p509) target = $region87
                $region84: #{conv_bn_add_relu_conv.1} parent=72 // loop_body
                  %v516 = vld [vmem:[%s514] sm:$0xff]
                  %517 = vst [vmem:[%s515] sm:$0xff] %v516
                  %v518 = vld [vmem:[%s514 + $0x38] sm:$0xff]
                  %519 = vst [vmem:[%s515 + $0x10] sm:$0xff] %v518
                  %v520 = vld [vmem:[%s514 + $0x70] sm:$0xff]
                  %521 = vst [vmem:[%s515 + $0x20] sm:$0xff] %v520
                  %v522 = vld [vmem:[%s514 + $0xa8] sm:$0xff]
                  %523 = vst [vmem:[%s515 + $0x30] sm:$0xff] %v522
                  %v524 = vld [vmem:[%s514 + $0xe0] sm:$0xff]
                  %525 = vst [vmem:[%s515 + $0x40] sm:$0xff] %v524
                  %v526 = vld [vmem:[%s514 + $0x118] sm:$0xff]
                  %527 = vst [vmem:[%s515 + $0x50] sm:$0xff] %v526
                  %v528 = vld [vmem:[%s514 + $0x150] sm:$0xff]
                  %529 = vst [vmem:[%s515 + $0x60] sm:$0xff] %v528
                  %v530 = vld [vmem:[%s514 + $0x188] sm:$0xff]
                  %531 = vst [vmem:[%s515 + $0x70] sm:$0xff] %v530
                  %v532 = vld [vmem:[%s514 + $0x1c0] sm:$0xff]
                  %533 = vst [vmem:[%s515 + $0x80] sm:$0xff] %v532
                  %v534 = vld [vmem:[%s514 + $0x1f8] sm:$0xff]
                  %535 = vst [vmem:[%s515 + $0x90] sm:$0xff] %v534
                  %v536 = vld [vmem:[%s514 + $0x230] sm:$0xff]
                  %537 = vst [vmem:[%s515 + $0xa0] sm:$0xff] %v536
                  %v538 = vld [vmem:[%s514 + $0x268] sm:$0xff]
                  %539 = vst [vmem:[%s515 + $0xb0] sm:$0xff] %v538
                  %v540 = vld [vmem:[%s514 + $0x2a0] sm:$0xff]
                  %541 = vst [vmem:[%s515 + $0xc0] sm:$0xff] %v540
                  %v542 = vld [vmem:[%s514 + $0x2d8] sm:$0xff]
                  %543 = vst [vmem:[%s515 + $0xd0] sm:$0xff] %v542
                  %v544 = vld [vmem:[%s514 + $0x310] sm:$0xff]
                  %545 = vst [vmem:[%s515 + $0xe0] sm:$0xff] %v544
                  %v546 = vld [vmem:[%s514 + $0x348] sm:$0xff]
                  %547 = vst [vmem:[%s515 + $0xf0] sm:$0xff] %v546
                  %s548 = sadd.s32 1, %s513
                  %p549 = scmp.ge.s32.totalorder %s548, %s501
                  %s550 = scalar_select %p549, 0, %s548
                  %s551 = smul.u32 %s550, 8
                  %s552 = smul.u32 %s550, 8
                  %s553 = scalar_lea.vmem %s504, %s551
                  %s554 = scalar_lea.vmem %s506, %s552 [#allocation2]
                $region85: #{conv_bn_add_relu_conv.1} parent=72 // loop_footer
                  %s510 = sadd.s32 %s508, 1
                $region86: #{conv_bn_add_relu_conv.1} parent=72 // loop_footer_branch
                  %507 = sbr.rel target = $region82
                $region87: #{conv_bn_add_relu_conv.1} parent=72 // loop_exit
                  _
                %s555 = sshll.u32 1, %s413
                %s556 = ssub.s32 %s555, 1
                loop: start=0, step=1, limit=1
                $region88: #{conv_bn_add_relu_conv.1} parent=72 // loop_pre_header
                  _
                $region89: #{conv_bn_add_relu_conv.1} parent=72 // loop_header
                  %s558 = sphi 0, %s562
                  %p559 = scmp.ge.s32.totalorder %s558, 1
                  %s563 = sphi %s415, %s415
                  %s564 = sphi %s417, %s417
                $region90: #{conv_bn_add_relu_conv.1} parent=72 // loop_header_branch
                  %561 = sbr.rel (%p559) target = $region94
                $region91: #{conv_bn_add_relu_conv.1} parent=72 // loop_body
                  %v565 = vld [vmem:[%s563] sm:%s556]
                  %566 = vst [vmem:[%s564] sm:%s556] %v565
                  %v567 = vld [vmem:[%s563 + $0x38] sm:%s556]
                  %568 = vst [vmem:[%s564 + $0x10] sm:%s556] %v567
                  %v569 = vld [vmem:[%s563 + $0x70] sm:%s556]
                  %570 = vst [vmem:[%s564 + $0x20] sm:%s556] %v569
                  %v571 = vld [vmem:[%s563 + $0xa8] sm:%s556]
                  %572 = vst [vmem:[%s564 + $0x30] sm:%s556] %v571
                  %v573 = vld [vmem:[%s563 + $0xe0] sm:%s556]
                  %574 = vst [vmem:[%s564 + $0x40] sm:%s556] %v573
                  %v575 = vld [vmem:[%s563 + $0x118] sm:%s556]
                  %576 = vst [vmem:[%s564 + $0x50] sm:%s556] %v575
                  %v577 = vld [vmem:[%s563 + $0x150] sm:%s556]
                  %578 = vst [vmem:[%s564 + $0x60] sm:%s556] %v577
                  %v579 = vld [vmem:[%s563 + $0x188] sm:%s556]
                  %580 = vst [vmem:[%s564 + $0x70] sm:%s556] %v579
                  %v581 = vld [vmem:[%s563 + $0x1c0] sm:%s556]
                  %582 = vst [vmem:[%s564 + $0x80] sm:%s556] %v581
                  %v583 = vld [vmem:[%s563 + $0x1f8] sm:%s556]
                  %584 = vst [vmem:[%s564 + $0x90] sm:%s556] %v583
                  %v585 = vld [vmem:[%s563 + $0x230] sm:%s556]
                  %586 = vst [vmem:[%s564 + $0xa0] sm:%s556] %v585
                  %v587 = vld [vmem:[%s563 + $0x268] sm:%s556]
                  %588 = vst [vmem:[%s564 + $0xb0] sm:%s556] %v587
                  %v589 = vld [vmem:[%s563 + $0x2a0] sm:%s556]
                  %590 = vst [vmem:[%s564 + $0xc0] sm:%s556] %v589
                  %v591 = vld [vmem:[%s563 + $0x2d8] sm:%s556]
                  %592 = vst [vmem:[%s564 + $0xd0] sm:%s556] %v591
                  %v593 = vld [vmem:[%s563 + $0x310] sm:%s556]
                  %594 = vst [vmem:[%s564 + $0xe0] sm:%s556] %v593
                  %v595 = vld [vmem:[%s563 + $0x348] sm:%s556]
                  %596 = vst [vmem:[%s564 + $0xf0] sm:%s556] %v595
                $region92: #{conv_bn_add_relu_conv.1} parent=72 // loop_footer
                  %s562 = sadd.s32 1, %s558
                $region93: #{conv_bn_add_relu_conv.1} parent=72 // loop_footer_branch
                  %557 = sbr.rel target = $region89
                $region94: #{conv_bn_add_relu_conv.1} parent=72 // loop_exit
                  _
              $region73: #{conv_bn_add_relu_conv.1} parent=39 // pred_fallthru
                _
            $region40: #{conv_bn_add_relu_conv.1} parent=35 // pred_fallthru
              _
            // Predicated region
            $region41: #{conv_bn_add_relu_conv.1} parent=35 // pred_check
              %p223 = pneg %p219
            $region42: #{conv_bn_add_relu_conv.1} parent=35 // pred_check_branch
              %225 = sbr.rel (%p223) target = $region44
            $region43: #{conv_bn_add_relu_conv.1} parent=35 // pred_region
              %s226 = sshll.u32 1, %s215
              %s227 = ssub.s32 %s226, 1
              loop: start=0, step=1, limit=1
              $region45: #{conv_bn_add_relu_conv.1} parent=43 // loop_pre_header
                _
              $region46: #{conv_bn_add_relu_conv.1} parent=43 // loop_header
                %s229 = sphi 0, %s233
                %p230 = scmp.ge.s32.totalorder %s229, 1
                %s234 = sphi %s214, %s214
                %s235 = sphi %s204, %s204
              $region47: #{conv_bn_add_relu_conv.1} parent=43 // loop_header_branch
                %232 = sbr.rel (%p230) target = $region51
              $region48: #{conv_bn_add_relu_conv.1} parent=43 // loop_body
                %v236 = vld [vmem:[%s234] sm:%s227]
                %237 = vst [vmem:[%s235] sm:%s227] %v236
                %v238 = vld [vmem:[%s234 + $0x38] sm:%s227]
                %239 = vst [vmem:[%s235 + $0x10] sm:%s227] %v238
                %v240 = vld [vmem:[%s234 + $0x70] sm:%s227]
                %241 = vst [vmem:[%s235 + $0x20] sm:%s227] %v240
                %v242 = vld [vmem:[%s234 + $0xa8] sm:%s227]
                %243 = vst [vmem:[%s235 + $0x30] sm:%s227] %v242
                %v244 = vld [vmem:[%s234 + $0xe0] sm:%s227]
                %245 = vst [vmem:[%s235 + $0x40] sm:%s227] %v244
                %v246 = vld [vmem:[%s234 + $0x118] sm:%s227]
                %247 = vst [vmem:[%s235 + $0x50] sm:%s227] %v246
                %v248 = vld [vmem:[%s234 + $0x150] sm:%s227]
                %249 = vst [vmem:[%s235 + $0x60] sm:%s227] %v248
                %v250 = vld [vmem:[%s234 + $0x188] sm:%s227]
                %251 = vst [vmem:[%s235 + $0x70] sm:%s227] %v250
                %v252 = vld [vmem:[%s234 + $0x1c0] sm:%s227]
                %253 = vst [vmem:[%s235 + $0x80] sm:%s227] %v252
                %v254 = vld [vmem:[%s234 + $0x1f8] sm:%s227]
                %255 = vst [vmem:[%s235 + $0x90] sm:%s227] %v254
                %v256 = vld [vmem:[%s234 + $0x230] sm:%s227]
                %257 = vst [vmem:[%s235 + $0xa0] sm:%s227] %v256
                %v258 = vld [vmem:[%s234 + $0x268] sm:%s227]
                %259 = vst [vmem:[%s235 + $0xb0] sm:%s227] %v258
                %v260 = vld [vmem:[%s234 + $0x2a0] sm:%s227]
                %261 = vst [vmem:[%s235 + $0xc0] sm:%s227] %v260
                %v262 = vld [vmem:[%s234 + $0x2d8] sm:%s227]
                %263 = vst [vmem:[%s235 + $0xd0] sm:%s227] %v262
                %v264 = vld [vmem:[%s234 + $0x310] sm:%s227]
                %265 = vst [vmem:[%s235 + $0xe0] sm:%s227] %v264
                %v266 = vld [vmem:[%s234 + $0x348] sm:%s227]
                %267 = vst [vmem:[%s235 + $0xf0] sm:%s227] %v266
              $region49: #{conv_bn_add_relu_conv.1} parent=43 // loop_footer
                %s233 = sadd.s32 1, %s229
              $region50: #{conv_bn_add_relu_conv.1} parent=43 // loop_footer_branch
                %228 = sbr.rel target = $region46
              $region51: #{conv_bn_add_relu_conv.1} parent=43 // loop_exit
                _
            $region44: #{conv_bn_add_relu_conv.1} parent=35 // pred_fallthru
              _
          $region36: #{conv_bn_add_relu_conv.1} parent=31 // pred_fallthru
            _
          %597 = vnop
        $region32: #{conv_bn_add_relu_conv.1} parent=27 // pred_fallthru
          _
        // Predicated region
        $region95: #{conv_bn_add_relu_conv.1} parent=27 // pred_check
          %p598 = pneg %p73
        $region96: #{conv_bn_add_relu_conv.1} parent=27 // pred_check_branch
          %600 = sbr.rel (%p598) target = $region98
        $region97: #{conv_bn_add_relu_conv.1} parent=27 // pred_region
          %s601 = sand.u32 %s63, 1
          %s602 = sand.u32 %s63, 1
          %s603 = smul.addr %s602, 1024
          %s604 = scalar_lea.vmem [#allocation3], %s603
          %s605 = smul.u32 2, %s19
          %s606 = ssub.s32 7, %s605
          %p607 = scmp.lt.s32.totalorder %s606, 2
          %s608 = scalar_select %p607, %s606, 2
          %s609 = smul.u32 512, %s608
          %p610 = scmp.ne.s32.totalorder 0, %s609
          %s611 = smul.addr %s18, 448
          %s612 = sadd.s32 %s605, %s611
          %s613 = smul.addr %s612, 8
          %s614 = scalar_lea.vmem %s1, %s613
          %s615 = smul.u32 %s608, 8
          // Predicated region
          $region99: #{conv_bn_add_relu_conv.1} parent=97 // pred_check
            %p616 = pneg %p610
          $region100: #{conv_bn_add_relu_conv.1} parent=97 // pred_check_branch
            %618 = sbr.rel (%p616) target = $region102
          $region101: #{conv_bn_add_relu_conv.1} parent=97 // pred_region
            %p619 = scmp.lt.u32.totalorder %s615, 8
            %p620 = pneg %p619
            // Predicated region
            $region103: #{conv_bn_add_relu_conv.1} parent=101 // pred_check
              _
            $region104: #{conv_bn_add_relu_conv.1} parent=101 // pred_check_branch
              %622 = sbr.rel (%p619) target = $region106
            $region105: #{conv_bn_add_relu_conv.1} parent=101 // pred_region
              %s764 = sand.u32 %s615, 7
              %p765 = scmp.eq.s32.totalorder %s764, 0
              // Predicated region
              $region118: #{conv_bn_add_relu_conv.1} parent=105 // pred_check
                %p766 = pneg %p765
              $region119: #{conv_bn_add_relu_conv.1} parent=105 // pred_check_branch
                %768 = sbr.rel (%p766) target = $region121
              $region120: #{conv_bn_add_relu_conv.1} parent=105 // pred_region
                %s769 = sshrl.u32 %s615, 3
                // While loop
                $region122: #{conv_bn_add_relu_conv.1} parent=120 // loop_pre_header
                  _
                $region123: #{conv_bn_add_relu_conv.1} parent=120 // loop_header
                  %s771 = sphi 0, %s773
                  %p772 = scmp.ge.s32.totalorder %s771, %s769
                  %s776 = sphi 0, %s909
                  %s777 = sphi %s614, %s912
                  %s778 = sphi %s604, %s913
                $region124: #{conv_bn_add_relu_conv.1} parent=120 // loop_header_branch
                  %775 = sbr.rel (%p772) target = $region128
                $region125: #{conv_bn_add_relu_conv.1} parent=120 // loop_body
                  %v779 = vld [vmem:[%s777] sm:$0xff]
                  %780 = vst [vmem:[%s778] sm:$0xff] %v779
                  %v781 = vld [vmem:[%s777 + $0x38] sm:$0xff]
                  %782 = vst [vmem:[%s778 + $0x10] sm:$0xff] %v781
                  %v783 = vld [vmem:[%s777 + $0x70] sm:$0xff]
                  %784 = vst [vmem:[%s778 + $0x20] sm:$0xff] %v783
                  %v785 = vld [vmem:[%s777 + $0xa8] sm:$0xff]
                  %786 = vst [vmem:[%s778 + $0x30] sm:$0xff] %v785
                  %v787 = vld [vmem:[%s777 + $0xe0] sm:$0xff]
                  %788 = vst [vmem:[%s778 + $0x40] sm:$0xff] %v787
                  %v789 = vld [vmem:[%s777 + $0x118] sm:$0xff]
                  %790 = vst [vmem:[%s778 + $0x50] sm:$0xff] %v789
                  %v791 = vld [vmem:[%s777 + $0x150] sm:$0xff]
                  %792 = vst [vmem:[%s778 + $0x60] sm:$0xff] %v791
                  %v793 = vld [vmem:[%s777 + $0x188] sm:$0xff]
                  %794 = vst [vmem:[%s778 + $0x70] sm:$0xff] %v793
                  %v795 = vld [vmem:[%s777 + $0x1c0] sm:$0xff]
                  %796 = vst [vmem:[%s778 + $0x80] sm:$0xff] %v795
                  %v797 = vld [vmem:[%s777 + $0x1f8] sm:$0xff]
                  %798 = vst [vmem:[%s778 + $0x90] sm:$0xff] %v797
                  %v799 = vld [vmem:[%s777 + $0x230] sm:$0xff]
                  %800 = vst [vmem:[%s778 + $0xa0] sm:$0xff] %v799
                  %v801 = vld [vmem:[%s777 + $0x268] sm:$0xff]
                  %802 = vst [vmem:[%s778 + $0xb0] sm:$0xff] %v801
                  %v803 = vld [vmem:[%s777 + $0x2a0] sm:$0xff]
                  %804 = vst [vmem:[%s778 + $0xc0] sm:$0xff] %v803
                  %v805 = vld [vmem:[%s777 + $0x2d8] sm:$0xff]
                  %806 = vst [vmem:[%s778 + $0xd0] sm:$0xff] %v805
                  %v807 = vld [vmem:[%s777 + $0x310] sm:$0xff]
                  %808 = vst [vmem:[%s778 + $0xe0] sm:$0xff] %v807
                  %v809 = vld [vmem:[%s777 + $0x348] sm:$0xff]
                  %810 = vst [vmem:[%s778 + $0xf0] sm:$0xff] %v809
                  %v811 = vld [vmem:[%s777 + $0x380] sm:$0xff]
                  %812 = vst [vmem:[%s778 + $0x100] sm:$0xff] %v811
                  %v813 = vld [vmem:[%s777 + $0x3b8] sm:$0xff]
                  %814 = vst [vmem:[%s778 + $0x110] sm:$0xff] %v813
                  %v815 = vld [vmem:[%s777 + $0x3f0] sm:$0xff]
                  %816 = vst [vmem:[%s778 + $0x120] sm:$0xff] %v815
                  %v817 = vld [vmem:[%s777 + $0x428] sm:$0xff]
                  %818 = vst [vmem:[%s778 + $0x130] sm:$0xff] %v817
                  %v819 = vld [vmem:[%s777 + $0x460] sm:$0xff]
                  %820 = vst [vmem:[%s778 + $0x140] sm:$0xff] %v819
                  %v821 = vld [vmem:[%s777 + $0x498] sm:$0xff]
                  %822 = vst [vmem:[%s778 + $0x150] sm:$0xff] %v821
                  %v823 = vld [vmem:[%s777 + $0x4d0] sm:$0xff]
                  %824 = vst [vmem:[%s778 + $0x160] sm:$0xff] %v823
                  %v825 = vld [vmem:[%s777 + $0x508] sm:$0xff]
                  %826 = vst [vmem:[%s778 + $0x170] sm:$0xff] %v825
                  %v827 = vld [vmem:[%s777 + $0x540] sm:$0xff]
                  %828 = vst [vmem:[%s778 + $0x180] sm:$0xff] %v827
                  %v829 = vld [vmem:[%s777 + $0x578] sm:$0xff]
                  %830 = vst [vmem:[%s778 + $0x190] sm:$0xff] %v829
                  %v831 = vld [vmem:[%s777 + $0x5b0] sm:$0xff]
                  %832 = vst [vmem:[%s778 + $0x1a0] sm:$0xff] %v831
                  %v833 = vld [vmem:[%s777 + $0x5e8] sm:$0xff]
                  %834 = vst [vmem:[%s778 + $0x1b0] sm:$0xff] %v833
                  %v835 = vld [vmem:[%s777 + $0x620] sm:$0xff]
                  %836 = vst [vmem:[%s778 + $0x1c0] sm:$0xff] %v835
                  %v837 = vld [vmem:[%s777 + $0x658] sm:$0xff]
                  %838 = vst [vmem:[%s778 + $0x1d0] sm:$0xff] %v837
                  %v839 = vld [vmem:[%s777 + $0x690] sm:$0xff]
                  %840 = vst [vmem:[%s778 + $0x1e0] sm:$0xff] %v839
                  %v841 = vld [vmem:[%s777 + $0x6c8] sm:$0xff]
                  %842 = vst [vmem:[%s778 + $0x1f0] sm:$0xff] %v841
                  %v843 = vld [vmem:[%s777 + $0x700] sm:$0xff]
                  %844 = vst [vmem:[%s778 + $0x200] sm:$0xff] %v843
                  %v845 = vld [vmem:[%s777 + $0x738] sm:$0xff]
                  %846 = vst [vmem:[%s778 + $0x210] sm:$0xff] %v845
                  %v847 = vld [vmem:[%s777 + $0x770] sm:$0xff]
                  %848 = vst [vmem:[%s778 + $0x220] sm:$0xff] %v847
                  %v849 = vld [vmem:[%s777 + $0x7a8] sm:$0xff]
                  %850 = vst [vmem:[%s778 + $0x230] sm:$0xff] %v849
                  %v851 = vld [vmem:[%s777 + $0x7e0] sm:$0xff]
                  %852 = vst [vmem:[%s778 + $0x240] sm:$0xff] %v851
                  %v853 = vld [vmem:[%s777 + $0x818] sm:$0xff]
                  %854 = vst [vmem:[%s778 + $0x250] sm:$0xff] %v853
                  %v855 = vld [vmem:[%s777 + $0x850] sm:$0xff]
                  %856 = vst [vmem:[%s778 + $0x260] sm:$0xff] %v855
                  %v857 = vld [vmem:[%s777 + $0x888] sm:$0xff]
                  %858 = vst [vmem:[%s778 + $0x270] sm:$0xff] %v857
                  %v859 = vld [vmem:[%s777 + $0x8c0] sm:$0xff]
                  %860 = vst [vmem:[%s778 + $0x280] sm:$0xff] %v859
                  %v861 = vld [vmem:[%s777 + $0x8f8] sm:$0xff]
                  %862 = vst [vmem:[%s778 + $0x290] sm:$0xff] %v861
                  %v863 = vld [vmem:[%s777 + $0x930] sm:$0xff]
                  %864 = vst [vmem:[%s778 + $0x2a0] sm:$0xff] %v863
                  %v865 = vld [vmem:[%s777 + $0x968] sm:$0xff]
                  %866 = vst [vmem:[%s778 + $0x2b0] sm:$0xff] %v865
                  %v867 = vld [vmem:[%s777 + $0x9a0] sm:$0xff]
                  %868 = vst [vmem:[%s778 + $0x2c0] sm:$0xff] %v867
                  %v869 = vld [vmem:[%s777 + $0x9d8] sm:$0xff]
                  %870 = vst [vmem:[%s778 + $0x2d0] sm:$0xff] %v869
                  %v871 = vld [vmem:[%s777 + $0xa10] sm:$0xff]
                  %872 = vst [vmem:[%s778 + $0x2e0] sm:$0xff] %v871
                  %v873 = vld [vmem:[%s777 + $0xa48] sm:$0xff]
                  %874 = vst [vmem:[%s778 + $0x2f0] sm:$0xff] %v873
                  %v875 = vld [vmem:[%s777 + $0xa80] sm:$0xff]
                  %876 = vst [vmem:[%s778 + $0x300] sm:$0xff] %v875
                  %v877 = vld [vmem:[%s777 + $0xab8] sm:$0xff]
                  %878 = vst [vmem:[%s778 + $0x310] sm:$0xff] %v877
                  %v879 = vld [vmem:[%s777 + $0xaf0] sm:$0xff]
                  %880 = vst [vmem:[%s778 + $0x320] sm:$0xff] %v879
                  %v881 = vld [vmem:[%s777 + $0xb28] sm:$0xff]
                  %882 = vst [vmem:[%s778 + $0x330] sm:$0xff] %v881
                  %v883 = vld [vmem:[%s777 + $0xb60] sm:$0xff]
                  %884 = vst [vmem:[%s778 + $0x340] sm:$0xff] %v883
                  %v885 = vld [vmem:[%s777 + $0xb98] sm:$0xff]
                  %886 = vst [vmem:[%s778 + $0x350] sm:$0xff] %v885
                  %v887 = vld [vmem:[%s777 + $0xbd0] sm:$0xff]
                  %888 = vst [vmem:[%s778 + $0x360] sm:$0xff] %v887
                  %v889 = vld [vmem:[%s777 + $0xc08] sm:$0xff]
                  %890 = vst [vmem:[%s778 + $0x370] sm:$0xff] %v889
                  %v891 = vld [vmem:[%s777 + $0xc40] sm:$0xff]
                  %892 = vst [vmem:[%s778 + $0x380] sm:$0xff] %v891
                  %v893 = vld [vmem:[%s777 + $0xc78] sm:$0xff]
                  %894 = vst [vmem:[%s778 + $0x390] sm:$0xff] %v893
                  %v895 = vld [vmem:[%s777 + $0xcb0] sm:$0xff]
                  %896 = vst [vmem:[%s778 + $0x3a0] sm:$0xff] %v895
                  %v897 = vld [vmem:[%s777 + $0xce8] sm:$0xff]
                  %898 = vst [vmem:[%s778 + $0x3b0] sm:$0xff] %v897
                  %v899 = vld [vmem:[%s777 + $0xd20] sm:$0xff]
                  %900 = vst [vmem:[%s778 + $0x3c0] sm:$0xff] %v899
                  %v901 = vld [vmem:[%s777 + $0xd58] sm:$0xff]
                  %902 = vst [vmem:[%s778 + $0x3d0] sm:$0xff] %v901
                  %v903 = vld [vmem:[%s777 + $0xd90] sm:$0xff]
                  %904 = vst [vmem:[%s778 + $0x3e0] sm:$0xff] %v903
                  %v905 = vld [vmem:[%s777 + $0xdc8] sm:$0xff]
                  %906 = vst [vmem:[%s778 + $0x3f0] sm:$0xff] %v905
                  %s907 = sadd.s32 1, %s776
                  %p908 = scmp.ge.s32.totalorder %s907, %s769
                  %s909 = scalar_select %p908, 0, %s907
                  %s910 = smul.u32 %s909, 8
                  %s911 = smul.u32 %s909, 8
                  %s912 = scalar_lea.vmem %s614, %s910
                  %s913 = scalar_lea.vmem %s604, %s911 [#allocation3]
                $region126: #{conv_bn_add_relu_conv.1} parent=120 // loop_footer
                  %s773 = sadd.s32 %s771, 1
                $region127: #{conv_bn_add_relu_conv.1} parent=120 // loop_footer_branch
                  %770 = sbr.rel target = $region123
                $region128: #{conv_bn_add_relu_conv.1} parent=120 // loop_exit
                  _
              $region121: #{conv_bn_add_relu_conv.1} parent=105 // pred_fallthru
                _
              %p914 = pneg %p765
              // Predicated region
              $region129: #{conv_bn_add_relu_conv.1} parent=105 // pred_check
                _
              $region130: #{conv_bn_add_relu_conv.1} parent=105 // pred_check_branch
                %916 = sbr.rel (%p765) target = $region132
              $region131: #{conv_bn_add_relu_conv.1} parent=105 // pred_region
                %s917 = sand.u32 %s615, 7
                %s918 = ssub.s32 %s615, %s917
                %s919 = scalar_lea.vmem %s614, %s918
                %s920 = ssub.s32 %s615, %s917
                %s921 = scalar_lea.vmem %s604, %s920 [#allocation3]
                %s922 = sshrl.u32 %s615, 3
                // While loop
                $region133: #{conv_bn_add_relu_conv.1} parent=131 // loop_pre_header
                  _
                $region134: #{conv_bn_add_relu_conv.1} parent=131 // loop_header
                  %s924 = sphi 0, %s926
                  %p925 = scmp.ge.s32.totalorder %s924, %s922
                  %s929 = sphi 0, %s1062
                  %s930 = sphi %s614, %s1065
                  %s931 = sphi %s604, %s1066
                $region135: #{conv_bn_add_relu_conv.1} parent=131 // loop_header_branch
                  %928 = sbr.rel (%p925) target = $region139
                $region136: #{conv_bn_add_relu_conv.1} parent=131 // loop_body
                  %v932 = vld [vmem:[%s930] sm:$0xff]
                  %933 = vst [vmem:[%s931] sm:$0xff] %v932
                  %v934 = vld [vmem:[%s930 + $0x38] sm:$0xff]
                  %935 = vst [vmem:[%s931 + $0x10] sm:$0xff] %v934
                  %v936 = vld [vmem:[%s930 + $0x70] sm:$0xff]
                  %937 = vst [vmem:[%s931 + $0x20] sm:$0xff] %v936
                  %v938 = vld [vmem:[%s930 + $0xa8] sm:$0xff]
                  %939 = vst [vmem:[%s931 + $0x30] sm:$0xff] %v938
                  %v940 = vld [vmem:[%s930 + $0xe0] sm:$0xff]
                  %941 = vst [vmem:[%s931 + $0x40] sm:$0xff] %v940
                  %v942 = vld [vmem:[%s930 + $0x118] sm:$0xff]
                  %943 = vst [vmem:[%s931 + $0x50] sm:$0xff] %v942
                  %v944 = vld [vmem:[%s930 + $0x150] sm:$0xff]
                  %945 = vst [vmem:[%s931 + $0x60] sm:$0xff] %v944
                  %v946 = vld [vmem:[%s930 + $0x188] sm:$0xff]
                  %947 = vst [vmem:[%s931 + $0x70] sm:$0xff] %v946
                  %v948 = vld [vmem:[%s930 + $0x1c0] sm:$0xff]
                  %949 = vst [vmem:[%s931 + $0x80] sm:$0xff] %v948
                  %v950 = vld [vmem:[%s930 + $0x1f8] sm:$0xff]
                  %951 = vst [vmem:[%s931 + $0x90] sm:$0xff] %v950
                  %v952 = vld [vmem:[%s930 + $0x230] sm:$0xff]
                  %953 = vst [vmem:[%s931 + $0xa0] sm:$0xff] %v952
                  %v954 = vld [vmem:[%s930 + $0x268] sm:$0xff]
                  %955 = vst [vmem:[%s931 + $0xb0] sm:$0xff] %v954
                  %v956 = vld [vmem:[%s930 + $0x2a0] sm:$0xff]
                  %957 = vst [vmem:[%s931 + $0xc0] sm:$0xff] %v956
                  %v958 = vld [vmem:[%s930 + $0x2d8] sm:$0xff]
                  %959 = vst [vmem:[%s931 + $0xd0] sm:$0xff] %v958
                  %v960 = vld [vmem:[%s930 + $0x310] sm:$0xff]
                  %961 = vst [vmem:[%s931 + $0xe0] sm:$0xff] %v960
                  %v962 = vld [vmem:[%s930 + $0x348] sm:$0xff]
                  %963 = vst [vmem:[%s931 + $0xf0] sm:$0xff] %v962
                  %v964 = vld [vmem:[%s930 + $0x380] sm:$0xff]
                  %965 = vst [vmem:[%s931 + $0x100] sm:$0xff] %v964
                  %v966 = vld [vmem:[%s930 + $0x3b8] sm:$0xff]
                  %967 = vst [vmem:[%s931 + $0x110] sm:$0xff] %v966
                  %v968 = vld [vmem:[%s930 + $0x3f0] sm:$0xff]
                  %969 = vst [vmem:[%s931 + $0x120] sm:$0xff] %v968
                  %v970 = vld [vmem:[%s930 + $0x428] sm:$0xff]
                  %971 = vst [vmem:[%s931 + $0x130] sm:$0xff] %v970
                  %v972 = vld [vmem:[%s930 + $0x460] sm:$0xff]
                  %973 = vst [vmem:[%s931 + $0x140] sm:$0xff] %v972
                  %v974 = vld [vmem:[%s930 + $0x498] sm:$0xff]
                  %975 = vst [vmem:[%s931 + $0x150] sm:$0xff] %v974
                  %v976 = vld [vmem:[%s930 + $0x4d0] sm:$0xff]
                  %977 = vst [vmem:[%s931 + $0x160] sm:$0xff] %v976
                  %v978 = vld [vmem:[%s930 + $0x508] sm:$0xff]
                  %979 = vst [vmem:[%s931 + $0x170] sm:$0xff] %v978
                  %v980 = vld [vmem:[%s930 + $0x540] sm:$0xff]
                  %981 = vst [vmem:[%s931 + $0x180] sm:$0xff] %v980
                  %v982 = vld [vmem:[%s930 + $0x578] sm:$0xff]
                  %983 = vst [vmem:[%s931 + $0x190] sm:$0xff] %v982
                  %v984 = vld [vmem:[%s930 + $0x5b0] sm:$0xff]
                  %985 = vst [vmem:[%s931 + $0x1a0] sm:$0xff] %v984
                  %v986 = vld [vmem:[%s930 + $0x5e8] sm:$0xff]
                  %987 = vst [vmem:[%s931 + $0x1b0] sm:$0xff] %v986
                  %v988 = vld [vmem:[%s930 + $0x620] sm:$0xff]
                  %989 = vst [vmem:[%s931 + $0x1c0] sm:$0xff] %v988
                  %v990 = vld [vmem:[%s930 + $0x658] sm:$0xff]
                  %991 = vst [vmem:[%s931 + $0x1d0] sm:$0xff] %v990
                  %v992 = vld [vmem:[%s930 + $0x690] sm:$0xff]
                  %993 = vst [vmem:[%s931 + $0x1e0] sm:$0xff] %v992
                  %v994 = vld [vmem:[%s930 + $0x6c8] sm:$0xff]
                  %995 = vst [vmem:[%s931 + $0x1f0] sm:$0xff] %v994
                  %v996 = vld [vmem:[%s930 + $0x700] sm:$0xff]
                  %997 = vst [vmem:[%s931 + $0x200] sm:$0xff] %v996
                  %v998 = vld [vmem:[%s930 + $0x738] sm:$0xff]
                  %999 = vst [vmem:[%s931 + $0x210] sm:$0xff] %v998
                  %v1000 = vld [vmem:[%s930 + $0x770] sm:$0xff]
                  %1001 = vst [vmem:[%s931 + $0x220] sm:$0xff] %v1000
                  %v1002 = vld [vmem:[%s930 + $0x7a8] sm:$0xff]
                  %1003 = vst [vmem:[%s931 + $0x230] sm:$0xff] %v1002
                  %v1004 = vld [vmem:[%s930 + $0x7e0] sm:$0xff]
                  %1005 = vst [vmem:[%s931 + $0x240] sm:$0xff] %v1004
                  %v1006 = vld [vmem:[%s930 + $0x818] sm:$0xff]
                  %1007 = vst [vmem:[%s931 + $0x250] sm:$0xff] %v1006
                  %v1008 = vld [vmem:[%s930 + $0x850] sm:$0xff]
                  %1009 = vst [vmem:[%s931 + $0x260] sm:$0xff] %v1008
                  %v1010 = vld [vmem:[%s930 + $0x888] sm:$0xff]
                  %1011 = vst [vmem:[%s931 + $0x270] sm:$0xff] %v1010
                  %v1012 = vld [vmem:[%s930 + $0x8c0] sm:$0xff]
                  %1013 = vst [vmem:[%s931 + $0x280] sm:$0xff] %v1012
                  %v1014 = vld [vmem:[%s930 + $0x8f8] sm:$0xff]
                  %1015 = vst [vmem:[%s931 + $0x290] sm:$0xff] %v1014
                  %v1016 = vld [vmem:[%s930 + $0x930] sm:$0xff]
                  %1017 = vst [vmem:[%s931 + $0x2a0] sm:$0xff] %v1016
                  %v1018 = vld [vmem:[%s930 + $0x968] sm:$0xff]
                  %1019 = vst [vmem:[%s931 + $0x2b0] sm:$0xff] %v1018
                  %v1020 = vld [vmem:[%s930 + $0x9a0] sm:$0xff]
                  %1021 = vst [vmem:[%s931 + $0x2c0] sm:$0xff] %v1020
                  %v1022 = vld [vmem:[%s930 + $0x9d8] sm:$0xff]
                  %1023 = vst [vmem:[%s931 + $0x2d0] sm:$0xff] %v1022
                  %v1024 = vld [vmem:[%s930 + $0xa10] sm:$0xff]
                  %1025 = vst [vmem:[%s931 + $0x2e0] sm:$0xff] %v1024
                  %v1026 = vld [vmem:[%s930 + $0xa48] sm:$0xff]
                  %1027 = vst [vmem:[%s931 + $0x2f0] sm:$0xff] %v1026
                  %v1028 = vld [vmem:[%s930 + $0xa80] sm:$0xff]
                  %1029 = vst [vmem:[%s931 + $0x300] sm:$0xff] %v1028
                  %v1030 = vld [vmem:[%s930 + $0xab8] sm:$0xff]
                  %1031 = vst [vmem:[%s931 + $0x310] sm:$0xff] %v1030
                  %v1032 = vld [vmem:[%s930 + $0xaf0] sm:$0xff]
                  %1033 = vst [vmem:[%s931 + $0x320] sm:$0xff] %v1032
                  %v1034 = vld [vmem:[%s930 + $0xb28] sm:$0xff]
                  %1035 = vst [vmem:[%s931 + $0x330] sm:$0xff] %v1034
                  %v1036 = vld [vmem:[%s930 + $0xb60] sm:$0xff]
                  %1037 = vst [vmem:[%s931 + $0x340] sm:$0xff] %v1036
                  %v1038 = vld [vmem:[%s930 + $0xb98] sm:$0xff]
                  %1039 = vst [vmem:[%s931 + $0x350] sm:$0xff] %v1038
                  %v1040 = vld [vmem:[%s930 + $0xbd0] sm:$0xff]
                  %1041 = vst [vmem:[%s931 + $0x360] sm:$0xff] %v1040
                  %v1042 = vld [vmem:[%s930 + $0xc08] sm:$0xff]
                  %1043 = vst [vmem:[%s931 + $0x370] sm:$0xff] %v1042
                  %v1044 = vld [vmem:[%s930 + $0xc40] sm:$0xff]
                  %1045 = vst [vmem:[%s931 + $0x380] sm:$0xff] %v1044
                  %v1046 = vld [vmem:[%s930 + $0xc78] sm:$0xff]
                  %1047 = vst [vmem:[%s931 + $0x390] sm:$0xff] %v1046
                  %v1048 = vld [vmem:[%s930 + $0xcb0] sm:$0xff]
                  %1049 = vst [vmem:[%s931 + $0x3a0] sm:$0xff] %v1048
                  %v1050 = vld [vmem:[%s930 + $0xce8] sm:$0xff]
                  %1051 = vst [vmem:[%s931 + $0x3b0] sm:$0xff] %v1050
                  %v1052 = vld [vmem:[%s930 + $0xd20] sm:$0xff]
                  %1053 = vst [vmem:[%s931 + $0x3c0] sm:$0xff] %v1052
                  %v1054 = vld [vmem:[%s930 + $0xd58] sm:$0xff]
                  %1055 = vst [vmem:[%s931 + $0x3d0] sm:$0xff] %v1054
                  %v1056 = vld [vmem:[%s930 + $0xd90] sm:$0xff]
                  %1057 = vst [vmem:[%s931 + $0x3e0] sm:$0xff] %v1056
                  %v1058 = vld [vmem:[%s930 + $0xdc8] sm:$0xff]
                  %1059 = vst [vmem:[%s931 + $0x3f0] sm:$0xff] %v1058
                  %s1060 = sadd.s32 1, %s929
                  %p1061 = scmp.ge.s32.totalorder %s1060, %s922
                  %s1062 = scalar_select %p1061, 0, %s1060
                  %s1063 = smul.u32 %s1062, 8
                  %s1064 = smul.u32 %s1062, 8
                  %s1065 = scalar_lea.vmem %s614, %s1063
                  %s1066 = scalar_lea.vmem %s604, %s1064 [#allocation3]
                $region137: #{conv_bn_add_relu_conv.1} parent=131 // loop_footer
                  %s926 = sadd.s32 %s924, 1
                $region138: #{conv_bn_add_relu_conv.1} parent=131 // loop_footer_branch
                  %923 = sbr.rel target = $region134
                $region139: #{conv_bn_add_relu_conv.1} parent=131 // loop_exit
                  _
                %s1067 = sshll.u32 1, %s917
                %s1068 = ssub.s32 %s1067, 1
                loop: start=0, step=1, limit=1
                $region140: #{conv_bn_add_relu_conv.1} parent=131 // loop_pre_header
                  _
                $region141: #{conv_bn_add_relu_conv.1} parent=131 // loop_header
                  %s1070 = sphi 0, %s1074
                  %p1071 = scmp.ge.s32.totalorder %s1070, 1
                  %s1075 = sphi %s919, %s919
                  %s1076 = sphi %s921, %s921
                $region142: #{conv_bn_add_relu_conv.1} parent=131 // loop_header_branch
                  %1073 = sbr.rel (%p1071) target = $region146
                $region143: #{conv_bn_add_relu_conv.1} parent=131 // loop_body
                  %v1077 = vld [vmem:[%s1075] sm:%s1068]
                  %1078 = vst [vmem:[%s1076] sm:%s1068] %v1077
                  %v1079 = vld [vmem:[%s1075 + $0x38] sm:%s1068]
                  %1080 = vst [vmem:[%s1076 + $0x10] sm:%s1068] %v1079
                  %v1081 = vld [vmem:[%s1075 + $0x70] sm:%s1068]
                  %1082 = vst [vmem:[%s1076 + $0x20] sm:%s1068] %v1081
                  %v1083 = vld [vmem:[%s1075 + $0xa8] sm:%s1068]
                  %1084 = vst [vmem:[%s1076 + $0x30] sm:%s1068] %v1083
                  %v1085 = vld [vmem:[%s1075 + $0xe0] sm:%s1068]
                  %1086 = vst [vmem:[%s1076 + $0x40] sm:%s1068] %v1085
                  %v1087 = vld [vmem:[%s1075 + $0x118] sm:%s1068]
                  %1088 = vst [vmem:[%s1076 + $0x50] sm:%s1068] %v1087
                  %v1089 = vld [vmem:[%s1075 + $0x150] sm:%s1068]
                  %1090 = vst [vmem:[%s1076 + $0x60] sm:%s1068] %v1089
                  %v1091 = vld [vmem:[%s1075 + $0x188] sm:%s1068]
                  %1092 = vst [vmem:[%s1076 + $0x70] sm:%s1068] %v1091
                  %v1093 = vld [vmem:[%s1075 + $0x1c0] sm:%s1068]
                  %1094 = vst [vmem:[%s1076 + $0x80] sm:%s1068] %v1093
                  %v1095 = vld [vmem:[%s1075 + $0x1f8] sm:%s1068]
                  %1096 = vst [vmem:[%s1076 + $0x90] sm:%s1068] %v1095
                  %v1097 = vld [vmem:[%s1075 + $0x230] sm:%s1068]
                  %1098 = vst [vmem:[%s1076 + $0xa0] sm:%s1068] %v1097
                  %v1099 = vld [vmem:[%s1075 + $0x268] sm:%s1068]
                  %1100 = vst [vmem:[%s1076 + $0xb0] sm:%s1068] %v1099
                  %v1101 = vld [vmem:[%s1075 + $0x2a0] sm:%s1068]
                  %1102 = vst [vmem:[%s1076 + $0xc0] sm:%s1068] %v1101
                  %v1103 = vld [vmem:[%s1075 + $0x2d8] sm:%s1068]
                  %1104 = vst [vmem:[%s1076 + $0xd0] sm:%s1068] %v1103
                  %v1105 = vld [vmem:[%s1075 + $0x310] sm:%s1068]
                  %1106 = vst [vmem:[%s1076 + $0xe0] sm:%s1068] %v1105
                  %v1107 = vld [vmem:[%s1075 + $0x348] sm:%s1068]
                  %1108 = vst [vmem:[%s1076 + $0xf0] sm:%s1068] %v1107
                  %v1109 = vld [vmem:[%s1075 + $0x380] sm:%s1068]
                  %1110 = vst [vmem:[%s1076 + $0x100] sm:%s1068] %v1109
                  %v1111 = vld [vmem:[%s1075 + $0x3b8] sm:%s1068]
                  %1112 = vst [vmem:[%s1076 + $0x110] sm:%s1068] %v1111
                  %v1113 = vld [vmem:[%s1075 + $0x3f0] sm:%s1068]
                  %1114 = vst [vmem:[%s1076 + $0x120] sm:%s1068] %v1113
                  %v1115 = vld [vmem:[%s1075 + $0x428] sm:%s1068]
                  %1116 = vst [vmem:[%s1076 + $0x130] sm:%s1068] %v1115
                  %v1117 = vld [vmem:[%s1075 + $0x460] sm:%s1068]
                  %1118 = vst [vmem:[%s1076 + $0x140] sm:%s1068] %v1117
                  %v1119 = vld [vmem:[%s1075 + $0x498] sm:%s1068]
                  %1120 = vst [vmem:[%s1076 + $0x150] sm:%s1068] %v1119
                  %v1121 = vld [vmem:[%s1075 + $0x4d0] sm:%s1068]
                  %1122 = vst [vmem:[%s1076 + $0x160] sm:%s1068] %v1121
                  %v1123 = vld [vmem:[%s1075 + $0x508] sm:%s1068]
                  %1124 = vst [vmem:[%s1076 + $0x170] sm:%s1068] %v1123
                  %v1125 = vld [vmem:[%s1075 + $0x540] sm:%s1068]
                  %1126 = vst [vmem:[%s1076 + $0x180] sm:%s1068] %v1125
                  %v1127 = vld [vmem:[%s1075 + $0x578] sm:%s1068]
                  %1128 = vst [vmem:[%s1076 + $0x190] sm:%s1068] %v1127
                  %v1129 = vld [vmem:[%s1075 + $0x5b0] sm:%s1068]
                  %1130 = vst [vmem:[%s1076 + $0x1a0] sm:%s1068] %v1129
                  %v1131 = vld [vmem:[%s1075 + $0x5e8] sm:%s1068]
                  %1132 = vst [vmem:[%s1076 + $0x1b0] sm:%s1068] %v1131
                  %v1133 = vld [vmem:[%s1075 + $0x620] sm:%s1068]
                  %1134 = vst [vmem:[%s1076 + $0x1c0] sm:%s1068] %v1133
                  %v1135 = vld [vmem:[%s1075 + $0x658] sm:%s1068]
                  %1136 = vst [vmem:[%s1076 + $0x1d0] sm:%s1068] %v1135
                  %v1137 = vld [vmem:[%s1075 + $0x690] sm:%s1068]
                  %1138 = vst [vmem:[%s1076 + $0x1e0] sm:%s1068] %v1137
                  %v1139 = vld [vmem:[%s1075 + $0x6c8] sm:%s1068]
                  %1140 = vst [vmem:[%s1076 + $0x1f0] sm:%s1068] %v1139
                  %v1141 = vld [vmem:[%s1075 + $0x700] sm:%s1068]
                  %1142 = vst [vmem:[%s1076 + $0x200] sm:%s1068] %v1141
                  %v1143 = vld [vmem:[%s1075 + $0x738] sm:%s1068]
                  %1144 = vst [vmem:[%s1076 + $0x210] sm:%s1068] %v1143
                  %v1145 = vld [vmem:[%s1075 + $0x770] sm:%s1068]
                  %1146 = vst [vmem:[%s1076 + $0x220] sm:%s1068] %v1145
                  %v1147 = vld [vmem:[%s1075 + $0x7a8] sm:%s1068]
                  %1148 = vst [vmem:[%s1076 + $0x230] sm:%s1068] %v1147
                  %v1149 = vld [vmem:[%s1075 + $0x7e0] sm:%s1068]
                  %1150 = vst [vmem:[%s1076 + $0x240] sm:%s1068] %v1149
                  %v1151 = vld [vmem:[%s1075 + $0x818] sm:%s1068]
                  %1152 = vst [vmem:[%s1076 + $0x250] sm:%s1068] %v1151
                  %v1153 = vld [vmem:[%s1075 + $0x850] sm:%s1068]
                  %1154 = vst [vmem:[%s1076 + $0x260] sm:%s1068] %v1153
                  %v1155 = vld [vmem:[%s1075 + $0x888] sm:%s1068]
                  %1156 = vst [vmem:[%s1076 + $0x270] sm:%s1068] %v1155
                  %v1157 = vld [vmem:[%s1075 + $0x8c0] sm:%s1068]
                  %1158 = vst [vmem:[%s1076 + $0x280] sm:%s1068] %v1157
                  %v1159 = vld [vmem:[%s1075 + $0x8f8] sm:%s1068]
                  %1160 = vst [vmem:[%s1076 + $0x290] sm:%s1068] %v1159
                  %v1161 = vld [vmem:[%s1075 + $0x930] sm:%s1068]
                  %1162 = vst [vmem:[%s1076 + $0x2a0] sm:%s1068] %v1161
                  %v1163 = vld [vmem:[%s1075 + $0x968] sm:%s1068]
                  %1164 = vst [vmem:[%s1076 + $0x2b0] sm:%s1068] %v1163
                  %v1165 = vld [vmem:[%s1075 + $0x9a0] sm:%s1068]
                  %1166 = vst [vmem:[%s1076 + $0x2c0] sm:%s1068] %v1165
                  %v1167 = vld [vmem:[%s1075 + $0x9d8] sm:%s1068]
                  %1168 = vst [vmem:[%s1076 + $0x2d0] sm:%s1068] %v1167
                  %v1169 = vld [vmem:[%s1075 + $0xa10] sm:%s1068]
                  %1170 = vst [vmem:[%s1076 + $0x2e0] sm:%s1068] %v1169
                  %v1171 = vld [vmem:[%s1075 + $0xa48] sm:%s1068]
                  %1172 = vst [vmem:[%s1076 + $0x2f0] sm:%s1068] %v1171
                  %v1173 = vld [vmem:[%s1075 + $0xa80] sm:%s1068]
                  %1174 = vst [vmem:[%s1076 + $0x300] sm:%s1068] %v1173
                  %v1175 = vld [vmem:[%s1075 + $0xab8] sm:%s1068]
                  %1176 = vst [vmem:[%s1076 + $0x310] sm:%s1068] %v1175
                  %v1177 = vld [vmem:[%s1075 + $0xaf0] sm:%s1068]
                  %1178 = vst [vmem:[%s1076 + $0x320] sm:%s1068] %v1177
                  %v1179 = vld [vmem:[%s1075 + $0xb28] sm:%s1068]
                  %1180 = vst [vmem:[%s1076 + $0x330] sm:%s1068] %v1179
                  %v1181 = vld [vmem:[%s1075 + $0xb60] sm:%s1068]
                  %1182 = vst [vmem:[%s1076 + $0x340] sm:%s1068] %v1181
                  %v1183 = vld [vmem:[%s1075 + $0xb98] sm:%s1068]
                  %1184 = vst [vmem:[%s1076 + $0x350] sm:%s1068] %v1183
                  %v1185 = vld [vmem:[%s1075 + $0xbd0] sm:%s1068]
                  %1186 = vst [vmem:[%s1076 + $0x360] sm:%s1068] %v1185
                  %v1187 = vld [vmem:[%s1075 + $0xc08] sm:%s1068]
                  %1188 = vst [vmem:[%s1076 + $0x370] sm:%s1068] %v1187
                  %v1189 = vld [vmem:[%s1075 + $0xc40] sm:%s1068]
                  %1190 = vst [vmem:[%s1076 + $0x380] sm:%s1068] %v1189
                  %v1191 = vld [vmem:[%s1075 + $0xc78] sm:%s1068]
                  %1192 = vst [vmem:[%s1076 + $0x390] sm:%s1068] %v1191
                  %v1193 = vld [vmem:[%s1075 + $0xcb0] sm:%s1068]
                  %1194 = vst [vmem:[%s1076 + $0x3a0] sm:%s1068] %v1193
                  %v1195 = vld [vmem:[%s1075 + $0xce8] sm:%s1068]
                  %1196 = vst [vmem:[%s1076 + $0x3b0] sm:%s1068] %v1195
                  %v1197 = vld [vmem:[%s1075 + $0xd20] sm:%s1068]
                  %1198 = vst [vmem:[%s1076 + $0x3c0] sm:%s1068] %v1197
                  %v1199 = vld [vmem:[%s1075 + $0xd58] sm:%s1068]
                  %1200 = vst [vmem:[%s1076 + $0x3d0] sm:%s1068] %v1199
                  %v1201 = vld [vmem:[%s1075 + $0xd90] sm:%s1068]
                  %1202 = vst [vmem:[%s1076 + $0x3e0] sm:%s1068] %v1201
                  %v1203 = vld [vmem:[%s1075 + $0xdc8] sm:%s1068]
                  %1204 = vst [vmem:[%s1076 + $0x3f0] sm:%s1068] %v1203
                $region144: #{conv_bn_add_relu_conv.1} parent=131 // loop_footer
                  %s1074 = sadd.s32 1, %s1070
                $region145: #{conv_bn_add_relu_conv.1} parent=131 // loop_footer_branch
                  %1069 = sbr.rel target = $region141
                $region146: #{conv_bn_add_relu_conv.1} parent=131 // loop_exit
                  _
              $region132: #{conv_bn_add_relu_conv.1} parent=105 // pred_fallthru
                _
            $region106: #{conv_bn_add_relu_conv.1} parent=101 // pred_fallthru
              _
            // Predicated region
            $region107: #{conv_bn_add_relu_conv.1} parent=101 // pred_check
              %p623 = pneg %p619
            $region108: #{conv_bn_add_relu_conv.1} parent=101 // pred_check_branch
              %625 = sbr.rel (%p623) target = $region110
            $region109: #{conv_bn_add_relu_conv.1} parent=101 // pred_region
              %s626 = sshll.u32 1, %s615
              %s627 = ssub.s32 %s626, 1
              loop: start=0, step=1, limit=1
              $region111: #{conv_bn_add_relu_conv.1} parent=109 // loop_pre_header
                _
              $region112: #{conv_bn_add_relu_conv.1} parent=109 // loop_header
                %s629 = sphi 0, %s633
                %p630 = scmp.ge.s32.totalorder %s629, 1
                %s634 = sphi %s614, %s614
                %s635 = sphi %s604, %s604
              $region113: #{conv_bn_add_relu_conv.1} parent=109 // loop_header_branch
                %632 = sbr.rel (%p630) target = $region117
              $region114: #{conv_bn_add_relu_conv.1} parent=109 // loop_body
                %v636 = vld [vmem:[%s634] sm:%s627]
                %637 = vst [vmem:[%s635] sm:%s627] %v636
                %v638 = vld [vmem:[%s634 + $0x38] sm:%s627]
                %639 = vst [vmem:[%s635 + $0x10] sm:%s627] %v638
                %v640 = vld [vmem:[%s634 + $0x70] sm:%s627]
                %641 = vst [vmem:[%s635 + $0x20] sm:%s627] %v640
                %v642 = vld [vmem:[%s634 + $0xa8] sm:%s627]
                %643 = vst [vmem:[%s635 + $0x30] sm:%s627] %v642
                %v644 = vld [vmem:[%s634 + $0xe0] sm:%s627]
                %645 = vst [vmem:[%s635 + $0x40] sm:%s627] %v644
                %v646 = vld [vmem:[%s634 + $0x118] sm:%s627]
                %647 = vst [vmem:[%s635 + $0x50] sm:%s627] %v646
                %v648 = vld [vmem:[%s634 + $0x150] sm:%s627]
                %649 = vst [vmem:[%s635 + $0x60] sm:%s627] %v648
                %v650 = vld [vmem:[%s634 + $0x188] sm:%s627]
                %651 = vst [vmem:[%s635 + $0x70] sm:%s627] %v650
                %v652 = vld [vmem:[%s634 + $0x1c0] sm:%s627]
                %653 = vst [vmem:[%s635 + $0x80] sm:%s627] %v652
                %v654 = vld [vmem:[%s634 + $0x1f8] sm:%s627]
                %655 = vst [vmem:[%s635 + $0x90] sm:%s627] %v654
                %v656 = vld [vmem:[%s634 + $0x230] sm:%s627]
                %657 = vst [vmem:[%s635 + $0xa0] sm:%s627] %v656
                %v658 = vld [vmem:[%s634 + $0x268] sm:%s627]
                %659 = vst [vmem:[%s635 + $0xb0] sm:%s627] %v658
                %v660 = vld [vmem:[%s634 + $0x2a0] sm:%s627]
                %661 = vst [vmem:[%s635 + $0xc0] sm:%s627] %v660
                %v662 = vld [vmem:[%s634 + $0x2d8] sm:%s627]
                %663 = vst [vmem:[%s635 + $0xd0] sm:%s627] %v662
                %v664 = vld [vmem:[%s634 + $0x310] sm:%s627]
                %665 = vst [vmem:[%s635 + $0xe0] sm:%s627] %v664
                %v666 = vld [vmem:[%s634 + $0x348] sm:%s627]
                %667 = vst [vmem:[%s635 + $0xf0] sm:%s627] %v666
                %v668 = vld [vmem:[%s634 + $0x380] sm:%s627]
                %669 = vst [vmem:[%s635 + $0x100] sm:%s627] %v668
                %v670 = vld [vmem:[%s634 + $0x3b8] sm:%s627]
                %671 = vst [vmem:[%s635 + $0x110] sm:%s627] %v670
                %v672 = vld [vmem:[%s634 + $0x3f0] sm:%s627]
                %673 = vst [vmem:[%s635 + $0x120] sm:%s627] %v672
                %v674 = vld [vmem:[%s634 + $0x428] sm:%s627]
                %675 = vst [vmem:[%s635 + $0x130] sm:%s627] %v674
                %v676 = vld [vmem:[%s634 + $0x460] sm:%s627]
                %677 = vst [vmem:[%s635 + $0x140] sm:%s627] %v676
                %v678 = vld [vmem:[%s634 + $0x498] sm:%s627]
                %679 = vst [vmem:[%s635 + $0x150] sm:%s627] %v678
                %v680 = vld [vmem:[%s634 + $0x4d0] sm:%s627]
                %681 = vst [vmem:[%s635 + $0x160] sm:%s627] %v680
                %v682 = vld [vmem:[%s634 + $0x508] sm:%s627]
                %683 = vst [vmem:[%s635 + $0x170] sm:%s627] %v682
                %v684 = vld [vmem:[%s634 + $0x540] sm:%s627]
                %685 = vst [vmem:[%s635 + $0x180] sm:%s627] %v684
                %v686 = vld [vmem:[%s634 + $0x578] sm:%s627]
                %687 = vst [vmem:[%s635 + $0x190] sm:%s627] %v686
                %v688 = vld [vmem:[%s634 + $0x5b0] sm:%s627]
                %689 = vst [vmem:[%s635 + $0x1a0] sm:%s627] %v688
                %v690 = vld [vmem:[%s634 + $0x5e8] sm:%s627]
                %691 = vst [vmem:[%s635 + $0x1b0] sm:%s627] %v690
                %v692 = vld [vmem:[%s634 + $0x620] sm:%s627]
                %693 = vst [vmem:[%s635 + $0x1c0] sm:%s627] %v692
                %v694 = vld [vmem:[%s634 + $0x658] sm:%s627]
                %695 = vst [vmem:[%s635 + $0x1d0] sm:%s627] %v694
                %v696 = vld [vmem:[%s634 + $0x690] sm:%s627]
                %697 = vst [vmem:[%s635 + $0x1e0] sm:%s627] %v696
                %v698 = vld [vmem:[%s634 + $0x6c8] sm:%s627]
                %699 = vst [vmem:[%s635 + $0x1f0] sm:%s627] %v698
                %v700 = vld [vmem:[%s634 + $0x700] sm:%s627]
                %701 = vst [vmem:[%s635 + $0x200] sm:%s627] %v700
                %v702 = vld [vmem:[%s634 + $0x738] sm:%s627]
                %703 = vst [vmem:[%s635 + $0x210] sm:%s627] %v702
                %v704 = vld [vmem:[%s634 + $0x770] sm:%s627]
                %705 = vst [vmem:[%s635 + $0x220] sm:%s627] %v704
                %v706 = vld [vmem:[%s634 + $0x7a8] sm:%s627]
                %707 = vst [vmem:[%s635 + $0x230] sm:%s627] %v706
                %v708 = vld [vmem:[%s634 + $0x7e0] sm:%s627]
                %709 = vst [vmem:[%s635 + $0x240] sm:%s627] %v708
                %v710 = vld [vmem:[%s634 + $0x818] sm:%s627]
                %711 = vst [vmem:[%s635 + $0x250] sm:%s627] %v710
                %v712 = vld [vmem:[%s634 + $0x850] sm:%s627]
                %713 = vst [vmem:[%s635 + $0x260] sm:%s627] %v712
                %v714 = vld [vmem:[%s634 + $0x888] sm:%s627]
                %715 = vst [vmem:[%s635 + $0x270] sm:%s627] %v714
                %v716 = vld [vmem:[%s634 + $0x8c0] sm:%s627]
                %717 = vst [vmem:[%s635 + $0x280] sm:%s627] %v716
                %v718 = vld [vmem:[%s634 + $0x8f8] sm:%s627]
                %719 = vst [vmem:[%s635 + $0x290] sm:%s627] %v718
                %v720 = vld [vmem:[%s634 + $0x930] sm:%s627]
                %721 = vst [vmem:[%s635 + $0x2a0] sm:%s627] %v720
                %v722 = vld [vmem:[%s634 + $0x968] sm:%s627]
                %723 = vst [vmem:[%s635 + $0x2b0] sm:%s627] %v722
                %v724 = vld [vmem:[%s634 + $0x9a0] sm:%s627]
                %725 = vst [vmem:[%s635 + $0x2c0] sm:%s627] %v724
                %v726 = vld [vmem:[%s634 + $0x9d8] sm:%s627]
                %727 = vst [vmem:[%s635 + $0x2d0] sm:%s627] %v726
                %v728 = vld [vmem:[%s634 + $0xa10] sm:%s627]
                %729 = vst [vmem:[%s635 + $0x2e0] sm:%s627] %v728
                %v730 = vld [vmem:[%s634 + $0xa48] sm:%s627]
                %731 = vst [vmem:[%s635 + $0x2f0] sm:%s627] %v730
                %v732 = vld [vmem:[%s634 + $0xa80] sm:%s627]
                %733 = vst [vmem:[%s635 + $0x300] sm:%s627] %v732
                %v734 = vld [vmem:[%s634 + $0xab8] sm:%s627]
                %735 = vst [vmem:[%s635 + $0x310] sm:%s627] %v734
                %v736 = vld [vmem:[%s634 + $0xaf0] sm:%s627]
                %737 = vst [vmem:[%s635 + $0x320] sm:%s627] %v736
                %v738 = vld [vmem:[%s634 + $0xb28] sm:%s627]
                %739 = vst [vmem:[%s635 + $0x330] sm:%s627] %v738
                %v740 = vld [vmem:[%s634 + $0xb60] sm:%s627]
                %741 = vst [vmem:[%s635 + $0x340] sm:%s627] %v740
                %v742 = vld [vmem:[%s634 + $0xb98] sm:%s627]
                %743 = vst [vmem:[%s635 + $0x350] sm:%s627] %v742
                %v744 = vld [vmem:[%s634 + $0xbd0] sm:%s627]
                %745 = vst [vmem:[%s635 + $0x360] sm:%s627] %v744
                %v746 = vld [vmem:[%s634 + $0xc08] sm:%s627]
                %747 = vst [vmem:[%s635 + $0x370] sm:%s627] %v746
                %v748 = vld [vmem:[%s634 + $0xc40] sm:%s627]
                %749 = vst [vmem:[%s635 + $0x380] sm:%s627] %v748
                %v750 = vld [vmem:[%s634 + $0xc78] sm:%s627]
                %751 = vst [vmem:[%s635 + $0x390] sm:%s627] %v750
                %v752 = vld [vmem:[%s634 + $0xcb0] sm:%s627]
                %753 = vst [vmem:[%s635 + $0x3a0] sm:%s627] %v752
                %v754 = vld [vmem:[%s634 + $0xce8] sm:%s627]
                %755 = vst [vmem:[%s635 + $0x3b0] sm:%s627] %v754
                %v756 = vld [vmem:[%s634 + $0xd20] sm:%s627]
                %757 = vst [vmem:[%s635 + $0x3c0] sm:%s627] %v756
                %v758 = vld [vmem:[%s634 + $0xd58] sm:%s627]
                %759 = vst [vmem:[%s635 + $0x3d0] sm:%s627] %v758
                %v760 = vld [vmem:[%s634 + $0xd90] sm:%s627]
                %761 = vst [vmem:[%s635 + $0x3e0] sm:%s627] %v760
                %v762 = vld [vmem:[%s634 + $0xdc8] sm:%s627]
                %763 = vst [vmem:[%s635 + $0x3f0] sm:%s627] %v762
              $region115: #{conv_bn_add_relu_conv.1} parent=109 // loop_footer
                %s633 = sadd.s32 1, %s629
              $region116: #{conv_bn_add_relu_conv.1} parent=109 // loop_footer_branch
                %628 = sbr.rel target = $region112
              $region117: #{conv_bn_add_relu_conv.1} parent=109 // loop_exit
                _
            $region110: #{conv_bn_add_relu_conv.1} parent=101 // pred_fallthru
              _
          $region102: #{conv_bn_add_relu_conv.1} parent=97 // pred_fallthru
            _
          %1205 = vnop
        $region98: #{conv_bn_add_relu_conv.1} parent=27 // pred_fallthru
          _
      $region28: #{conv_bn_add_relu_conv.1} parent=5 // pred_fallthru
        _
      %p1206 = scmp.le.s32.totalorder 1, %s11
      %p1207 = scmp.lt.s32.totalorder %s11, 9
      %p1208 = pnand %p1206, %p1207
      %p1209 = pneg %p1208
      // Predicated region
      $region147: #{conv_bn_add_relu_conv.1} parent=5 // pred_check
        _
      $region148: #{conv_bn_add_relu_conv.1} parent=5 // pred_check_branch
        %1211 = sbr.rel (%p1208) target = $region150
      $region149: #{conv_bn_add_relu_conv.1} parent=5 // pred_region
        %s1212 = ssub.s32 %s11, 1
        %s1213 = sand.u32 %s38, 1
        %s1214 = sand.u32 %s38, 1
        %s1215 = smul.addr %s1214, 256
        %s1216 = scalar_lea.vmem [#allocation2], %s1215
        // Predicated region
        $region151: #{conv_bn_add_relu_conv.1} parent=149 // pred_check
          %p1217 = pneg %p51
        $region152: #{conv_bn_add_relu_conv.1} parent=149 // pred_check_branch
          %1219 = sbr.rel (%p1217) target = $region154
        $region153: #{conv_bn_add_relu_conv.1} parent=149 // pred_region
          _
        $region154: #{conv_bn_add_relu_conv.1} parent=149 // pred_fallthru
          _
        %s1220 = sand.u32 %s66, 1
        %s1221 = sand.u32 %s66, 1
        %s1222 = smul.addr %s1221, 1024
        %s1223 = scalar_lea.vmem [#allocation3], %s1222
        // Predicated region
        $region155: #{conv_bn_add_relu_conv.1} parent=149 // pred_check
          %p1224 = pneg %p79
        $region156: #{conv_bn_add_relu_conv.1} parent=149 // pred_check_branch
          %1226 = sbr.rel (%p1224) target = $region158
        $region157: #{conv_bn_add_relu_conv.1} parent=149 // pred_region
          _
        $region158: #{conv_bn_add_relu_conv.1} parent=149 // pred_fallthru
          _
        %s1227 = sand.u32 %s38, 1
        %s1228 = sand.u32 %s38, 1
        %s1229 = smul.addr %s1228, 256
        %s1230 = scalar_lea.vmem [#allocation2], %s1229
        %p1231 = pneg %p51
        %p1232 = pneg %p48
        %s1233 = sand.u32 %s66, 1
        %s1234 = sand.u32 %s66, 1
        %s1235 = smul.addr %s1234, 1024
        %s1236 = scalar_lea.vmem [#allocation3], %s1235
        %p1237 = pneg %p79
        %p1238 = pneg %p76
        %p1239 = pneg %p100
        %p1240 = pneg %p97
        %p1241 = pneg %p121
        %p1242 = pneg %p118
        %p1243 = pneg %p142
        %p1244 = pneg %p139
        %p1245 = pneg %p170
        %p1246 = pneg %p167
        %s1247 = sand.u32 %s157, 1
        %s1248 = sand.u32 %s157, 1
        %s1249 = smul.addr %s1248, 256
        %s1250 = scalar_lea.vmem [#allocation4], %s1249
        %s1251 = smul.u32 2, %s21
        %s1252 = ssub.s32 7, %s1251
        %p1253 = scmp.lt.s32.totalorder %s1252, 2
        %s1254 = scalar_select %p1253, %s1252, 2
        %s1255 = smul.u32 128, %s1254
        %s1256 = smul.u32 2, %s21
        %s1257 = ssub.s32 7, %s1256
        %p1258 = scmp.lt.s32.totalorder %s1257, 2
        %s1259 = scalar_select %p1258, %s1257, 2
        %s1260 = smul.u32 512, %s1259
        %s1261 = smul.u32 2, %s21
        %s1262 = ssub.s32 7, %s1261
        %p1263 = scmp.lt.s32.totalorder %s1262, 2
        %s1264 = scalar_select %p1263, %s1262, 2
        %s1265 = smul.u32 128, %s1264
        %v1266 = vld [vmem:[%s1216] sm:$0xff]
        %v1267 = vld [vmem:[%s1216 + $0x8] sm:$0xff]
        %v1268 = vld [vmem:[%s1216 + $0x10] sm:$0xff]
        %v1269 = vld [vmem:[%s1216 + $0x18] sm:$0xff]
        %v1270 = vld [vmem:[%s1216 + $0x20] sm:$0xff]
        %v1271 = vld [vmem:[%s1216 + $0x28] sm:$0xff]
        %v1272 = vld [vmem:[%s1216 + $0x30] sm:$0xff]
        %v1273 = vld [vmem:[%s1216 + $0x38] sm:$0xff]
        %v1274 = vld [vmem:[%s1216 + $0x40] sm:$0xff]
        %v1275 = vld [vmem:[%s1216 + $0x48] sm:$0xff]
        %v1276 = vld [vmem:[%s1216 + $0x50] sm:$0xff]
        %v1277 = vld [vmem:[%s1216 + $0x58] sm:$0xff]
        %v1278 = vld [vmem:[%s1216 + $0x60] sm:$0xff]
        %v1279 = vld [vmem:[%s1216 + $0x68] sm:$0xff]
        %v1280 = vld [vmem:[%s1216 + $0x70] sm:$0xff]
        %v1281 = vld [vmem:[%s1216 + $0x78] sm:$0xff]
        %v1282 = vld [vmem:[%s1216 + $0x80] sm:$0xff]
        %v1283 = vld [vmem:[%s1216 + $0x88] sm:$0xff]
        %v1284 = vld [vmem:[%s1216 + $0x90] sm:$0xff]
        %v1285 = vld [vmem:[%s1216 + $0x98] sm:$0xff]
        %v1286 = vld [vmem:[%s1216 + $0xa0] sm:$0xff]
        %v1287 = vld [vmem:[%s1216 + $0xa8] sm:$0xff]
        %v1288 = vld [vmem:[%s1216 + $0xb0] sm:$0xff]
        %v1289 = vld [vmem:[%s1216 + $0xb8] sm:$0xff]
        %v1290 = vld [vmem:[%s1216 + $0xc0] sm:$0xff]
        %v1291 = vld [vmem:[%s1216 + $0xc8] sm:$0xff]
        %v1292 = vld [vmem:[%s1216 + $0xd0] sm:$0xff]
        %v1293 = vld [vmem:[%s1216 + $0xd8] sm:$0xff]
        %v1294 = vld [vmem:[%s1216 + $0xe0] sm:$0xff]
        %v1295 = vld [vmem:[%s1216 + $0xe8] sm:$0xff]
        %v1296 = vld [vmem:[%s1216 + $0xf0] sm:$0xff]
        %v1297 = vld [vmem:[%s1216 + $0xf8] sm:$0xff]
        %v1298 = vpack.c.bf16 %v1268, %v1266
        %v1299 = vpack.c.bf16 %v1269, %v1267
        %v1300 = vpack.c.bf16 %v1272, %v1270
        %v1301 = vpack.c.bf16 %v1273, %v1271
        %v1302 = vpack.c.bf16 %v1276, %v1274
        %v1303 = vpack.c.bf16 %v1277, %v1275
        %v1304 = vpack.c.bf16 %v1280, %v1278
        %v1305 = vpack.c.bf16 %v1281, %v1279
        %v1306 = vpack.c.bf16 %v1284, %v1282
        %v1307 = vpack.c.bf16 %v1285, %v1283
        %v1308 = vpack.c.bf16 %v1288, %v1286
        %v1309 = vpack.c.bf16 %v1289, %v1287
        %v1310 = vpack.c.bf16 %v1292, %v1290
        %v1311 = vpack.c.bf16 %v1293, %v1291
        %v1312 = vpack.c.bf16 %v1296, %v1294
        %v1313 = vpack.c.bf16 %v1297, %v1295
        %v1314 = vld [vmem:[%s2] sm:$0xf]
        %v1315 = vld [vmem:[%s2 + $0x4] sm:$0xf]
        %v1316 = vld [vmem:[%s2 + $0x8] sm:$0xf]
        %v1317 = vld [vmem:[%s2 + $0xc] sm:$0xf]
        %v1318 = vld [vmem:[%s2 + $0x10] sm:$0xf]
        %v1319 = vld [vmem:[%s2 + $0x14] sm:$0xf]
        %v1320 = vld [vmem:[%s2 + $0x18] sm:$0xf]
        %v1321 = vld [vmem:[%s2 + $0x1c] sm:$0xf]
        %v1322 = vld [vmem:[%s2 + $0x20] sm:$0xf]
        %v1323 = vld [vmem:[%s2 + $0x24] sm:$0xf]
        %v1324 = vld [vmem:[%s2 + $0x28] sm:$0xf]
        %v1325 = vld [vmem:[%s2 + $0x2c] sm:$0xf]
        %v1326 = vld [vmem:[%s2 + $0x30] sm:$0xf]
        %v1327 = vld [vmem:[%s2 + $0x34] sm:$0xf]
        %v1328 = vld [vmem:[%s2 + $0x38] sm:$0xf]
        %v1329 = vld [vmem:[%s2 + $0x3c] sm:$0xf]
        %v1330 = vld [vmem:[%s2 + $0x40] sm:$0xf]
        %v1331 = vld [vmem:[%s2 + $0x44] sm:$0xf]
        %v1332 = vld [vmem:[%s2 + $0x48] sm:$0xf]
        %v1333 = vld [vmem:[%s2 + $0x4c] sm:$0xf]
        %v1334 = vld [vmem:[%s2 + $0x50] sm:$0xf]
        %v1335 = vld [vmem:[%s2 + $0x54] sm:$0xf]
        %v1336 = vld [vmem:[%s2 + $0x58] sm:$0xf]
        %v1337 = vld [vmem:[%s2 + $0x5c] sm:$0xf]
        %v1338 = vld [vmem:[%s2 + $0x60] sm:$0xf]
        %v1339 = vld [vmem:[%s2 + $0x64] sm:$0xf]
        %v1340 = vld [vmem:[%s2 + $0x68] sm:$0xf]
        %v1341 = vld [vmem:[%s2 + $0x6c] sm:$0xf]
        %v1342 = vld [vmem:[%s2 + $0x70] sm:$0xf]
        %v1343 = vld [vmem:[%s2 + $0x74] sm:$0xf]
        %v1344 = vld [vmem:[%s2 + $0x78] sm:$0xf]
        %v1345 = vld [vmem:[%s2 + $0x7c] sm:$0xf]
        %v1346 = vld [vmem:[%s2 + $0x80] sm:$0xf]
        %v1347 = vld [vmem:[%s2 + $0x84] sm:$0xf]
        %v1348 = vld [vmem:[%s2 + $0x88] sm:$0xf]
        %v1349 = vld [vmem:[%s2 + $0x8c] sm:$0xf]
        %v1350 = vld [vmem:[%s2 + $0x90] sm:$0xf]
        %v1351 = vld [vmem:[%s2 + $0x94] sm:$0xf]
        %v1352 = vld [vmem:[%s2 + $0x98] sm:$0xf]
        %v1353 = vld [vmem:[%s2 + $0x9c] sm:$0xf]
        %v1354 = vld [vmem:[%s2 + $0xa0] sm:$0xf]
        %v1355 = vld [vmem:[%s2 + $0xa4] sm:$0xf]
        %v1356 = vld [vmem:[%s2 + $0xa8] sm:$0xf]
        %v1357 = vld [vmem:[%s2 + $0xac] sm:$0xf]
        %v1358 = vld [vmem:[%s2 + $0xb0] sm:$0xf]
        %v1359 = vld [vmem:[%s2 + $0xb4] sm:$0xf]
        %v1360 = vld [vmem:[%s2 + $0xb8] sm:$0xf]
        %v1361 = vld [vmem:[%s2 + $0xbc] sm:$0xf]
        %v1362 = vld [vmem:[%s2 + $0xc0] sm:$0xf]
        %v1363 = vld [vmem:[%s2 + $0xc4] sm:$0xf]
        %v1364 = vld [vmem:[%s2 + $0xc8] sm:$0xf]
        %v1365 = vld [vmem:[%s2 + $0xcc] sm:$0xf]
        %v1366 = vld [vmem:[%s2 + $0xd0] sm:$0xf]
        %v1367 = vld [vmem:[%s2 + $0xd4] sm:$0xf]
        %v1368 = vld [vmem:[%s2 + $0xd8] sm:$0xf]
        %v1369 = vld [vmem:[%s2 + $0xdc] sm:$0xf]
        %v1370 = vld [vmem:[%s2 + $0xe0] sm:$0xf]
        %v1371 = vld [vmem:[%s2 + $0xe4] sm:$0xf]
        %v1372 = vld [vmem:[%s2 + $0xe8] sm:$0xf]
        %v1373 = vld [vmem:[%s2 + $0xec] sm:$0xf]
        %v1374 = vld [vmem:[%s2 + $0xf0] sm:$0xf]
        %v1375 = vld [vmem:[%s2 + $0xf4] sm:$0xf]
        %v1376 = vld [vmem:[%s2 + $0xf8] sm:$0xf]
        %v1377 = vld [vmem:[%s2 + $0xfc] sm:$0xf]
        %v1378 = vld [vmem:[%s3] sm:$0xff]
        %v1379 = vld [vmem:[%s3 + $0x8] sm:$0xff]
        %v1380 = vld [vmem:[%s3 + $0x10] sm:$0xff]
        %v1381 = vld [vmem:[%s3 + $0x18] sm:$0xff]
        %v1382 = vld [vmem:[%s3 + $0x20] sm:$0xff]
        %v1383 = vld [vmem:[%s3 + $0x28] sm:$0xff]
        %v1384 = vld [vmem:[%s3 + $0x30] sm:$0xff]
        %v1385 = vld [vmem:[%s3 + $0x38] sm:$0xff]
        %v1386 = vld [vmem:[%s3 + $0x40] sm:$0xff]
        %v1387 = vld [vmem:[%s3 + $0x48] sm:$0xff]
        %v1388 = vld [vmem:[%s3 + $0x50] sm:$0xff]
        %v1389 = vld [vmem:[%s3 + $0x58] sm:$0xff]
        %v1390 = vld [vmem:[%s3 + $0x60] sm:$0xff]
        %v1391 = vld [vmem:[%s3 + $0x68] sm:$0xff]
        %v1392 = vld [vmem:[%s3 + $0x70] sm:$0xff]
        %v1393 = vld [vmem:[%s3 + $0x78] sm:$0xff]
        %v1394 = vld [vmem:[%s3 + $0x80] sm:$0xff]
        %v1395 = vld [vmem:[%s3 + $0x88] sm:$0xff]
        %v1396 = vld [vmem:[%s3 + $0x90] sm:$0xff]
        %v1397 = vld [vmem:[%s3 + $0x98] sm:$0xff]
        %v1398 = vld [vmem:[%s3 + $0xa0] sm:$0xff]
        %v1399 = vld [vmem:[%s3 + $0xa8] sm:$0xff]
        %v1400 = vld [vmem:[%s3 + $0xb0] sm:$0xff]
        %v1401 = vld [vmem:[%s3 + $0xb8] sm:$0xff]
        %v1402 = vld [vmem:[%s3 + $0xc0] sm:$0xff]
        %v1403 = vld [vmem:[%s3 + $0xc8] sm:$0xff]
        %v1404 = vld [vmem:[%s3 + $0xd0] sm:$0xff]
        %v1405 = vld [vmem:[%s3 + $0xd8] sm:$0xff]
        %v1406 = vld [vmem:[%s3 + $0xe0] sm:$0xff]
        %v1407 = vld [vmem:[%s3 + $0xe8] sm:$0xff]
        %v1408 = vld [vmem:[%s3 + $0xf0] sm:$0xff]
        %v1409 = vld [vmem:[%s3 + $0xf8] sm:$0xff]
        %v1410 = vld [vmem:[%s3 + $0x100] sm:$0xff]
        %v1411 = vld [vmem:[%s3 + $0x108] sm:$0xff]
        %v1412 = vld [vmem:[%s3 + $0x110] sm:$0xff]
        %v1413 = vld [vmem:[%s3 + $0x118] sm:$0xff]
        %v1414 = vld [vmem:[%s3 + $0x120] sm:$0xff]
        %v1415 = vld [vmem:[%s3 + $0x128] sm:$0xff]
        %v1416 = vld [vmem:[%s3 + $0x130] sm:$0xff]
        %v1417 = vld [vmem:[%s3 + $0x138] sm:$0xff]
        %v1418 = vld [vmem:[%s3 + $0x140] sm:$0xff]
        %v1419 = vld [vmem:[%s3 + $0x148] sm:$0xff]
        %v1420 = vld [vmem:[%s3 + $0x150] sm:$0xff]
        %v1421 = vld [vmem:[%s3 + $0x158] sm:$0xff]
        %v1422 = vld [vmem:[%s3 + $0x160] sm:$0xff]
        %v1423 = vld [vmem:[%s3 + $0x168] sm:$0xff]
        %v1424 = vld [vmem:[%s3 + $0x170] sm:$0xff]
        %v1425 = vld [vmem:[%s3 + $0x178] sm:$0xff]
        %v1426 = vld [vmem:[%s3 + $0x180] sm:$0xff]
        %v1427 = vld [vmem:[%s3 + $0x188] sm:$0xff]
        %v1428 = vld [vmem:[%s3 + $0x190] sm:$0xff]
        %v1429 = vld [vmem:[%s3 + $0x198] sm:$0xff]
        %v1430 = vld [vmem:[%s3 + $0x1a0] sm:$0xff]
        %v1431 = vld [vmem:[%s3 + $0x1a8] sm:$0xff]
        %v1432 = vld [vmem:[%s3 + $0x1b0] sm:$0xff]
        %v1433 = vld [vmem:[%s3 + $0x1b8] sm:$0xff]
        %v1434 = vld [vmem:[%s3 + $0x1c0] sm:$0xff]
        %v1435 = vld [vmem:[%s3 + $0x1c8] sm:$0xff]
        %v1436 = vld [vmem:[%s3 + $0x1d0] sm:$0xff]
        %v1437 = vld [vmem:[%s3 + $0x1d8] sm:$0xff]
        %v1438 = vld [vmem:[%s3 + $0x1e0] sm:$0xff]
        %v1439 = vld [vmem:[%s3 + $0x1e8] sm:$0xff]
        %v1440 = vld [vmem:[%s3 + $0x1f0] sm:$0xff]
        %v1441 = vld [vmem:[%s3 + $0x1f8] sm:$0xff]
        %1443 = vset.pattern.permute.xlu0 0
        %1444 = vperm.xlu0 %1443, %v1378
        %v1445 = vpop.permute.xlu0 %1444
        %1448 = vset.pattern.permute.xlu0 0
        %1449 = vperm.xlu0 %1448, %v1379
        %v1450 = vpop.permute.xlu0 %1449
        %1453 = vset.pattern.permute.xlu0 0
        %1454 = vperm.xlu0 %1453, %v1380
        %v1455 = vpop.permute.xlu0 %1454
        %1458 = vset.pattern.permute.xlu0 0
        %1459 = vperm.xlu0 %1458, %v1381
        %v1460 = vpop.permute.xlu0 %1459
        %1463 = vset.pattern.permute.xlu0 0
        %1464 = vperm.xlu0 %1463, %v1382
        %v1465 = vpop.permute.xlu0 %1464
        %1468 = vset.pattern.permute.xlu0 0
        %1469 = vperm.xlu0 %1468, %v1383
        %v1470 = vpop.permute.xlu0 %1469
        %1473 = vset.pattern.permute.xlu0 0
        %1474 = vperm.xlu0 %1473, %v1384
        %v1475 = vpop.permute.xlu0 %1474
        %1478 = vset.pattern.permute.xlu0 0
        %1479 = vperm.xlu0 %1478, %v1385
        %v1480 = vpop.permute.xlu0 %1479
        %1483 = vset.pattern.permute.xlu0 0
        %1484 = vperm.xlu0 %1483, %v1386
        %v1485 = vpop.permute.xlu0 %1484
        %1488 = vset.pattern.permute.xlu0 0
        %1489 = vperm.xlu0 %1488, %v1387
        %v1490 = vpop.permute.xlu0 %1489
        %1493 = vset.pattern.permute.xlu0 0
        %1494 = vperm.xlu0 %1493, %v1388
        %v1495 = vpop.permute.xlu0 %1494
        %1498 = vset.pattern.permute.xlu0 0
        %1499 = vperm.xlu0 %1498, %v1389
        %v1500 = vpop.permute.xlu0 %1499
        %1503 = vset.pattern.permute.xlu0 0
        %1504 = vperm.xlu0 %1503, %v1390
        %v1505 = vpop.permute.xlu0 %1504
        %1508 = vset.pattern.permute.xlu0 0
        %1509 = vperm.xlu0 %1508, %v1391
        %v1510 = vpop.permute.xlu0 %1509
        %1513 = vset.pattern.permute.xlu0 0
        %1514 = vperm.xlu0 %1513, %v1392
        %v1515 = vpop.permute.xlu0 %1514
        %1518 = vset.pattern.permute.xlu0 0
        %1519 = vperm.xlu0 %1518, %v1393
        %v1520 = vpop.permute.xlu0 %1519
        %1523 = vset.pattern.permute.xlu0 0
        %1524 = vperm.xlu0 %1523, %v1394
        %v1525 = vpop.permute.xlu0 %1524
        %1528 = vset.pattern.permute.xlu0 0
        %1529 = vperm.xlu0 %1528, %v1395
        %v1530 = vpop.permute.xlu0 %1529
        %1533 = vset.pattern.permute.xlu0 0
        %1534 = vperm.xlu0 %1533, %v1396
        %v1535 = vpop.permute.xlu0 %1534
        %1538 = vset.pattern.permute.xlu0 0
        %1539 = vperm.xlu0 %1538, %v1397
        %v1540 = vpop.permute.xlu0 %1539
        %1543 = vset.pattern.permute.xlu0 0
        %1544 = vperm.xlu0 %1543, %v1398
        %v1545 = vpop.permute.xlu0 %1544
        %1548 = vset.pattern.permute.xlu0 0
        %1549 = vperm.xlu0 %1548, %v1399
        %v1550 = vpop.permute.xlu0 %1549
        %1553 = vset.pattern.permute.xlu0 0
        %1554 = vperm.xlu0 %1553, %v1400
        %v1555 = vpop.permute.xlu0 %1554
        %1558 = vset.pattern.permute.xlu0 0
        %1559 = vperm.xlu0 %1558, %v1401
        %v1560 = vpop.permute.xlu0 %1559
        %1563 = vset.pattern.permute.xlu0 0
        %1564 = vperm.xlu0 %1563, %v1402
        %v1565 = vpop.permute.xlu0 %1564
        %1568 = vset.pattern.permute.xlu0 0
        %1569 = vperm.xlu0 %1568, %v1403
        %v1570 = vpop.permute.xlu0 %1569
        %1573 = vset.pattern.permute.xlu0 0
        %1574 = vperm.xlu0 %1573, %v1404
        %v1575 = vpop.permute.xlu0 %1574
        %1578 = vset.pattern.permute.xlu0 0
        %1579 = vperm.xlu0 %1578, %v1405
        %v1580 = vpop.permute.xlu0 %1579
        %1583 = vset.pattern.permute.xlu0 0
        %1584 = vperm.xlu0 %1583, %v1406
        %v1585 = vpop.permute.xlu0 %1584
        %1588 = vset.pattern.permute.xlu0 0
        %1589 = vperm.xlu0 %1588, %v1407
        %v1590 = vpop.permute.xlu0 %1589
        %1593 = vset.pattern.permute.xlu0 0
        %1594 = vperm.xlu0 %1593, %v1408
        %v1595 = vpop.permute.xlu0 %1594
        %1598 = vset.pattern.permute.xlu0 0
        %1599 = vperm.xlu0 %1598, %v1409
        %v1600 = vpop.permute.xlu0 %1599
        %1603 = vset.pattern.permute.xlu0 0
        %1604 = vperm.xlu0 %1603, %v1410
        %v1605 = vpop.permute.xlu0 %1604
        %1608 = vset.pattern.permute.xlu0 0
        %1609 = vperm.xlu0 %1608, %v1411
        %v1610 = vpop.permute.xlu0 %1609
        %1613 = vset.pattern.permute.xlu0 0
        %1614 = vperm.xlu0 %1613, %v1412
        %v1615 = vpop.permute.xlu0 %1614
        %1618 = vset.pattern.permute.xlu0 0
        %1619 = vperm.xlu0 %1618, %v1413
        %v1620 = vpop.permute.xlu0 %1619
        %1623 = vset.pattern.permute.xlu0 0
        %1624 = vperm.xlu0 %1623, %v1414
        %v1625 = vpop.permute.xlu0 %1624
        %1628 = vset.pattern.permute.xlu0 0
        %1629 = vperm.xlu0 %1628, %v1415
        %v1630 = vpop.permute.xlu0 %1629
        %1633 = vset.pattern.permute.xlu0 0
        %1634 = vperm.xlu0 %1633, %v1416
        %v1635 = vpop.permute.xlu0 %1634
        %1638 = vset.pattern.permute.xlu0 0
        %1639 = vperm.xlu0 %1638, %v1417
        %v1640 = vpop.permute.xlu0 %1639
        %1643 = vset.pattern.permute.xlu0 0
        %1644 = vperm.xlu0 %1643, %v1418
        %v1645 = vpop.permute.xlu0 %1644
        %1648 = vset.pattern.permute.xlu0 0
        %1649 = vperm.xlu0 %1648, %v1419
        %v1650 = vpop.permute.xlu0 %1649
        %1653 = vset.pattern.permute.xlu0 0
        %1654 = vperm.xlu0 %1653, %v1420
        %v1655 = vpop.permute.xlu0 %1654
        %1658 = vset.pattern.permute.xlu0 0
        %1659 = vperm.xlu0 %1658, %v1421
        %v1660 = vpop.permute.xlu0 %1659
        %1663 = vset.pattern.permute.xlu0 0
        %1664 = vperm.xlu0 %1663, %v1422
        %v1665 = vpop.permute.xlu0 %1664
        %1668 = vset.pattern.permute.xlu0 0
        %1669 = vperm.xlu0 %1668, %v1423
        %v1670 = vpop.permute.xlu0 %1669
        %1673 = vset.pattern.permute.xlu0 0
        %1674 = vperm.xlu0 %1673, %v1424
        %v1675 = vpop.permute.xlu0 %1674
        %1678 = vset.pattern.permute.xlu0 0
        %1679 = vperm.xlu0 %1678, %v1425
        %v1680 = vpop.permute.xlu0 %1679
        %1683 = vset.pattern.permute.xlu0 0
        %1684 = vperm.xlu0 %1683, %v1426
        %v1685 = vpop.permute.xlu0 %1684
        %1688 = vset.pattern.permute.xlu0 0
        %1689 = vperm.xlu0 %1688, %v1427
        %v1690 = vpop.permute.xlu0 %1689
        %1693 = vset.pattern.permute.xlu0 0
        %1694 = vperm.xlu0 %1693, %v1428
        %v1695 = vpop.permute.xlu0 %1694
        %1698 = vset.pattern.permute.xlu0 0
        %1699 = vperm.xlu0 %1698, %v1429
        %v1700 = vpop.permute.xlu0 %1699
        %1703 = vset.pattern.permute.xlu0 0
        %1704 = vperm.xlu0 %1703, %v1430
        %v1705 = vpop.permute.xlu0 %1704
        %1708 = vset.pattern.permute.xlu0 0
        %1709 = vperm.xlu0 %1708, %v1431
        %v1710 = vpop.permute.xlu0 %1709
        %1713 = vset.pattern.permute.xlu0 0
        %1714 = vperm.xlu0 %1713, %v1432
        %v1715 = vpop.permute.xlu0 %1714
        %1718 = vset.pattern.permute.xlu0 0
        %1719 = vperm.xlu0 %1718, %v1433
        %v1720 = vpop.permute.xlu0 %1719
        %1723 = vset.pattern.permute.xlu0 0
        %1724 = vperm.xlu0 %1723, %v1434
        %v1725 = vpop.permute.xlu0 %1724
        %1728 = vset.pattern.permute.xlu0 0
        %1729 = vperm.xlu0 %1728, %v1435
        %v1730 = vpop.permute.xlu0 %1729
        %1733 = vset.pattern.permute.xlu0 0
        %1734 = vperm.xlu0 %1733, %v1436
        %v1735 = vpop.permute.xlu0 %1734
        %1738 = vset.pattern.permute.xlu0 0
        %1739 = vperm.xlu0 %1738, %v1437
        %v1740 = vpop.permute.xlu0 %1739
        %1743 = vset.pattern.permute.xlu0 0
        %1744 = vperm.xlu0 %1743, %v1438
        %v1745 = vpop.permute.xlu0 %1744
        %1748 = vset.pattern.permute.xlu0 0
        %1749 = vperm.xlu0 %1748, %v1439
        %v1750 = vpop.permute.xlu0 %1749
        %1753 = vset.pattern.permute.xlu0 0
        %1754 = vperm.xlu0 %1753, %v1440
        %v1755 = vpop.permute.xlu0 %1754
        %1758 = vset.pattern.permute.xlu0 0
        %1759 = vperm.xlu0 %1758, %v1441
        %v1760 = vpop.permute.xlu0 %1759
        %v1826 = vunpack.c.l.b16 %v1314
        %v1827 = vunpack.c.l.b16 %v1315
        %v1828 = vunpack.c.l.b16 %v1316
        %v1829 = vunpack.c.l.b16 %v1317
        %v1830 = vunpack.c.l.b16 %v1318
        %v1831 = vunpack.c.l.b16 %v1319
        %v1832 = vunpack.c.l.b16 %v1320
        %v1833 = vunpack.c.l.b16 %v1321
        %v1834 = vunpack.c.l.b16 %v1322
        %v1835 = vunpack.c.l.b16 %v1323
        %v1836 = vunpack.c.l.b16 %v1324
        %v1837 = vunpack.c.l.b16 %v1325
        %v1838 = vunpack.c.l.b16 %v1326
        %v1839 = vunpack.c.l.b16 %v1327
        %v1840 = vunpack.c.l.b16 %v1328
        %v1841 = vunpack.c.l.b16 %v1329
        %v1842 = vunpack.c.l.b16 %v1330
        %v1843 = vunpack.c.l.b16 %v1331
        %v1844 = vunpack.c.l.b16 %v1332
        %v1845 = vunpack.c.l.b16 %v1333
        %v1846 = vunpack.c.l.b16 %v1334
        %v1847 = vunpack.c.l.b16 %v1335
        %v1848 = vunpack.c.l.b16 %v1336
        %v1849 = vunpack.c.l.b16 %v1337
        %v1850 = vunpack.c.l.b16 %v1338
        %v1851 = vunpack.c.l.b16 %v1339
        %v1852 = vunpack.c.l.b16 %v1340
        %v1853 = vunpack.c.l.b16 %v1341
        %v1854 = vunpack.c.l.b16 %v1342
        %v1855 = vunpack.c.l.b16 %v1343
        %v1856 = vunpack.c.l.b16 %v1344
        %v1857 = vunpack.c.l.b16 %v1345
        %v1858 = vunpack.c.l.b16 %v1346
        %v1859 = vunpack.c.l.b16 %v1347
        %v1860 = vunpack.c.l.b16 %v1348
        %v1861 = vunpack.c.l.b16 %v1349
        %v1862 = vunpack.c.l.b16 %v1350
        %v1863 = vunpack.c.l.b16 %v1351
        %v1864 = vunpack.c.l.b16 %v1352
        %v1865 = vunpack.c.l.b16 %v1353
        %v1866 = vunpack.c.l.b16 %v1354
        %v1867 = vunpack.c.l.b16 %v1355
        %v1868 = vunpack.c.l.b16 %v1356
        %v1869 = vunpack.c.l.b16 %v1357
        %v1870 = vunpack.c.l.b16 %v1358
        %v1871 = vunpack.c.l.b16 %v1359
        %v1872 = vunpack.c.l.b16 %v1360
        %v1873 = vunpack.c.l.b16 %v1361
        %v1874 = vunpack.c.l.b16 %v1362
        %v1875 = vunpack.c.l.b16 %v1363
        %v1876 = vunpack.c.l.b16 %v1364
        %v1877 = vunpack.c.l.b16 %v1365
        %v1878 = vunpack.c.l.b16 %v1366
        %v1879 = vunpack.c.l.b16 %v1367
        %v1880 = vunpack.c.l.b16 %v1368
        %v1881 = vunpack.c.l.b16 %v1369
        %v1882 = vunpack.c.l.b16 %v1370
        %v1883 = vunpack.c.l.b16 %v1371
        %v1884 = vunpack.c.l.b16 %v1372
        %v1885 = vunpack.c.l.b16 %v1373
        %v1886 = vunpack.c.l.b16 %v1374
        %v1887 = vunpack.c.l.b16 %v1375
        %v1888 = vunpack.c.l.b16 %v1376
        %v1889 = vunpack.c.l.b16 %v1377
        %v1890 = vpack.c.b16 %v1827, %v1826
        %v1891 = vpack.c.b16 %v1829, %v1828
        %v1892 = vpack.c.b16 %v1831, %v1830
        %v1893 = vpack.c.b16 %v1833, %v1832
        %v1894 = vpack.c.b16 %v1835, %v1834
        %v1895 = vpack.c.b16 %v1837, %v1836
        %v1896 = vpack.c.b16 %v1839, %v1838
        %v1897 = vpack.c.b16 %v1841, %v1840
        %v1898 = vpack.c.b16 %v1843, %v1842
        %v1899 = vpack.c.b16 %v1845, %v1844
        %v1900 = vpack.c.b16 %v1847, %v1846
        %v1901 = vpack.c.b16 %v1849, %v1848
        %v1902 = vpack.c.b16 %v1851, %v1850
        %v1903 = vpack.c.b16 %v1853, %v1852
        %v1904 = vpack.c.b16 %v1855, %v1854
        %v1905 = vpack.c.b16 %v1857, %v1856
        %v1906 = vpack.c.b16 %v1859, %v1858
        %v1907 = vpack.c.b16 %v1861, %v1860
        %v1908 = vpack.c.b16 %v1863, %v1862
        %v1909 = vpack.c.b16 %v1865, %v1864
        %v1910 = vpack.c.b16 %v1867, %v1866
        %v1911 = vpack.c.b16 %v1869, %v1868
        %v1912 = vpack.c.b16 %v1871, %v1870
        %v1913 = vpack.c.b16 %v1873, %v1872
        %v1914 = vpack.c.b16 %v1875, %v1874
        %v1915 = vpack.c.b16 %v1877, %v1876
        %v1916 = vpack.c.b16 %v1879, %v1878
        %v1917 = vpack.c.b16 %v1881, %v1880
        %v1918 = vpack.c.b16 %v1883, %v1882
        %v1919 = vpack.c.b16 %v1885, %v1884
        %v1920 = vpack.c.b16 %v1887, %v1886
        %v1921 = vpack.c.b16 %v1889, %v1888
        %1954 = vmatpush.bf16.msra.mxu0 %v1312
        %1955 = vmatpush.bf16.msra.mxu0 %v1310
        %1956 = vmatpush.bf16.msra.mxu0 %v1308
        %1957 = vmatpush.bf16.msra.mxu0 %v1306
        %1958 = vmatpush.bf16.msra.mxu0 %v1304
        %1959 = vmatpush.bf16.msra.mxu0 %v1302
        %1960 = vmatpush.bf16.msra.mxu0 %v1300
        %1961 = vmatpush.bf16.msra.mxu0 %v1298
        %1962 = vmatmul.bf16.gmra.mxu0 %v1890
        %v1963 = vpop.f32.mrf.mxu0
        %v1964 = vadd.f32 %v1445, %v1963
        %v1965 = vpop.f32.mrf.mxu0
        %v1966 = vadd.f32 %v1450, %v1965
        %1967 = vmatmul.bf16.gmra.mxu0 %v1891
        %v1968 = vpop.f32.mrf.mxu0
        %v1969 = vadd.f32 %v1455, %v1968
        %v1970 = vpop.f32.mrf.mxu0
        %v1971 = vadd.f32 %v1460, %v1970
        %1972 = vmatmul.bf16.gmra.mxu0 %v1892
        %v1973 = vpop.f32.mrf.mxu0
        %v1974 = vadd.f32 %v1465, %v1973
        %v1975 = vpop.f32.mrf.mxu0
        %v1976 = vadd.f32 %v1470, %v1975
        %1977 = vmatmul.bf16.gmra.mxu0 %v1893
        %v1978 = vpop.f32.mrf.mxu0
        %v1979 = vadd.f32 %v1475, %v1978
        %v1980 = vpop.f32.mrf.mxu0
        %v1981 = vadd.f32 %v1480, %v1980
        %1982 = vmatmul.bf16.gmra.mxu0 %v1894
        %v1983 = vpop.f32.mrf.mxu0
        %v1984 = vadd.f32 %v1485, %v1983
        %v1985 = vpop.f32.mrf.mxu0
        %v1986 = vadd.f32 %v1490, %v1985
        %1987 = vmatmul.bf16.gmra.mxu0 %v1895
        %v1988 = vpop.f32.mrf.mxu0
        %v1989 = vadd.f32 %v1495, %v1988
        %v1990 = vpop.f32.mrf.mxu0
        %v1991 = vadd.f32 %v1500, %v1990
        %1992 = vmatmul.bf16.gmra.mxu0 %v1896
        %v1993 = vpop.f32.mrf.mxu0
        %v1994 = vadd.f32 %v1505, %v1993
        %v1995 = vpop.f32.mrf.mxu0
        %v1996 = vadd.f32 %v1510, %v1995
        %1997 = vmatmul.bf16.gmra.mxu0 %v1897
        %v1998 = vpop.f32.mrf.mxu0
        %v1999 = vadd.f32 %v1515, %v1998
        %v2000 = vpop.f32.mrf.mxu0
        %v2001 = vadd.f32 %v1520, %v2000
        %2002 = vmatmul.bf16.gmra.mxu0 %v1898
        %v2003 = vpop.f32.mrf.mxu0
        %v2004 = vadd.f32 %v1525, %v2003
        %v2005 = vpop.f32.mrf.mxu0
        %v2006 = vadd.f32 %v1530, %v2005
        %2007 = vmatmul.bf16.gmra.mxu0 %v1899
        %v2008 = vpop.f32.mrf.mxu0
        %v2009 = vadd.f32 %v1535, %v2008
        %v2010 = vpop.f32.mrf.mxu0
        %v2011 = vadd.f32 %v1540, %v2010
        %2012 = vmatmul.bf16.gmra.mxu0 %v1900
        %v2013 = vpop.f32.mrf.mxu0
        %v2014 = vadd.f32 %v1545, %v2013
        %v2015 = vpop.f32.mrf.mxu0
        %v2016 = vadd.f32 %v1550, %v2015
        %2017 = vmatmul.bf16.gmra.mxu0 %v1901
        %v2018 = vpop.f32.mrf.mxu0
        %v2019 = vadd.f32 %v1555, %v2018
        %v2020 = vpop.f32.mrf.mxu0
        %v2021 = vadd.f32 %v1560, %v2020
        %2022 = vmatmul.bf16.gmra.mxu0 %v1902
        %v2023 = vpop.f32.mrf.mxu0
        %v2024 = vadd.f32 %v1565, %v2023
        %v2025 = vpop.f32.mrf.mxu0
        %v2026 = vadd.f32 %v1570, %v2025
        %2027 = vmatmul.bf16.gmra.mxu0 %v1903
        %v2028 = vpop.f32.mrf.mxu0
        %v2029 = vadd.f32 %v1575, %v2028
        %v2030 = vpop.f32.mrf.mxu0
        %v2031 = vadd.f32 %v1580, %v2030
        %2032 = vmatmul.bf16.gmra.mxu0 %v1904
        %v2033 = vpop.f32.mrf.mxu0
        %v2034 = vadd.f32 %v1585, %v2033
        %v2035 = vpop.f32.mrf.mxu0
        %v2036 = vadd.f32 %v1590, %v2035
        %2037 = vmatmul.bf16.gmra.mxu0 %v1905
        %v2038 = vpop.f32.mrf.mxu0
        %v2039 = vadd.f32 %v1595, %v2038
        %v2040 = vpop.f32.mrf.mxu0
        %v2041 = vadd.f32 %v1600, %v2040
        %2042 = vmatmul.bf16.gmra.mxu0 %v1906
        %v2043 = vpop.f32.mrf.mxu0
        %v2044 = vadd.f32 %v1605, %v2043
        %v2045 = vpop.f32.mrf.mxu0
        %v2046 = vadd.f32 %v1610, %v2045
        %2047 = vmatmul.bf16.gmra.mxu0 %v1907
        %v2048 = vpop.f32.mrf.mxu0
        %v2049 = vadd.f32 %v1615, %v2048
        %v2050 = vpop.f32.mrf.mxu0
        %v2051 = vadd.f32 %v1620, %v2050
        %2052 = vmatmul.bf16.gmra.mxu0 %v1908
        %v2053 = vpop.f32.mrf.mxu0
        %v2054 = vadd.f32 %v1625, %v2053
        %v2055 = vpop.f32.mrf.mxu0
        %v2056 = vadd.f32 %v1630, %v2055
        %2057 = vmatmul.bf16.gmra.mxu0 %v1909
        %v2058 = vpop.f32.mrf.mxu0
        %v2059 = vadd.f32 %v1635, %v2058
        %v2060 = vpop.f32.mrf.mxu0
        %v2061 = vadd.f32 %v1640, %v2060
        %2062 = vmatmul.bf16.gmra.mxu0 %v1910
        %v2063 = vpop.f32.mrf.mxu0
        %v2064 = vadd.f32 %v1645, %v2063
        %v2065 = vpop.f32.mrf.mxu0
        %v2066 = vadd.f32 %v1650, %v2065
        %2067 = vmatmul.bf16.gmra.mxu0 %v1911
        %v2068 = vpop.f32.mrf.mxu0
        %v2069 = vadd.f32 %v1655, %v2068
        %v2070 = vpop.f32.mrf.mxu0
        %v2071 = vadd.f32 %v1660, %v2070
        %2072 = vmatmul.bf16.gmra.mxu0 %v1912
        %v2073 = vpop.f32.mrf.mxu0
        %v2074 = vadd.f32 %v1665, %v2073
        %v2075 = vpop.f32.mrf.mxu0
        %v2076 = vadd.f32 %v1670, %v2075
        %2077 = vmatmul.bf16.gmra.mxu0 %v1913
        %v2078 = vpop.f32.mrf.mxu0
        %v2079 = vadd.f32 %v1675, %v2078
        %v2080 = vpop.f32.mrf.mxu0
        %v2081 = vadd.f32 %v1680, %v2080
        %2082 = vmatmul.bf16.gmra.mxu0 %v1914
        %v2083 = vpop.f32.mrf.mxu0
        %v2084 = vadd.f32 %v1685, %v2083
        %v2085 = vpop.f32.mrf.mxu0
        %v2086 = vadd.f32 %v1690, %v2085
        %2087 = vmatmul.bf16.gmra.mxu0 %v1915
        %v2088 = vpop.f32.mrf.mxu0
        %v2089 = vadd.f32 %v1695, %v2088
        %v2090 = vpop.f32.mrf.mxu0
        %v2091 = vadd.f32 %v1700, %v2090
        %2092 = vmatmul.bf16.gmra.mxu0 %v1916
        %v2093 = vpop.f32.mrf.mxu0
        %v2094 = vadd.f32 %v1705, %v2093
        %v2095 = vpop.f32.mrf.mxu0
        %v2096 = vadd.f32 %v1710, %v2095
        %2097 = vmatmul.bf16.gmra.mxu0 %v1917
        %v2098 = vpop.f32.mrf.mxu0
        %v2099 = vadd.f32 %v1715, %v2098
        %v2100 = vpop.f32.mrf.mxu0
        %v2101 = vadd.f32 %v1720, %v2100
        %2102 = vmatmul.bf16.gmra.mxu0 %v1918
        %v2103 = vpop.f32.mrf.mxu0
        %v2104 = vadd.f32 %v1725, %v2103
        %v2105 = vpop.f32.mrf.mxu0
        %v2106 = vadd.f32 %v1730, %v2105
        %2107 = vmatmul.bf16.gmra.mxu0 %v1919
        %v2108 = vpop.f32.mrf.mxu0
        %v2109 = vadd.f32 %v1735, %v2108
        %v2110 = vpop.f32.mrf.mxu0
        %v2111 = vadd.f32 %v1740, %v2110
        %2112 = vmatmul.bf16.gmra.mxu0 %v1920
        %v2113 = vpop.f32.mrf.mxu0
        %v2114 = vadd.f32 %v1745, %v2113
        %v2115 = vpop.f32.mrf.mxu0
        %v2116 = vadd.f32 %v1750, %v2115
        %2117 = vmatmul.bf16.gmra.mxu0 %v1921
        %v2118 = vpop.f32.mrf.mxu0
        %v2119 = vadd.f32 %v1755, %v2118
        %v2120 = vpop.f32.mrf.mxu0
        %v2121 = vadd.f32 %v1760, %v2120
        %2122 = vdwg.mxu0
        %2123 = vmatpush.bf16.msra.mxu0 %v1313
        %2124 = vmatpush.bf16.msra.mxu0 %v1311
        %2125 = vmatpush.bf16.msra.mxu0 %v1309
        %2126 = vmatpush.bf16.msra.mxu0 %v1307
        %2127 = vmatpush.bf16.msra.mxu0 %v1305
        %2128 = vmatpush.bf16.msra.mxu0 %v1303
        %2129 = vmatpush.bf16.msra.mxu0 %v1301
        %2130 = vmatpush.bf16.msra.mxu0 %v1299
        %2131 = vmatmul.bf16.gmra.mxu0 %v1890
        %v2132 = vpop.f32.mrf.mxu0
        %v2133 = vadd.f32 %v1445, %v2132
        %v2134 = vpop.f32.mrf.mxu0
        %v2135 = vadd.f32 %v1450, %v2134
        %2136 = vmatmul.bf16.gmra.mxu0 %v1891
        %v2137 = vpop.f32.mrf.mxu0
        %v2138 = vadd.f32 %v1455, %v2137
        %v2139 = vpop.f32.mrf.mxu0
        %v2140 = vadd.f32 %v1460, %v2139
        %2141 = vmatmul.bf16.gmra.mxu0 %v1892
        %v2142 = vpop.f32.mrf.mxu0
        %v2143 = vadd.f32 %v1465, %v2142
        %v2144 = vpop.f32.mrf.mxu0
        %v2145 = vadd.f32 %v1470, %v2144
        %2146 = vmatmul.bf16.gmra.mxu0 %v1893
        %v2147 = vpop.f32.mrf.mxu0
        %v2148 = vadd.f32 %v1475, %v2147
        %v2149 = vpop.f32.mrf.mxu0
        %v2150 = vadd.f32 %v1480, %v2149
        %2151 = vmatmul.bf16.gmra.mxu0 %v1894
        %v2152 = vpop.f32.mrf.mxu0
        %v2153 = vadd.f32 %v1485, %v2152
        %v2154 = vpop.f32.mrf.mxu0
        %v2155 = vadd.f32 %v1490, %v2154
        %2156 = vmatmul.bf16.gmra.mxu0 %v1895
        %v2157 = vpop.f32.mrf.mxu0
        %v2158 = vadd.f32 %v1495, %v2157
        %v2159 = vpop.f32.mrf.mxu0
        %v2160 = vadd.f32 %v1500, %v2159
        %2161 = vmatmul.bf16.gmra.mxu0 %v1896
        %v2162 = vpop.f32.mrf.mxu0
        %v2163 = vadd.f32 %v1505, %v2162
        %v2164 = vpop.f32.mrf.mxu0
        %v2165 = vadd.f32 %v1510, %v2164
        %2166 = vmatmul.bf16.gmra.mxu0 %v1897
        %v2167 = vpop.f32.mrf.mxu0
        %v2168 = vadd.f32 %v1515, %v2167
        %v2169 = vpop.f32.mrf.mxu0
        %v2170 = vadd.f32 %v1520, %v2169
        %2171 = vmatmul.bf16.gmra.mxu0 %v1898
        %v2172 = vpop.f32.mrf.mxu0
        %v2173 = vadd.f32 %v1525, %v2172
        %v2174 = vpop.f32.mrf.mxu0
        %v2175 = vadd.f32 %v1530, %v2174
        %2176 = vmatmul.bf16.gmra.mxu0 %v1899
        %v2177 = vpop.f32.mrf.mxu0
        %v2178 = vadd.f32 %v1535, %v2177
        %v2179 = vpop.f32.mrf.mxu0
        %v2180 = vadd.f32 %v1540, %v2179
        %2181 = vmatmul.bf16.gmra.mxu0 %v1900
        %v2182 = vpop.f32.mrf.mxu0
        %v2183 = vadd.f32 %v1545, %v2182
        %v2184 = vpop.f32.mrf.mxu0
        %v2185 = vadd.f32 %v1550, %v2184
        %2186 = vmatmul.bf16.gmra.mxu0 %v1901
        %v2187 = vpop.f32.mrf.mxu0
        %v2188 = vadd.f32 %v1555, %v2187
        %v2189 = vpop.f32.mrf.mxu0
        %v2190 = vadd.f32 %v1560, %v2189
        %2191 = vmatmul.bf16.gmra.mxu0 %v1902
        %v2192 = vpop.f32.mrf.mxu0
        %v2193 = vadd.f32 %v1565, %v2192
        %v2194 = vpop.f32.mrf.mxu0
        %v2195 = vadd.f32 %v1570, %v2194
        %2196 = vmatmul.bf16.gmra.mxu0 %v1903
        %v2197 = vpop.f32.mrf.mxu0
        %v2198 = vadd.f32 %v1575, %v2197
        %v2199 = vpop.f32.mrf.mxu0
        %v2200 = vadd.f32 %v1580, %v2199
        %2201 = vmatmul.bf16.gmra.mxu0 %v1904
        %v2202 = vpop.f32.mrf.mxu0
        %v2203 = vadd.f32 %v1585, %v2202
        %v2204 = vpop.f32.mrf.mxu0
        %v2205 = vadd.f32 %v1590, %v2204
        %2206 = vmatmul.bf16.gmra.mxu0 %v1905
        %v2207 = vpop.f32.mrf.mxu0
        %v2208 = vadd.f32 %v1595, %v2207
        %v2209 = vpop.f32.mrf.mxu0
        %v2210 = vadd.f32 %v1600, %v2209
        %2211 = vmatmul.bf16.gmra.mxu0 %v1906
        %v2212 = vpop.f32.mrf.mxu0
        %v2213 = vadd.f32 %v1605, %v2212
        %v2214 = vpop.f32.mrf.mxu0
        %v2215 = vadd.f32 %v1610, %v2214
        %2216 = vmatmul.bf16.gmra.mxu0 %v1907
        %v2217 = vpop.f32.mrf.mxu0
        %v2218 = vadd.f32 %v1615, %v2217
        %v2219 = vpop.f32.mrf.mxu0
        %v2220 = vadd.f32 %v1620, %v2219
        %2221 = vmatmul.bf16.gmra.mxu0 %v1908
        %v2222 = vpop.f32.mrf.mxu0
        %v2223 = vadd.f32 %v1625, %v2222
        %v2224 = vpop.f32.mrf.mxu0
        %v2225 = vadd.f32 %v1630, %v2224
        %2226 = vmatmul.bf16.gmra.mxu0 %v1909
        %v2227 = vpop.f32.mrf.mxu0
        %v2228 = vadd.f32 %v1635, %v2227
        %v2229 = vpop.f32.mrf.mxu0
        %v2230 = vadd.f32 %v1640, %v2229
        %2231 = vmatmul.bf16.gmra.mxu0 %v1910
        %v2232 = vpop.f32.mrf.mxu0
        %v2233 = vadd.f32 %v1645, %v2232
        %v2234 = vpop.f32.mrf.mxu0
        %v2235 = vadd.f32 %v1650, %v2234
        %2236 = vmatmul.bf16.gmra.mxu0 %v1911
        %v2237 = vpop.f32.mrf.mxu0
        %v2238 = vadd.f32 %v1655, %v2237
        %v2239 = vpop.f32.mrf.mxu0
        %v2240 = vadd.f32 %v1660, %v2239
        %2241 = vmatmul.bf16.gmra.mxu0 %v1912
        %v2242 = vpop.f32.mrf.mxu0
        %v2243 = vadd.f32 %v1665, %v2242
        %v2244 = vpop.f32.mrf.mxu0
        %v2245 = vadd.f32 %v1670, %v2244
        %2246 = vmatmul.bf16.gmra.mxu0 %v1913
        %v2247 = vpop.f32.mrf.mxu0
        %v2248 = vadd.f32 %v1675, %v2247
        %v2249 = vpop.f32.mrf.mxu0
        %v2250 = vadd.f32 %v1680, %v2249
        %2251 = vmatmul.bf16.gmra.mxu0 %v1914
        %v2252 = vpop.f32.mrf.mxu0
        %v2253 = vadd.f32 %v1685, %v2252
        %v2254 = vpop.f32.mrf.mxu0
        %v2255 = vadd.f32 %v1690, %v2254
        %2256 = vmatmul.bf16.gmra.mxu0 %v1915
        %v2257 = vpop.f32.mrf.mxu0
        %v2258 = vadd.f32 %v1695, %v2257
        %v2259 = vpop.f32.mrf.mxu0
        %v2260 = vadd.f32 %v1700, %v2259
        %2261 = vmatmul.bf16.gmra.mxu0 %v1916
        %v2262 = vpop.f32.mrf.mxu0
        %v2263 = vadd.f32 %v1705, %v2262
        %v2264 = vpop.f32.mrf.mxu0
        %v2265 = vadd.f32 %v1710, %v2264
        %2266 = vmatmul.bf16.gmra.mxu0 %v1917
        %v2267 = vpop.f32.mrf.mxu0
        %v2268 = vadd.f32 %v1715, %v2267
        %v2269 = vpop.f32.mrf.mxu0
        %v2270 = vadd.f32 %v1720, %v2269
        %2271 = vmatmul.bf16.gmra.mxu0 %v1918
        %v2272 = vpop.f32.mrf.mxu0
        %v2273 = vadd.f32 %v1725, %v2272
        %v2274 = vpop.f32.mrf.mxu0
        %v2275 = vadd.f32 %v1730, %v2274
        %2276 = vmatmul.bf16.gmra.mxu0 %v1919
        %v2277 = vpop.f32.mrf.mxu0
        %v2278 = vadd.f32 %v1735, %v2277
        %v2279 = vpop.f32.mrf.mxu0
        %v2280 = vadd.f32 %v1740, %v2279
        %2281 = vmatmul.bf16.gmra.mxu0 %v1920
        %v2282 = vpop.f32.mrf.mxu0
        %v2283 = vadd.f32 %v1745, %v2282
        %v2284 = vpop.f32.mrf.mxu0
        %v2285 = vadd.f32 %v1750, %v2284
        %2286 = vmatmul.bf16.gmra.mxu0 %v1921
        %v2287 = vpop.f32.mrf.mxu0
        %v2288 = vadd.f32 %v1755, %v2287
        %v2289 = vpop.f32.mrf.mxu0
        %v2290 = vadd.f32 %v1760, %v2289
        %2291 = vdwg.mxu0
        %v2292 = vld [vmem:[%s1223] sm:$0xff]
        %v2293 = vld [vmem:[%s1223 + $0x8] sm:$0xff]
        %v2294 = vld [vmem:[%s1223 + $0x10] sm:$0xff]
        %v2295 = vld [vmem:[%s1223 + $0x18] sm:$0xff]
        %v2296 = vld [vmem:[%s1223 + $0x20] sm:$0xff]
        %v2297 = vld [vmem:[%s1223 + $0x28] sm:$0xff]
        %v2298 = vld [vmem:[%s1223 + $0x30] sm:$0xff]
        %v2299 = vld [vmem:[%s1223 + $0x38] sm:$0xff]
        %v2300 = vld [vmem:[%s1223 + $0x40] sm:$0xff]
        %v2301 = vld [vmem:[%s1223 + $0x48] sm:$0xff]
        %v2302 = vld [vmem:[%s1223 + $0x50] sm:$0xff]
        %v2303 = vld [vmem:[%s1223 + $0x58] sm:$0xff]
        %v2304 = vld [vmem:[%s1223 + $0x60] sm:$0xff]
        %v2305 = vld [vmem:[%s1223 + $0x68] sm:$0xff]
        %v2306 = vld [vmem:[%s1223 + $0x70] sm:$0xff]
        %v2307 = vld [vmem:[%s1223 + $0x78] sm:$0xff]
        %v2308 = vld [vmem:[%s1223 + $0x80] sm:$0xff]
        %v2309 = vld [vmem:[%s1223 + $0x88] sm:$0xff]
        %v2310 = vld [vmem:[%s1223 + $0x90] sm:$0xff]
        %v2311 = vld [vmem:[%s1223 + $0x98] sm:$0xff]
        %v2312 = vld [vmem:[%s1223 + $0xa0] sm:$0xff]
        %v2313 = vld [vmem:[%s1223 + $0xa8] sm:$0xff]
        %v2314 = vld [vmem:[%s1223 + $0xb0] sm:$0xff]
        %v2315 = vld [vmem:[%s1223 + $0xb8] sm:$0xff]
        %v2316 = vld [vmem:[%s1223 + $0xc0] sm:$0xff]
        %v2317 = vld [vmem:[%s1223 + $0xc8] sm:$0xff]
        %v2318 = vld [vmem:[%s1223 + $0xd0] sm:$0xff]
        %v2319 = vld [vmem:[%s1223 + $0xd8] sm:$0xff]
        %v2320 = vld [vmem:[%s1223 + $0xe0] sm:$0xff]
        %v2321 = vld [vmem:[%s1223 + $0xe8] sm:$0xff]
        %v2322 = vld [vmem:[%s1223 + $0xf0] sm:$0xff]
        %v2323 = vld [vmem:[%s1223 + $0xf8] sm:$0xff]
        %v2324 = vld [vmem:[%s1223 + $0x100] sm:$0xff]
        %v2325 = vld [vmem:[%s1223 + $0x108] sm:$0xff]
        %v2326 = vld [vmem:[%s1223 + $0x110] sm:$0xff]
        %v2327 = vld [vmem:[%s1223 + $0x118] sm:$0xff]
        %v2328 = vld [vmem:[%s1223 + $0x120] sm:$0xff]
        %v2329 = vld [vmem:[%s1223 + $0x128] sm:$0xff]
        %v2330 = vld [vmem:[%s1223 + $0x130] sm:$0xff]
        %v2331 = vld [vmem:[%s1223 + $0x138] sm:$0xff]
        %v2332 = vld [vmem:[%s1223 + $0x140] sm:$0xff]
        %v2333 = vld [vmem:[%s1223 + $0x148] sm:$0xff]
        %v2334 = vld [vmem:[%s1223 + $0x150] sm:$0xff]
        %v2335 = vld [vmem:[%s1223 + $0x158] sm:$0xff]
        %v2336 = vld [vmem:[%s1223 + $0x160] sm:$0xff]
        %v2337 = vld [vmem:[%s1223 + $0x168] sm:$0xff]
        %v2338 = vld [vmem:[%s1223 + $0x170] sm:$0xff]
        %v2339 = vld [vmem:[%s1223 + $0x178] sm:$0xff]
        %v2340 = vld [vmem:[%s1223 + $0x180] sm:$0xff]
        %v2341 = vld [vmem:[%s1223 + $0x188] sm:$0xff]
        %v2342 = vld [vmem:[%s1223 + $0x190] sm:$0xff]
        %v2343 = vld [vmem:[%s1223 + $0x198] sm:$0xff]
        %v2344 = vld [vmem:[%s1223 + $0x1a0] sm:$0xff]
        %v2345 = vld [vmem:[%s1223 + $0x1a8] sm:$0xff]
        %v2346 = vld [vmem:[%s1223 + $0x1b0] sm:$0xff]
        %v2347 = vld [vmem:[%s1223 + $0x1b8] sm:$0xff]
        %v2348 = vld [vmem:[%s1223 + $0x1c0] sm:$0xff]
        %v2349 = vld [vmem:[%s1223 + $0x1c8] sm:$0xff]
        %v2350 = vld [vmem:[%s1223 + $0x1d0] sm:$0xff]
        %v2351 = vld [vmem:[%s1223 + $0x1d8] sm:$0xff]
        %v2352 = vld [vmem:[%s1223 + $0x1e0] sm:$0xff]
        %v2353 = vld [vmem:[%s1223 + $0x1e8] sm:$0xff]
        %v2354 = vld [vmem:[%s1223 + $0x1f0] sm:$0xff]
        %v2355 = vld [vmem:[%s1223 + $0x1f8] sm:$0xff]
        %v2356 = vld [vmem:[%s1223 + $0x200] sm:$0xff]
        %v2357 = vld [vmem:[%s1223 + $0x208] sm:$0xff]
        %v2358 = vld [vmem:[%s1223 + $0x210] sm:$0xff]
        %v2359 = vld [vmem:[%s1223 + $0x218] sm:$0xff]
        %v2360 = vld [vmem:[%s1223 + $0x220] sm:$0xff]
        %v2361 = vld [vmem:[%s1223 + $0x228] sm:$0xff]
        %v2362 = vld [vmem:[%s1223 + $0x230] sm:$0xff]
        %v2363 = vld [vmem:[%s1223 + $0x238] sm:$0xff]
        %v2364 = vld [vmem:[%s1223 + $0x240] sm:$0xff]
        %v2365 = vld [vmem:[%s1223 + $0x248] sm:$0xff]
        %v2366 = vld [vmem:[%s1223 + $0x250] sm:$0xff]
        %v2367 = vld [vmem:[%s1223 + $0x258] sm:$0xff]
        %v2368 = vld [vmem:[%s1223 + $0x260] sm:$0xff]
        %v2369 = vld [vmem:[%s1223 + $0x268] sm:$0xff]
        %v2370 = vld [vmem:[%s1223 + $0x270] sm:$0xff]
        %v2371 = vld [vmem:[%s1223 + $0x278] sm:$0xff]
        %v2372 = vld [vmem:[%s1223 + $0x280] sm:$0xff]
        %v2373 = vld [vmem:[%s1223 + $0x288] sm:$0xff]
        %v2374 = vld [vmem:[%s1223 + $0x290] sm:$0xff]
        %v2375 = vld [vmem:[%s1223 + $0x298] sm:$0xff]
        %v2376 = vld [vmem:[%s1223 + $0x2a0] sm:$0xff]
        %v2377 = vld [vmem:[%s1223 + $0x2a8] sm:$0xff]
        %v2378 = vld [vmem:[%s1223 + $0x2b0] sm:$0xff]
        %v2379 = vld [vmem:[%s1223 + $0x2b8] sm:$0xff]
        %v2380 = vld [vmem:[%s1223 + $0x2c0] sm:$0xff]
        %v2381 = vld [vmem:[%s1223 + $0x2c8] sm:$0xff]
        %v2382 = vld [vmem:[%s1223 + $0x2d0] sm:$0xff]
        %v2383 = vld [vmem:[%s1223 + $0x2d8] sm:$0xff]
        %v2384 = vld [vmem:[%s1223 + $0x2e0] sm:$0xff]
        %v2385 = vld [vmem:[%s1223 + $0x2e8] sm:$0xff]
        %v2386 = vld [vmem:[%s1223 + $0x2f0] sm:$0xff]
        %v2387 = vld [vmem:[%s1223 + $0x2f8] sm:$0xff]
        %v2388 = vld [vmem:[%s1223 + $0x300] sm:$0xff]
        %v2389 = vld [vmem:[%s1223 + $0x308] sm:$0xff]
        %v2390 = vld [vmem:[%s1223 + $0x310] sm:$0xff]
        %v2391 = vld [vmem:[%s1223 + $0x318] sm:$0xff]
        %v2392 = vld [vmem:[%s1223 + $0x320] sm:$0xff]
        %v2393 = vld [vmem:[%s1223 + $0x328] sm:$0xff]
        %v2394 = vld [vmem:[%s1223 + $0x330] sm:$0xff]
        %v2395 = vld [vmem:[%s1223 + $0x338] sm:$0xff]
        %v2396 = vld [vmem:[%s1223 + $0x340] sm:$0xff]
        %v2397 = vld [vmem:[%s1223 + $0x348] sm:$0xff]
        %v2398 = vld [vmem:[%s1223 + $0x350] sm:$0xff]
        %v2399 = vld [vmem:[%s1223 + $0x358] sm:$0xff]
        %v2400 = vld [vmem:[%s1223 + $0x360] sm:$0xff]
        %v2401 = vld [vmem:[%s1223 + $0x368] sm:$0xff]
        %v2402 = vld [vmem:[%s1223 + $0x370] sm:$0xff]
        %v2403 = vld [vmem:[%s1223 + $0x378] sm:$0xff]
        %v2404 = vld [vmem:[%s1223 + $0x380] sm:$0xff]
        %v2405 = vld [vmem:[%s1223 + $0x388] sm:$0xff]
        %v2406 = vld [vmem:[%s1223 + $0x390] sm:$0xff]
        %v2407 = vld [vmem:[%s1223 + $0x398] sm:$0xff]
        %v2408 = vld [vmem:[%s1223 + $0x3a0] sm:$0xff]
        %v2409 = vld [vmem:[%s1223 + $0x3a8] sm:$0xff]
        %v2410 = vld [vmem:[%s1223 + $0x3b0] sm:$0xff]
        %v2411 = vld [vmem:[%s1223 + $0x3b8] sm:$0xff]
        %v2412 = vld [vmem:[%s1223 + $0x3c0] sm:$0xff]
        %v2413 = vld [vmem:[%s1223 + $0x3c8] sm:$0xff]
        %v2414 = vld [vmem:[%s1223 + $0x3d0] sm:$0xff]
        %v2415 = vld [vmem:[%s1223 + $0x3d8] sm:$0xff]
        %v2416 = vld [vmem:[%s1223 + $0x3e0] sm:$0xff]
        %v2417 = vld [vmem:[%s1223 + $0x3e8] sm:$0xff]
        %v2418 = vld [vmem:[%s1223 + $0x3f0] sm:$0xff]
        %v2419 = vld [vmem:[%s1223 + $0x3f8] sm:$0xff]
        %v2420 = vadd.f32 %v1964, %v2292
        %v2421 = vadd.f32 %v2133, %v2293
        %v2422 = vadd.f32 %v1966, %v2294
        %v2423 = vadd.f32 %v2135, %v2295
        %v2424 = vadd.f32 %v1969, %v2296
        %v2425 = vadd.f32 %v2138, %v2297
        %v2426 = vadd.f32 %v1971, %v2298
        %v2427 = vadd.f32 %v2140, %v2299
        %v2428 = vadd.f32 %v1974, %v2300
        %v2429 = vadd.f32 %v2143, %v2301
        %v2430 = vadd.f32 %v1976, %v2302
        %v2431 = vadd.f32 %v2145, %v2303
        %v2432 = vadd.f32 %v1979, %v2304
        %v2433 = vadd.f32 %v2148, %v2305
        %v2434 = vadd.f32 %v1981, %v2306
        %v2435 = vadd.f32 %v2150, %v2307
        %v2436 = vadd.f32 %v1984, %v2308
        %v2437 = vadd.f32 %v2153, %v2309
        %v2438 = vadd.f32 %v1986, %v2310
        %v2439 = vadd.f32 %v2155, %v2311
        %v2440 = vadd.f32 %v1989, %v2312
        %v2441 = vadd.f32 %v2158, %v2313
        %v2442 = vadd.f32 %v1991, %v2314
        %v2443 = vadd.f32 %v2160, %v2315
        %v2444 = vadd.f32 %v1994, %v2316
        %v2445 = vadd.f32 %v2163, %v2317
        %v2446 = vadd.f32 %v1996, %v2318
        %v2447 = vadd.f32 %v2165, %v2319
        %v2448 = vadd.f32 %v1999, %v2320
        %v2449 = vadd.f32 %v2168, %v2321
        %v2450 = vadd.f32 %v2001, %v2322
        %v2451 = vadd.f32 %v2170, %v2323
        %v2452 = vadd.f32 %v2004, %v2324
        %v2453 = vadd.f32 %v2173, %v2325
        %v2454 = vadd.f32 %v2006, %v2326
        %v2455 = vadd.f32 %v2175, %v2327
        %v2456 = vadd.f32 %v2009, %v2328
        %v2457 = vadd.f32 %v2178, %v2329
        %v2458 = vadd.f32 %v2011, %v2330
        %v2459 = vadd.f32 %v2180, %v2331
        %v2460 = vadd.f32 %v2014, %v2332
        %v2461 = vadd.f32 %v2183, %v2333
        %v2462 = vadd.f32 %v2016, %v2334
        %v2463 = vadd.f32 %v2185, %v2335
        %v2464 = vadd.f32 %v2019, %v2336
        %v2465 = vadd.f32 %v2188, %v2337
        %v2466 = vadd.f32 %v2021, %v2338
        %v2467 = vadd.f32 %v2190, %v2339
        %v2468 = vadd.f32 %v2024, %v2340
        %v2469 = vadd.f32 %v2193, %v2341
        %v2470 = vadd.f32 %v2026, %v2342
        %v2471 = vadd.f32 %v2195, %v2343
        %v2472 = vadd.f32 %v2029, %v2344
        %v2473 = vadd.f32 %v2198, %v2345
        %v2474 = vadd.f32 %v2031, %v2346
        %v2475 = vadd.f32 %v2200, %v2347
        %v2476 = vadd.f32 %v2034, %v2348
        %v2477 = vadd.f32 %v2203, %v2349
        %v2478 = vadd.f32 %v2036, %v2350
        %v2479 = vadd.f32 %v2205, %v2351
        %v2480 = vadd.f32 %v2039, %v2352
        %v2481 = vadd.f32 %v2208, %v2353
        %v2482 = vadd.f32 %v2041, %v2354
        %v2483 = vadd.f32 %v2210, %v2355
        %v2484 = vadd.f32 %v2044, %v2356
        %v2485 = vadd.f32 %v2213, %v2357
        %v2486 = vadd.f32 %v2046, %v2358
        %v2487 = vadd.f32 %v2215, %v2359
        %v2488 = vadd.f32 %v2049, %v2360
        %v2489 = vadd.f32 %v2218, %v2361
        %v2490 = vadd.f32 %v2051, %v2362
        %v2491 = vadd.f32 %v2220, %v2363
        %v2492 = vadd.f32 %v2054, %v2364
        %v2493 = vadd.f32 %v2223, %v2365
        %v2494 = vadd.f32 %v2056, %v2366
        %v2495 = vadd.f32 %v2225, %v2367
        %v2496 = vadd.f32 %v2059, %v2368
        %v2497 = vadd.f32 %v2228, %v2369
        %v2498 = vadd.f32 %v2061, %v2370
        %v2499 = vadd.f32 %v2230, %v2371
        %v2500 = vadd.f32 %v2064, %v2372
        %v2501 = vadd.f32 %v2233, %v2373
        %v2502 = vadd.f32 %v2066, %v2374
        %v2503 = vadd.f32 %v2235, %v2375
        %v2504 = vadd.f32 %v2069, %v2376
        %v2505 = vadd.f32 %v2238, %v2377
        %v2506 = vadd.f32 %v2071, %v2378
        %v2507 = vadd.f32 %v2240, %v2379
        %v2508 = vadd.f32 %v2074, %v2380
        %v2509 = vadd.f32 %v2243, %v2381
        %v2510 = vadd.f32 %v2076, %v2382
        %v2511 = vadd.f32 %v2245, %v2383
        %v2512 = vadd.f32 %v2079, %v2384
        %v2513 = vadd.f32 %v2248, %v2385
        %v2514 = vadd.f32 %v2081, %v2386
        %v2515 = vadd.f32 %v2250, %v2387
        %v2516 = vadd.f32 %v2084, %v2388
        %v2517 = vadd.f32 %v2253, %v2389
        %v2518 = vadd.f32 %v2086, %v2390
        %v2519 = vadd.f32 %v2255, %v2391
        %v2520 = vadd.f32 %v2089, %v2392
        %v2521 = vadd.f32 %v2258, %v2393
        %v2522 = vadd.f32 %v2091, %v2394
        %v2523 = vadd.f32 %v2260, %v2395
        %v2524 = vadd.f32 %v2094, %v2396
        %v2525 = vadd.f32 %v2263, %v2397
        %v2526 = vadd.f32 %v2096, %v2398
        %v2527 = vadd.f32 %v2265, %v2399
        %v2528 = vadd.f32 %v2099, %v2400
        %v2529 = vadd.f32 %v2268, %v2401
        %v2530 = vadd.f32 %v2101, %v2402
        %v2531 = vadd.f32 %v2270, %v2403
        %v2532 = vadd.f32 %v2104, %v2404
        %v2533 = vadd.f32 %v2273, %v2405
        %v2534 = vadd.f32 %v2106, %v2406
        %v2535 = vadd.f32 %v2275, %v2407
        %v2536 = vadd.f32 %v2109, %v2408
        %v2537 = vadd.f32 %v2278, %v2409
        %v2538 = vadd.f32 %v2111, %v2410
        %v2539 = vadd.f32 %v2280, %v2411
        %v2540 = vadd.f32 %v2114, %v2412
        %v2541 = vadd.f32 %v2283, %v2413
        %v2542 = vadd.f32 %v2116, %v2414
        %v2543 = vadd.f32 %v2285, %v2415
        %v2544 = vadd.f32 %v2119, %v2416
        %v2545 = vadd.f32 %v2288, %v2417
        %v2546 = vadd.f32 %v2121, %v2418
        %v2547 = vadd.f32 %v2290, %v2419
        %v2548 = vmax.f32 %v2420, 0.0
        %v2549 = vmax.f32 %v2421, 0.0
        %v2550 = vmax.f32 %v2422, 0.0
        %v2551 = vmax.f32 %v2423, 0.0
        %v2552 = vmax.f32 %v2424, 0.0
        %v2553 = vmax.f32 %v2425, 0.0
        %v2554 = vmax.f32 %v2426, 0.0
        %v2555 = vmax.f32 %v2427, 0.0
        %v2556 = vmax.f32 %v2428, 0.0
        %v2557 = vmax.f32 %v2429, 0.0
        %v2558 = vmax.f32 %v2430, 0.0
        %v2559 = vmax.f32 %v2431, 0.0
        %v2560 = vmax.f32 %v2432, 0.0
        %v2561 = vmax.f32 %v2433, 0.0
        %v2562 = vmax.f32 %v2434, 0.0
        %v2563 = vmax.f32 %v2435, 0.0
        %v2564 = vmax.f32 %v2436, 0.0
        %v2565 = vmax.f32 %v2437, 0.0
        %v2566 = vmax.f32 %v2438, 0.0
        %v2567 = vmax.f32 %v2439, 0.0
        %v2568 = vmax.f32 %v2440, 0.0
        %v2569 = vmax.f32 %v2441, 0.0
        %v2570 = vmax.f32 %v2442, 0.0
        %v2571 = vmax.f32 %v2443, 0.0
        %v2572 = vmax.f32 %v2444, 0.0
        %v2573 = vmax.f32 %v2445, 0.0
        %v2574 = vmax.f32 %v2446, 0.0
        %v2575 = vmax.f32 %v2447, 0.0
        %v2576 = vmax.f32 %v2448, 0.0
        %v2577 = vmax.f32 %v2449, 0.0
        %v2578 = vmax.f32 %v2450, 0.0
        %v2579 = vmax.f32 %v2451, 0.0
        %v2580 = vmax.f32 %v2452, 0.0
        %v2581 = vmax.f32 %v2453, 0.0
        %v2582 = vmax.f32 %v2454, 0.0
        %v2583 = vmax.f32 %v2455, 0.0
        %v2584 = vmax.f32 %v2456, 0.0
        %v2585 = vmax.f32 %v2457, 0.0
        %v2586 = vmax.f32 %v2458, 0.0
        %v2587 = vmax.f32 %v2459, 0.0
        %v2588 = vmax.f32 %v2460, 0.0
        %v2589 = vmax.f32 %v2461, 0.0
        %v2590 = vmax.f32 %v2462, 0.0
        %v2591 = vmax.f32 %v2463, 0.0
        %v2592 = vmax.f32 %v2464, 0.0
        %v2593 = vmax.f32 %v2465, 0.0
        %v2594 = vmax.f32 %v2466, 0.0
        %v2595 = vmax.f32 %v2467, 0.0
        %v2596 = vmax.f32 %v2468, 0.0
        %v2597 = vmax.f32 %v2469, 0.0
        %v2598 = vmax.f32 %v2470, 0.0
        %v2599 = vmax.f32 %v2471, 0.0
        %v2600 = vmax.f32 %v2472, 0.0
        %v2601 = vmax.f32 %v2473, 0.0
        %v2602 = vmax.f32 %v2474, 0.0
        %v2603 = vmax.f32 %v2475, 0.0
        %v2604 = vmax.f32 %v2476, 0.0
        %v2605 = vmax.f32 %v2477, 0.0
        %v2606 = vmax.f32 %v2478, 0.0
        %v2607 = vmax.f32 %v2479, 0.0
        %v2608 = vmax.f32 %v2480, 0.0
        %v2609 = vmax.f32 %v2481, 0.0
        %v2610 = vmax.f32 %v2482, 0.0
        %v2611 = vmax.f32 %v2483, 0.0
        %v2612 = vmax.f32 %v2484, 0.0
        %v2613 = vmax.f32 %v2485, 0.0
        %v2614 = vmax.f32 %v2486, 0.0
        %v2615 = vmax.f32 %v2487, 0.0
        %v2616 = vmax.f32 %v2488, 0.0
        %v2617 = vmax.f32 %v2489, 0.0
        %v2618 = vmax.f32 %v2490, 0.0
        %v2619 = vmax.f32 %v2491, 0.0
        %v2620 = vmax.f32 %v2492, 0.0
        %v2621 = vmax.f32 %v2493, 0.0
        %v2622 = vmax.f32 %v2494, 0.0
        %v2623 = vmax.f32 %v2495, 0.0
        %v2624 = vmax.f32 %v2496, 0.0
        %v2625 = vmax.f32 %v2497, 0.0
        %v2626 = vmax.f32 %v2498, 0.0
        %v2627 = vmax.f32 %v2499, 0.0
        %v2628 = vmax.f32 %v2500, 0.0
        %v2629 = vmax.f32 %v2501, 0.0
        %v2630 = vmax.f32 %v2502, 0.0
        %v2631 = vmax.f32 %v2503, 0.0
        %v2632 = vmax.f32 %v2504, 0.0
        %v2633 = vmax.f32 %v2505, 0.0
        %v2634 = vmax.f32 %v2506, 0.0
        %v2635 = vmax.f32 %v2507, 0.0
        %v2636 = vmax.f32 %v2508, 0.0
        %v2637 = vmax.f32 %v2509, 0.0
        %v2638 = vmax.f32 %v2510, 0.0
        %v2639 = vmax.f32 %v2511, 0.0
        %v2640 = vmax.f32 %v2512, 0.0
        %v2641 = vmax.f32 %v2513, 0.0
        %v2642 = vmax.f32 %v2514, 0.0
        %v2643 = vmax.f32 %v2515, 0.0
        %v2644 = vmax.f32 %v2516, 0.0
        %v2645 = vmax.f32 %v2517, 0.0
        %v2646 = vmax.f32 %v2518, 0.0
        %v2647 = vmax.f32 %v2519, 0.0
        %v2648 = vmax.f32 %v2520, 0.0
        %v2649 = vmax.f32 %v2521, 0.0
        %v2650 = vmax.f32 %v2522, 0.0
        %v2651 = vmax.f32 %v2523, 0.0
        %v2652 = vmax.f32 %v2524, 0.0
        %v2653 = vmax.f32 %v2525, 0.0
        %v2654 = vmax.f32 %v2526, 0.0
        %v2655 = vmax.f32 %v2527, 0.0
        %v2656 = vmax.f32 %v2528, 0.0
        %v2657 = vmax.f32 %v2529, 0.0
        %v2658 = vmax.f32 %v2530, 0.0
        %v2659 = vmax.f32 %v2531, 0.0
        %v2660 = vmax.f32 %v2532, 0.0
        %v2661 = vmax.f32 %v2533, 0.0
        %v2662 = vmax.f32 %v2534, 0.0
        %v2663 = vmax.f32 %v2535, 0.0
        %v2664 = vmax.f32 %v2536, 0.0
        %v2665 = vmax.f32 %v2537, 0.0
        %v2666 = vmax.f32 %v2538, 0.0
        %v2667 = vmax.f32 %v2539, 0.0
        %v2668 = vmax.f32 %v2540, 0.0
        %v2669 = vmax.f32 %v2541, 0.0
        %v2670 = vmax.f32 %v2542, 0.0
        %v2671 = vmax.f32 %v2543, 0.0
        %v2672 = vmax.f32 %v2544, 0.0
        %v2673 = vmax.f32 %v2545, 0.0
        %v2674 = vmax.f32 %v2546, 0.0
        %v2675 = vmax.f32 %v2547, 0.0
        %v2676 = vld [vmem:[%s4] sm:$0xff]
        %v2677 = vld [vmem:[%s4 + $0x8] sm:$0xff]
        %v2678 = vld [vmem:[%s4 + $0x10] sm:$0xff]
        %v2679 = vld [vmem:[%s4 + $0x18] sm:$0xff]
        %v2680 = vld [vmem:[%s4 + $0x20] sm:$0xff]
        %v2681 = vld [vmem:[%s4 + $0x28] sm:$0xff]
        %v2682 = vld [vmem:[%s4 + $0x30] sm:$0xff]
        %v2683 = vld [vmem:[%s4 + $0x38] sm:$0xff]
        %v2684 = vld [vmem:[%s4 + $0x40] sm:$0xff]
        %v2685 = vld [vmem:[%s4 + $0x48] sm:$0xff]
        %v2686 = vld [vmem:[%s4 + $0x50] sm:$0xff]
        %v2687 = vld [vmem:[%s4 + $0x58] sm:$0xff]
        %v2688 = vld [vmem:[%s4 + $0x60] sm:$0xff]
        %v2689 = vld [vmem:[%s4 + $0x68] sm:$0xff]
        %v2690 = vld [vmem:[%s4 + $0x70] sm:$0xff]
        %v2691 = vld [vmem:[%s4 + $0x78] sm:$0xff]
        %v2692 = vld [vmem:[%s4 + $0x80] sm:$0xff]
        %v2693 = vld [vmem:[%s4 + $0x88] sm:$0xff]
        %v2694 = vld [vmem:[%s4 + $0x90] sm:$0xff]
        %v2695 = vld [vmem:[%s4 + $0x98] sm:$0xff]
        %v2696 = vld [vmem:[%s4 + $0xa0] sm:$0xff]
        %v2697 = vld [vmem:[%s4 + $0xa8] sm:$0xff]
        %v2698 = vld [vmem:[%s4 + $0xb0] sm:$0xff]
        %v2699 = vld [vmem:[%s4 + $0xb8] sm:$0xff]
        %v2700 = vld [vmem:[%s4 + $0xc0] sm:$0xff]
        %v2701 = vld [vmem:[%s4 + $0xc8] sm:$0xff]
        %v2702 = vld [vmem:[%s4 + $0xd0] sm:$0xff]
        %v2703 = vld [vmem:[%s4 + $0xd8] sm:$0xff]
        %v2704 = vld [vmem:[%s4 + $0xe0] sm:$0xff]
        %v2705 = vld [vmem:[%s4 + $0xe8] sm:$0xff]
        %v2706 = vld [vmem:[%s4 + $0xf0] sm:$0xff]
        %v2707 = vld [vmem:[%s4 + $0xf8] sm:$0xff]
        %v2708 = vpack.c.bf16 %v2550, %v2548
        %v2709 = vpack.c.bf16 %v2551, %v2549
        %v2710 = vpack.c.bf16 %v2554, %v2552
        %v2711 = vpack.c.bf16 %v2555, %v2553
        %v2712 = vpack.c.bf16 %v2558, %v2556
        %v2713 = vpack.c.bf16 %v2559, %v2557
        %v2714 = vpack.c.bf16 %v2562, %v2560
        %v2715 = vpack.c.bf16 %v2563, %v2561
        %v2716 = vpack.c.bf16 %v2566, %v2564
        %v2717 = vpack.c.bf16 %v2567, %v2565
        %v2718 = vpack.c.bf16 %v2570, %v2568
        %v2719 = vpack.c.bf16 %v2571, %v2569
        %v2720 = vpack.c.bf16 %v2574, %v2572
        %v2721 = vpack.c.bf16 %v2575, %v2573
        %v2722 = vpack.c.bf16 %v2578, %v2576
        %v2723 = vpack.c.bf16 %v2579, %v2577
        %v2724 = vpack.c.bf16 %v2582, %v2580
        %v2725 = vpack.c.bf16 %v2583, %v2581
        %v2726 = vpack.c.bf16 %v2586, %v2584
        %v2727 = vpack.c.bf16 %v2587, %v2585
        %v2728 = vpack.c.bf16 %v2590, %v2588
        %v2729 = vpack.c.bf16 %v2591, %v2589
        %v2730 = vpack.c.bf16 %v2594, %v2592
        %v2731 = vpack.c.bf16 %v2595, %v2593
        %v2732 = vpack.c.bf16 %v2598, %v2596
        %v2733 = vpack.c.bf16 %v2599, %v2597
        %v2734 = vpack.c.bf16 %v2602, %v2600
        %v2735 = vpack.c.bf16 %v2603, %v2601
        %v2736 = vpack.c.bf16 %v2606, %v2604
        %v2737 = vpack.c.bf16 %v2607, %v2605
        %v2738 = vpack.c.bf16 %v2610, %v2608
        %v2739 = vpack.c.bf16 %v2611, %v2609
        %v2740 = vpack.c.bf16 %v2614, %v2612
        %v2741 = vpack.c.bf16 %v2615, %v2613
        %v2742 = vpack.c.bf16 %v2618, %v2616
        %v2743 = vpack.c.bf16 %v2619, %v2617
        %v2744 = vpack.c.bf16 %v2622, %v2620
        %v2745 = vpack.c.bf16 %v2623, %v2621
        %v2746 = vpack.c.bf16 %v2626, %v2624
        %v2747 = vpack.c.bf16 %v2627, %v2625
        %v2748 = vpack.c.bf16 %v2630, %v2628
        %v2749 = vpack.c.bf16 %v2631, %v2629
        %v2750 = vpack.c.bf16 %v2634, %v2632
        %v2751 = vpack.c.bf16 %v2635, %v2633
        %v2752 = vpack.c.bf16 %v2638, %v2636
        %v2753 = vpack.c.bf16 %v2639, %v2637
        %v2754 = vpack.c.bf16 %v2642, %v2640
        %v2755 = vpack.c.bf16 %v2643, %v2641
        %v2756 = vpack.c.bf16 %v2646, %v2644
        %v2757 = vpack.c.bf16 %v2647, %v2645
        %v2758 = vpack.c.bf16 %v2650, %v2648
        %v2759 = vpack.c.bf16 %v2651, %v2649
        %v2760 = vpack.c.bf16 %v2654, %v2652
        %v2761 = vpack.c.bf16 %v2655, %v2653
        %v2762 = vpack.c.bf16 %v2658, %v2656
        %v2763 = vpack.c.bf16 %v2659, %v2657
        %v2764 = vpack.c.bf16 %v2662, %v2660
        %v2765 = vpack.c.bf16 %v2663, %v2661
        %v2766 = vpack.c.bf16 %v2666, %v2664
        %v2767 = vpack.c.bf16 %v2667, %v2665
        %v2768 = vpack.c.bf16 %v2670, %v2668
        %v2769 = vpack.c.bf16 %v2671, %v2669
        %v2770 = vpack.c.bf16 %v2674, %v2672
        %v2771 = vpack.c.bf16 %v2675, %v2673
        %v2804 = vunpack.c.l.b16 %v2676
        %v2805 = vunpack.c.h.b16 %v2676
        %v2806 = vunpack.c.l.b16 %v2677
        %v2807 = vunpack.c.h.b16 %v2677
        %v2808 = vunpack.c.l.b16 %v2678
        %v2809 = vunpack.c.h.b16 %v2678
        %v2810 = vunpack.c.l.b16 %v2679
        %v2811 = vunpack.c.h.b16 %v2679
        %v2812 = vunpack.c.l.b16 %v2680
        %v2813 = vunpack.c.h.b16 %v2680
        %v2814 = vunpack.c.l.b16 %v2681
        %v2815 = vunpack.c.h.b16 %v2681
        %v2816 = vunpack.c.l.b16 %v2682
        %v2817 = vunpack.c.h.b16 %v2682
        %v2818 = vunpack.c.l.b16 %v2683
        %v2819 = vunpack.c.h.b16 %v2683
        %v2820 = vunpack.c.l.b16 %v2684
        %v2821 = vunpack.c.h.b16 %v2684
        %v2822 = vunpack.c.l.b16 %v2685
        %v2823 = vunpack.c.h.b16 %v2685
        %v2824 = vunpack.c.l.b16 %v2686
        %v2825 = vunpack.c.h.b16 %v2686
        %v2826 = vunpack.c.l.b16 %v2687
        %v2827 = vunpack.c.h.b16 %v2687
        %v2828 = vunpack.c.l.b16 %v2688
        %v2829 = vunpack.c.h.b16 %v2688
        %v2830 = vunpack.c.l.b16 %v2689
        %v2831 = vunpack.c.h.b16 %v2689
        %v2832 = vunpack.c.l.b16 %v2690
        %v2833 = vunpack.c.h.b16 %v2690
        %v2834 = vunpack.c.l.b16 %v2691
        %v2835 = vunpack.c.h.b16 %v2691
        %v2836 = vunpack.c.l.b16 %v2692
        %v2837 = vunpack.c.h.b16 %v2692
        %v2838 = vunpack.c.l.b16 %v2693
        %v2839 = vunpack.c.h.b16 %v2693
        %v2840 = vunpack.c.l.b16 %v2694
        %v2841 = vunpack.c.h.b16 %v2694
        %v2842 = vunpack.c.l.b16 %v2695
        %v2843 = vunpack.c.h.b16 %v2695
        %v2844 = vunpack.c.l.b16 %v2696
        %v2845 = vunpack.c.h.b16 %v2696
        %v2846 = vunpack.c.l.b16 %v2697
        %v2847 = vunpack.c.h.b16 %v2697
        %v2848 = vunpack.c.l.b16 %v2698
        %v2849 = vunpack.c.h.b16 %v2698
        %v2850 = vunpack.c.l.b16 %v2699
        %v2851 = vunpack.c.h.b16 %v2699
        %v2852 = vunpack.c.l.b16 %v2700
        %v2853 = vunpack.c.h.b16 %v2700
        %v2854 = vunpack.c.l.b16 %v2701
        %v2855 = vunpack.c.h.b16 %v2701
        %v2856 = vunpack.c.l.b16 %v2702
        %v2857 = vunpack.c.h.b16 %v2702
        %v2858 = vunpack.c.l.b16 %v2703
        %v2859 = vunpack.c.h.b16 %v2703
        %v2860 = vunpack.c.l.b16 %v2704
        %v2861 = vunpack.c.h.b16 %v2704
        %v2862 = vunpack.c.l.b16 %v2705
        %v2863 = vunpack.c.h.b16 %v2705
        %v2864 = vunpack.c.l.b16 %v2706
        %v2865 = vunpack.c.h.b16 %v2706
        %v2866 = vunpack.c.l.b16 %v2707
        %v2867 = vunpack.c.h.b16 %v2707
        %v2868 = vpack.c.b16 %v2808, %v2804
        %v2869 = vpack.c.b16 %v2809, %v2805
        %v2870 = vpack.c.b16 %v2810, %v2806
        %v2871 = vpack.c.b16 %v2811, %v2807
        %v2872 = vpack.c.b16 %v2816, %v2812
        %v2873 = vpack.c.b16 %v2817, %v2813
        %v2874 = vpack.c.b16 %v2818, %v2814
        %v2875 = vpack.c.b16 %v2819, %v2815
        %v2876 = vpack.c.b16 %v2824, %v2820
        %v2877 = vpack.c.b16 %v2825, %v2821
        %v2878 = vpack.c.b16 %v2826, %v2822
        %v2879 = vpack.c.b16 %v2827, %v2823
        %v2880 = vpack.c.b16 %v2832, %v2828
        %v2881 = vpack.c.b16 %v2833, %v2829
        %v2882 = vpack.c.b16 %v2834, %v2830
        %v2883 = vpack.c.b16 %v2835, %v2831
        %v2884 = vpack.c.b16 %v2840, %v2836
        %v2885 = vpack.c.b16 %v2841, %v2837
        %v2886 = vpack.c.b16 %v2842, %v2838
        %v2887 = vpack.c.b16 %v2843, %v2839
        %v2888 = vpack.c.b16 %v2848, %v2844
        %v2889 = vpack.c.b16 %v2849, %v2845
        %v2890 = vpack.c.b16 %v2850, %v2846
        %v2891 = vpack.c.b16 %v2851, %v2847
        %v2892 = vpack.c.b16 %v2856, %v2852
        %v2893 = vpack.c.b16 %v2857, %v2853
        %v2894 = vpack.c.b16 %v2858, %v2854
        %v2895 = vpack.c.b16 %v2859, %v2855
        %v2896 = vpack.c.b16 %v2864, %v2860
        %v2897 = vpack.c.b16 %v2865, %v2861
        %v2898 = vpack.c.b16 %v2866, %v2862
        %v2899 = vpack.c.b16 %v2867, %v2863
        %2932 = vmatpush.bf16.msra.mxu0 %v2722
        %2933 = vmatpush.bf16.msra.mxu0 %v2720
        %2934 = vmatpush.bf16.msra.mxu0 %v2718
        %2935 = vmatpush.bf16.msra.mxu0 %v2716
        %2936 = vmatpush.bf16.msra.mxu0 %v2714
        %2937 = vmatpush.bf16.msra.mxu0 %v2712
        %2938 = vmatpush.bf16.msra.mxu0 %v2710
        %2939 = vmatpush.bf16.msra.mxu0 %v2708
        %2940 = vmatmul.bf16.gmra.mxu0 %v2868
        %v2941 = vpop.f32.mrf.mxu0
        %v2942 = vadd.f32 0.0, %v2941
        %v2943 = vpop.f32.mrf.mxu0
        %v2944 = vadd.f32 0.0, %v2943
        %2945 = vmatmul.bf16.gmra.mxu0 %v2872
        %v2946 = vpop.f32.mrf.mxu0
        %v2947 = vadd.f32 0.0, %v2946
        %v2948 = vpop.f32.mrf.mxu0
        %v2949 = vadd.f32 0.0, %v2948
        %2950 = vmatmul.bf16.gmra.mxu0 %v2876
        %v2951 = vpop.f32.mrf.mxu0
        %v2952 = vadd.f32 0.0, %v2951
        %v2953 = vpop.f32.mrf.mxu0
        %v2954 = vadd.f32 0.0, %v2953
        %2955 = vmatmul.bf16.gmra.mxu0 %v2880
        %v2956 = vpop.f32.mrf.mxu0
        %v2957 = vadd.f32 0.0, %v2956
        %v2958 = vpop.f32.mrf.mxu0
        %v2959 = vadd.f32 0.0, %v2958
        %2960 = vmatmul.bf16.gmra.mxu0 %v2884
        %v2961 = vpop.f32.mrf.mxu0
        %v2962 = vadd.f32 0.0, %v2961
        %v2963 = vpop.f32.mrf.mxu0
        %v2964 = vadd.f32 0.0, %v2963
        %2965 = vmatmul.bf16.gmra.mxu0 %v2888
        %v2966 = vpop.f32.mrf.mxu0
        %v2967 = vadd.f32 0.0, %v2966
        %v2968 = vpop.f32.mrf.mxu0
        %v2969 = vadd.f32 0.0, %v2968
        %2970 = vmatmul.bf16.gmra.mxu0 %v2892
        %v2971 = vpop.f32.mrf.mxu0
        %v2972 = vadd.f32 0.0, %v2971
        %v2973 = vpop.f32.mrf.mxu0
        %v2974 = vadd.f32 0.0, %v2973
        %2975 = vmatmul.bf16.gmra.mxu0 %v2896
        %v2976 = vpop.f32.mrf.mxu0
        %v2977 = vadd.f32 0.0, %v2976
        %v2978 = vpop.f32.mrf.mxu0
        %v2979 = vadd.f32 0.0, %v2978
        %2980 = vdwg.mxu0
        %2981 = vmatpush.bf16.msra.mxu0 %v2738
        %2982 = vmatpush.bf16.msra.mxu0 %v2736
        %2983 = vmatpush.bf16.msra.mxu0 %v2734
        %2984 = vmatpush.bf16.msra.mxu0 %v2732
        %2985 = vmatpush.bf16.msra.mxu0 %v2730
        %2986 = vmatpush.bf16.msra.mxu0 %v2728
        %2987 = vmatpush.bf16.msra.mxu0 %v2726
        %2988 = vmatpush.bf16.msra.mxu0 %v2724
        %2989 = vmatmul.bf16.gmra.mxu0 %v2869
        %v2990 = vpop.f32.mrf.mxu0
        %v2991 = vadd.f32 %v2942, %v2990
        %v2992 = vpop.f32.mrf.mxu0
        %v2993 = vadd.f32 %v2944, %v2992
        %2994 = vmatmul.bf16.gmra.mxu0 %v2873
        %v2995 = vpop.f32.mrf.mxu0
        %v2996 = vadd.f32 %v2947, %v2995
        %v2997 = vpop.f32.mrf.mxu0
        %v2998 = vadd.f32 %v2949, %v2997
        %2999 = vmatmul.bf16.gmra.mxu0 %v2877
        %v3000 = vpop.f32.mrf.mxu0
        %v3001 = vadd.f32 %v2952, %v3000
        %v3002 = vpop.f32.mrf.mxu0
        %v3003 = vadd.f32 %v2954, %v3002
        %3004 = vmatmul.bf16.gmra.mxu0 %v2881
        %v3005 = vpop.f32.mrf.mxu0
        %v3006 = vadd.f32 %v2957, %v3005
        %v3007 = vpop.f32.mrf.mxu0
        %v3008 = vadd.f32 %v2959, %v3007
        %3009 = vmatmul.bf16.gmra.mxu0 %v2885
        %v3010 = vpop.f32.mrf.mxu0
        %v3011 = vadd.f32 %v2962, %v3010
        %v3012 = vpop.f32.mrf.mxu0
        %v3013 = vadd.f32 %v2964, %v3012
        %3014 = vmatmul.bf16.gmra.mxu0 %v2889
        %v3015 = vpop.f32.mrf.mxu0
        %v3016 = vadd.f32 %v2967, %v3015
        %v3017 = vpop.f32.mrf.mxu0
        %v3018 = vadd.f32 %v2969, %v3017
        %3019 = vmatmul.bf16.gmra.mxu0 %v2893
        %v3020 = vpop.f32.mrf.mxu0
        %v3021 = vadd.f32 %v2972, %v3020
        %v3022 = vpop.f32.mrf.mxu0
        %v3023 = vadd.f32 %v2974, %v3022
        %3024 = vmatmul.bf16.gmra.mxu0 %v2897
        %v3025 = vpop.f32.mrf.mxu0
        %v3026 = vadd.f32 %v2977, %v3025
        %v3027 = vpop.f32.mrf.mxu0
        %v3028 = vadd.f32 %v2979, %v3027
        %3029 = vdwg.mxu0
        %3030 = vmatpush.bf16.msra.mxu0 %v2754
        %3031 = vmatpush.bf16.msra.mxu0 %v2752
        %3032 = vmatpush.bf16.msra.mxu0 %v2750
        %3033 = vmatpush.bf16.msra.mxu0 %v2748
        %3034 = vmatpush.bf16.msra.mxu0 %v2746
        %3035 = vmatpush.bf16.msra.mxu0 %v2744
        %3036 = vmatpush.bf16.msra.mxu0 %v2742
        %3037 = vmatpush.bf16.msra.mxu0 %v2740
        %3038 = vmatmul.bf16.gmra.mxu0 %v2870
        %v3039 = vpop.f32.mrf.mxu0
        %v3040 = vadd.f32 %v2991, %v3039
        %v3041 = vpop.f32.mrf.mxu0
        %v3042 = vadd.f32 %v2993, %v3041
        %3043 = vmatmul.bf16.gmra.mxu0 %v2874
        %v3044 = vpop.f32.mrf.mxu0
        %v3045 = vadd.f32 %v2996, %v3044
        %v3046 = vpop.f32.mrf.mxu0
        %v3047 = vadd.f32 %v2998, %v3046
        %3048 = vmatmul.bf16.gmra.mxu0 %v2878
        %v3049 = vpop.f32.mrf.mxu0
        %v3050 = vadd.f32 %v3001, %v3049
        %v3051 = vpop.f32.mrf.mxu0
        %v3052 = vadd.f32 %v3003, %v3051
        %3053 = vmatmul.bf16.gmra.mxu0 %v2882
        %v3054 = vpop.f32.mrf.mxu0
        %v3055 = vadd.f32 %v3006, %v3054
        %v3056 = vpop.f32.mrf.mxu0
        %v3057 = vadd.f32 %v3008, %v3056
        %3058 = vmatmul.bf16.gmra.mxu0 %v2886
        %v3059 = vpop.f32.mrf.mxu0
        %v3060 = vadd.f32 %v3011, %v3059
        %v3061 = vpop.f32.mrf.mxu0
        %v3062 = vadd.f32 %v3013, %v3061
        %3063 = vmatmul.bf16.gmra.mxu0 %v2890
        %v3064 = vpop.f32.mrf.mxu0
        %v3065 = vadd.f32 %v3016, %v3064
        %v3066 = vpop.f32.mrf.mxu0
        %v3067 = vadd.f32 %v3018, %v3066
        %3068 = vmatmul.bf16.gmra.mxu0 %v2894
        %v3069 = vpop.f32.mrf.mxu0
        %v3070 = vadd.f32 %v3021, %v3069
        %v3071 = vpop.f32.mrf.mxu0
        %v3072 = vadd.f32 %v3023, %v3071
        %3073 = vmatmul.bf16.gmra.mxu0 %v2898
        %v3074 = vpop.f32.mrf.mxu0
        %v3075 = vadd.f32 %v3026, %v3074
        %v3076 = vpop.f32.mrf.mxu0
        %v3077 = vadd.f32 %v3028, %v3076
        %3078 = vdwg.mxu0
        %3079 = vmatpush.bf16.msra.mxu0 %v2770
        %3080 = vmatpush.bf16.msra.mxu0 %v2768
        %3081 = vmatpush.bf16.msra.mxu0 %v2766
        %3082 = vmatpush.bf16.msra.mxu0 %v2764
        %3083 = vmatpush.bf16.msra.mxu0 %v2762
        %3084 = vmatpush.bf16.msra.mxu0 %v2760
        %3085 = vmatpush.bf16.msra.mxu0 %v2758
        %3086 = vmatpush.bf16.msra.mxu0 %v2756
        %3087 = vmatmul.bf16.gmra.mxu0 %v2871
        %v3088 = vpop.f32.mrf.mxu0
        %v3089 = vadd.f32 %v3040, %v3088
        %v3090 = vpop.f32.mrf.mxu0
        %v3091 = vadd.f32 %v3042, %v3090
        %3092 = vmatmul.bf16.gmra.mxu0 %v2875
        %v3093 = vpop.f32.mrf.mxu0
        %v3094 = vadd.f32 %v3045, %v3093
        %v3095 = vpop.f32.mrf.mxu0
        %v3096 = vadd.f32 %v3047, %v3095
        %3097 = vmatmul.bf16.gmra.mxu0 %v2879
        %v3098 = vpop.f32.mrf.mxu0
        %v3099 = vadd.f32 %v3050, %v3098
        %v3100 = vpop.f32.mrf.mxu0
        %v3101 = vadd.f32 %v3052, %v3100
        %3102 = vmatmul.bf16.gmra.mxu0 %v2883
        %v3103 = vpop.f32.mrf.mxu0
        %v3104 = vadd.f32 %v3055, %v3103
        %v3105 = vpop.f32.mrf.mxu0
        %v3106 = vadd.f32 %v3057, %v3105
        %3107 = vmatmul.bf16.gmra.mxu0 %v2887
        %v3108 = vpop.f32.mrf.mxu0
        %v3109 = vadd.f32 %v3060, %v3108
        %v3110 = vpop.f32.mrf.mxu0
        %v3111 = vadd.f32 %v3062, %v3110
        %3112 = vmatmul.bf16.gmra.mxu0 %v2891
        %v3113 = vpop.f32.mrf.mxu0
        %v3114 = vadd.f32 %v3065, %v3113
        %v3115 = vpop.f32.mrf.mxu0
        %v3116 = vadd.f32 %v3067, %v3115
        %3117 = vmatmul.bf16.gmra.mxu0 %v2895
        %v3118 = vpop.f32.mrf.mxu0
        %v3119 = vadd.f32 %v3070, %v3118
        %v3120 = vpop.f32.mrf.mxu0
        %v3121 = vadd.f32 %v3072, %v3120
        %3122 = vmatmul.bf16.gmra.mxu0 %v2899
        %v3123 = vpop.f32.mrf.mxu0
        %v3124 = vadd.f32 %v3075, %v3123
        %v3125 = vpop.f32.mrf.mxu0
        %v3126 = vadd.f32 %v3077, %v3125
        %3127 = vdwg.mxu0
        %3128 = vmatpush.bf16.msra.mxu0 %v2723
        %3129 = vmatpush.bf16.msra.mxu0 %v2721
        %3130 = vmatpush.bf16.msra.mxu0 %v2719
        %3131 = vmatpush.bf16.msra.mxu0 %v2717
        %3132 = vmatpush.bf16.msra.mxu0 %v2715
        %3133 = vmatpush.bf16.msra.mxu0 %v2713
        %3134 = vmatpush.bf16.msra.mxu0 %v2711
        %3135 = vmatpush.bf16.msra.mxu0 %v2709
        %3136 = vmatmul.bf16.gmra.mxu0 %v2868
        %v3137 = vpop.f32.mrf.mxu0
        %v3138 = vadd.f32 0.0, %v3137
        %v3139 = vpop.f32.mrf.mxu0
        %v3140 = vadd.f32 0.0, %v3139
        %3141 = vmatmul.bf16.gmra.mxu0 %v2872
        %v3142 = vpop.f32.mrf.mxu0
        %v3143 = vadd.f32 0.0, %v3142
        %v3144 = vpop.f32.mrf.mxu0
        %v3145 = vadd.f32 0.0, %v3144
        %3146 = vmatmul.bf16.gmra.mxu0 %v2876
        %v3147 = vpop.f32.mrf.mxu0
        %v3148 = vadd.f32 0.0, %v3147
        %v3149 = vpop.f32.mrf.mxu0
        %v3150 = vadd.f32 0.0, %v3149
        %3151 = vmatmul.bf16.gmra.mxu0 %v2880
        %v3152 = vpop.f32.mrf.mxu0
        %v3153 = vadd.f32 0.0, %v3152
        %v3154 = vpop.f32.mrf.mxu0
        %v3155 = vadd.f32 0.0, %v3154
        %3156 = vmatmul.bf16.gmra.mxu0 %v2884
        %v3157 = vpop.f32.mrf.mxu0
        %v3158 = vadd.f32 0.0, %v3157
        %v3159 = vpop.f32.mrf.mxu0
        %v3160 = vadd.f32 0.0, %v3159
        %3161 = vmatmul.bf16.gmra.mxu0 %v2888
        %v3162 = vpop.f32.mrf.mxu0
        %v3163 = vadd.f32 0.0, %v3162
        %v3164 = vpop.f32.mrf.mxu0
        %v3165 = vadd.f32 0.0, %v3164
        %3166 = vmatmul.bf16.gmra.mxu0 %v2892
        %v3167 = vpop.f32.mrf.mxu0
        %v3168 = vadd.f32 0.0, %v3167
        %v3169 = vpop.f32.mrf.mxu0
        %v3170 = vadd.f32 0.0, %v3169
        %3171 = vmatmul.bf16.gmra.mxu0 %v2896
        %v3172 = vpop.f32.mrf.mxu0
        %v3173 = vadd.f32 0.0, %v3172
        %v3174 = vpop.f32.mrf.mxu0
        %v3175 = vadd.f32 0.0, %v3174
        %3176 = vdwg.mxu0
        %3177 = vmatpush.bf16.msra.mxu0 %v2739
        %3178 = vmatpush.bf16.msra.mxu0 %v2737
        %3179 = vmatpush.bf16.msra.mxu0 %v2735
        %3180 = vmatpush.bf16.msra.mxu0 %v2733
        %3181 = vmatpush.bf16.msra.mxu0 %v2731
        %3182 = vmatpush.bf16.msra.mxu0 %v2729
        %3183 = vmatpush.bf16.msra.mxu0 %v2727
        %3184 = vmatpush.bf16.msra.mxu0 %v2725
        %3185 = vmatmul.bf16.gmra.mxu0 %v2869
        %v3186 = vpop.f32.mrf.mxu0
        %v3187 = vadd.f32 %v3138, %v3186
        %v3188 = vpop.f32.mrf.mxu0
        %v3189 = vadd.f32 %v3140, %v3188
        %3190 = vmatmul.bf16.gmra.mxu0 %v2873
        %v3191 = vpop.f32.mrf.mxu0
        %v3192 = vadd.f32 %v3143, %v3191
        %v3193 = vpop.f32.mrf.mxu0
        %v3194 = vadd.f32 %v3145, %v3193
        %3195 = vmatmul.bf16.gmra.mxu0 %v2877
        %v3196 = vpop.f32.mrf.mxu0
        %v3197 = vadd.f32 %v3148, %v3196
        %v3198 = vpop.f32.mrf.mxu0
        %v3199 = vadd.f32 %v3150, %v3198
        %3200 = vmatmul.bf16.gmra.mxu0 %v2881
        %v3201 = vpop.f32.mrf.mxu0
        %v3202 = vadd.f32 %v3153, %v3201
        %v3203 = vpop.f32.mrf.mxu0
        %v3204 = vadd.f32 %v3155, %v3203
        %3205 = vmatmul.bf16.gmra.mxu0 %v2885
        %v3206 = vpop.f32.mrf.mxu0
        %v3207 = vadd.f32 %v3158, %v3206
        %v3208 = vpop.f32.mrf.mxu0
        %v3209 = vadd.f32 %v3160, %v3208
        %3210 = vmatmul.bf16.gmra.mxu0 %v2889
        %v3211 = vpop.f32.mrf.mxu0
        %v3212 = vadd.f32 %v3163, %v3211
        %v3213 = vpop.f32.mrf.mxu0
        %v3214 = vadd.f32 %v3165, %v3213
        %3215 = vmatmul.bf16.gmra.mxu0 %v2893
        %v3216 = vpop.f32.mrf.mxu0
        %v3217 = vadd.f32 %v3168, %v3216
        %v3218 = vpop.f32.mrf.mxu0
        %v3219 = vadd.f32 %v3170, %v3218
        %3220 = vmatmul.bf16.gmra.mxu0 %v2897
        %v3221 = vpop.f32.mrf.mxu0
        %v3222 = vadd.f32 %v3173, %v3221
        %v3223 = vpop.f32.mrf.mxu0
        %v3224 = vadd.f32 %v3175, %v3223
        %3225 = vdwg.mxu0
        %3226 = vmatpush.bf16.msra.mxu0 %v2755
        %3227 = vmatpush.bf16.msra.mxu0 %v2753
        %3228 = vmatpush.bf16.msra.mxu0 %v2751
        %3229 = vmatpush.bf16.msra.mxu0 %v2749
        %3230 = vmatpush.bf16.msra.mxu0 %v2747
        %3231 = vmatpush.bf16.msra.mxu0 %v2745
        %3232 = vmatpush.bf16.msra.mxu0 %v2743
        %3233 = vmatpush.bf16.msra.mxu0 %v2741
        %3234 = vmatmul.bf16.gmra.mxu0 %v2870
        %v3235 = vpop.f32.mrf.mxu0
        %v3236 = vadd.f32 %v3187, %v3235
        %v3237 = vpop.f32.mrf.mxu0
        %v3238 = vadd.f32 %v3189, %v3237
        %3239 = vmatmul.bf16.gmra.mxu0 %v2874
        %v3240 = vpop.f32.mrf.mxu0
        %v3241 = vadd.f32 %v3192, %v3240
        %v3242 = vpop.f32.mrf.mxu0
        %v3243 = vadd.f32 %v3194, %v3242
        %3244 = vmatmul.bf16.gmra.mxu0 %v2878
        %v3245 = vpop.f32.mrf.mxu0
        %v3246 = vadd.f32 %v3197, %v3245
        %v3247 = vpop.f32.mrf.mxu0
        %v3248 = vadd.f32 %v3199, %v3247
        %3249 = vmatmul.bf16.gmra.mxu0 %v2882
        %v3250 = vpop.f32.mrf.mxu0
        %v3251 = vadd.f32 %v3202, %v3250
        %v3252 = vpop.f32.mrf.mxu0
        %v3253 = vadd.f32 %v3204, %v3252
        %3254 = vmatmul.bf16.gmra.mxu0 %v2886
        %v3255 = vpop.f32.mrf.mxu0
        %v3256 = vadd.f32 %v3207, %v3255
        %v3257 = vpop.f32.mrf.mxu0
        %v3258 = vadd.f32 %v3209, %v3257
        %3259 = vmatmul.bf16.gmra.mxu0 %v2890
        %v3260 = vpop.f32.mrf.mxu0
        %v3261 = vadd.f32 %v3212, %v3260
        %v3262 = vpop.f32.mrf.mxu0
        %v3263 = vadd.f32 %v3214, %v3262
        %3264 = vmatmul.bf16.gmra.mxu0 %v2894
        %v3265 = vpop.f32.mrf.mxu0
        %v3266 = vadd.f32 %v3217, %v3265
        %v3267 = vpop.f32.mrf.mxu0
        %v3268 = vadd.f32 %v3219, %v3267
        %3269 = vmatmul.bf16.gmra.mxu0 %v2898
        %v3270 = vpop.f32.mrf.mxu0
        %v3271 = vadd.f32 %v3222, %v3270
        %v3272 = vpop.f32.mrf.mxu0
        %v3273 = vadd.f32 %v3224, %v3272
        %3274 = vdwg.mxu0
        %3275 = vmatpush.bf16.msra.mxu0 %v2771
        %3276 = vmatpush.bf16.msra.mxu0 %v2769
        %3277 = vmatpush.bf16.msra.mxu0 %v2767
        %3278 = vmatpush.bf16.msra.mxu0 %v2765
        %3279 = vmatpush.bf16.msra.mxu0 %v2763
        %3280 = vmatpush.bf16.msra.mxu0 %v2761
        %3281 = vmatpush.bf16.msra.mxu0 %v2759
        %3282 = vmatpush.bf16.msra.mxu0 %v2757
        %3283 = vmatmul.bf16.gmra.mxu0 %v2871
        %v3284 = vpop.f32.mrf.mxu0
        %v3285 = vadd.f32 %v3236, %v3284
        %v3286 = vpop.f32.mrf.mxu0
        %v3287 = vadd.f32 %v3238, %v3286
        %3288 = vmatmul.bf16.gmra.mxu0 %v2875
        %v3289 = vpop.f32.mrf.mxu0
        %v3290 = vadd.f32 %v3241, %v3289
        %v3291 = vpop.f32.mrf.mxu0
        %v3292 = vadd.f32 %v3243, %v3291
        %3293 = vmatmul.bf16.gmra.mxu0 %v2879
        %v3294 = vpop.f32.mrf.mxu0
        %v3295 = vadd.f32 %v3246, %v3294
        %v3296 = vpop.f32.mrf.mxu0
        %v3297 = vadd.f32 %v3248, %v3296
        %3298 = vmatmul.bf16.gmra.mxu0 %v2883
        %v3299 = vpop.f32.mrf.mxu0
        %v3300 = vadd.f32 %v3251, %v3299
        %v3301 = vpop.f32.mrf.mxu0
        %v3302 = vadd.f32 %v3253, %v3301
        %3303 = vmatmul.bf16.gmra.mxu0 %v2887
        %v3304 = vpop.f32.mrf.mxu0
        %v3305 = vadd.f32 %v3256, %v3304
        %v3306 = vpop.f32.mrf.mxu0
        %v3307 = vadd.f32 %v3258, %v3306
        %3308 = vmatmul.bf16.gmra.mxu0 %v2891
        %v3309 = vpop.f32.mrf.mxu0
        %v3310 = vadd.f32 %v3261, %v3309
        %v3311 = vpop.f32.mrf.mxu0
        %v3312 = vadd.f32 %v3263, %v3311
        %3313 = vmatmul.bf16.gmra.mxu0 %v2895
        %v3314 = vpop.f32.mrf.mxu0
        %v3315 = vadd.f32 %v3266, %v3314
        %v3316 = vpop.f32.mrf.mxu0
        %v3317 = vadd.f32 %v3268, %v3316
        %3318 = vmatmul.bf16.gmra.mxu0 %v2899
        %v3319 = vpop.f32.mrf.mxu0
        %v3320 = vadd.f32 %v3271, %v3319
        %v3321 = vpop.f32.mrf.mxu0
        %v3322 = vadd.f32 %v3273, %v3321
        %3323 = vdwg.mxu0
        %3324 = vst [vmem:[%s1250] sm:$0xff] %v3089
        %3325 = vst [vmem:[%s1250 + $0x8] sm:$0xff] %v3285
        %3326 = vst [vmem:[%s1250 + $0x10] sm:$0xff] %v3091
        %3327 = vst [vmem:[%s1250 + $0x18] sm:$0xff] %v3287
        %3328 = vst [vmem:[%s1250 + $0x20] sm:$0xff] %v3094
        %3329 = vst [vmem:[%s1250 + $0x28] sm:$0xff] %v3290
        %3330 = vst [vmem:[%s1250 + $0x30] sm:$0xff] %v3096
        %3331 = vst [vmem:[%s1250 + $0x38] sm:$0xff] %v3292
        %3332 = vst [vmem:[%s1250 + $0x40] sm:$0xff] %v3099
        %3333 = vst [vmem:[%s1250 + $0x48] sm:$0xff] %v3295
        %3334 = vst [vmem:[%s1250 + $0x50] sm:$0xff] %v3101
        %3335 = vst [vmem:[%s1250 + $0x58] sm:$0xff] %v3297
        %3336 = vst [vmem:[%s1250 + $0x60] sm:$0xff] %v3104
        %3337 = vst [vmem:[%s1250 + $0x68] sm:$0xff] %v3300
        %3338 = vst [vmem:[%s1250 + $0x70] sm:$0xff] %v3106
        %3339 = vst [vmem:[%s1250 + $0x78] sm:$0xff] %v3302
        %3340 = vst [vmem:[%s1250 + $0x80] sm:$0xff] %v3109
        %3341 = vst [vmem:[%s1250 + $0x88] sm:$0xff] %v3305
        %3342 = vst [vmem:[%s1250 + $0x90] sm:$0xff] %v3111
        %3343 = vst [vmem:[%s1250 + $0x98] sm:$0xff] %v3307
        %3344 = vst [vmem:[%s1250 + $0xa0] sm:$0xff] %v3114
        %3345 = vst [vmem:[%s1250 + $0xa8] sm:$0xff] %v3310
        %3346 = vst [vmem:[%s1250 + $0xb0] sm:$0xff] %v3116
        %3347 = vst [vmem:[%s1250 + $0xb8] sm:$0xff] %v3312
        %3348 = vst [vmem:[%s1250 + $0xc0] sm:$0xff] %v3119
        %3349 = vst [vmem:[%s1250 + $0xc8] sm:$0xff] %v3315
        %3350 = vst [vmem:[%s1250 + $0xd0] sm:$0xff] %v3121
        %3351 = vst [vmem:[%s1250 + $0xd8] sm:$0xff] %v3317
        %3352 = vst [vmem:[%s1250 + $0xe0] sm:$0xff] %v3124
        %3353 = vst [vmem:[%s1250 + $0xe8] sm:$0xff] %v3320
        %3354 = vst [vmem:[%s1250 + $0xf0] sm:$0xff] %v3126
        %3355 = vst [vmem:[%s1250 + $0xf8] sm:$0xff] %v3322
        %s3356 = sand.u32 %s157, 1
        %s3357 = sand.u32 %s157, 1
        %s3358 = smul.addr %s3357, 256
        %s3359 = scalar_lea.vmem [#allocation4], %s3358
        // Predicated region
        $region159: #{conv_bn_add_relu_conv.1} parent=149 // pred_check
          %p3360 = pneg %p167
        $region160: #{conv_bn_add_relu_conv.1} parent=149 // pred_check_branch
          %3362 = sbr.rel (%p3360) target = $region162
        $region161: #{conv_bn_add_relu_conv.1} parent=149 // pred_region
          %s3363 = smul.u32 2, %s21
          %s3364 = ssub.s32 7, %s3363
          %p3365 = scmp.lt.s32.totalorder %s3364, 2
          %s3366 = scalar_select %p3365, %s3364, 2
          %s3367 = smul.u32 128, %s3366
          %p3368 = scmp.ne.s32.totalorder 0, %s3367
          %s3369 = smul.addr %s20, 112
          %s3370 = sadd.s32 %s3363, %s3369
          %s3371 = smul.addr %s3370, 8
          %s3372 = scalar_lea.vmem %s5, %s3371
          %s3373 = smul.u32 %s3366, 8
          // Predicated region
          $region163: #{conv_bn_add_relu_conv.1} parent=161 // pred_check
            %p3374 = pneg %p3368
          $region164: #{conv_bn_add_relu_conv.1} parent=161 // pred_check_branch
            %3376 = sbr.rel (%p3374) target = $region166
          $region165: #{conv_bn_add_relu_conv.1} parent=161 // pred_region
            %p3377 = scmp.lt.u32.totalorder %s3373, 8
            %p3378 = pneg %p3377
            // Predicated region
            $region167: #{conv_bn_add_relu_conv.1} parent=165 // pred_check
              _
            $region168: #{conv_bn_add_relu_conv.1} parent=165 // pred_check_branch
              %3380 = sbr.rel (%p3377) target = $region170
            $region169: #{conv_bn_add_relu_conv.1} parent=165 // pred_region
              %s3426 = sand.u32 %s3373, 7
              %p3427 = scmp.eq.s32.totalorder %s3426, 0
              // Predicated region
              $region182: #{conv_bn_add_relu_conv.1} parent=169 // pred_check
                %p3428 = pneg %p3427
              $region183: #{conv_bn_add_relu_conv.1} parent=169 // pred_check_branch
                %3430 = sbr.rel (%p3428) target = $region185
              $region184: #{conv_bn_add_relu_conv.1} parent=169 // pred_region
                %s3431 = sshrl.u32 %s3373, 3
                %s3432 = sshrl.u32 %s3431, 1
                // While loop
                $region186: #{conv_bn_add_relu_conv.1} parent=184 // loop_pre_header
                  _
                $region187: #{conv_bn_add_relu_conv.1} parent=184 // loop_header
                  %s3434 = sphi 0, %s3436
                  %p3435 = scmp.ge.s32.totalorder %s3434, %s3432
                  %s3439 = sphi 0, %s3508
                  %s3440 = sphi %s3359, %s3511
                  %s3441 = sphi %s3372, %s3512
                $region188: #{conv_bn_add_relu_conv.1} parent=184 // loop_header_branch
                  %3438 = sbr.rel (%p3435) target = $region192
                $region189: #{conv_bn_add_relu_conv.1} parent=184 // loop_body
                  %v3442 = vld [vmem:[%s3440] sm:$0xff]
                  %3443 = vst [vmem:[%s3441] sm:$0xff] %v3442
                  %v3444 = vld [vmem:[%s3440 + $0x8] sm:$0xff]
                  %3445 = vst [vmem:[%s3441 + $0x8] sm:$0xff] %v3444
                  %v3446 = vld [vmem:[%s3440 + $0x10] sm:$0xff]
                  %3447 = vst [vmem:[%s3441 + $0x38] sm:$0xff] %v3446
                  %v3448 = vld [vmem:[%s3440 + $0x18] sm:$0xff]
                  %3449 = vst [vmem:[%s3441 + $0x40] sm:$0xff] %v3448
                  %v3450 = vld [vmem:[%s3440 + $0x20] sm:$0xff]
                  %3451 = vst [vmem:[%s3441 + $0x70] sm:$0xff] %v3450
                  %v3452 = vld [vmem:[%s3440 + $0x28] sm:$0xff]
                  %3453 = vst [vmem:[%s3441 + $0x78] sm:$0xff] %v3452
                  %v3454 = vld [vmem:[%s3440 + $0x30] sm:$0xff]
                  %3455 = vst [vmem:[%s3441 + $0xa8] sm:$0xff] %v3454
                  %v3456 = vld [vmem:[%s3440 + $0x38] sm:$0xff]
                  %3457 = vst [vmem:[%s3441 + $0xb0] sm:$0xff] %v3456
                  %v3458 = vld [vmem:[%s3440 + $0x40] sm:$0xff]
                  %3459 = vst [vmem:[%s3441 + $0xe0] sm:$0xff] %v3458
                  %v3460 = vld [vmem:[%s3440 + $0x48] sm:$0xff]
                  %3461 = vst [vmem:[%s3441 + $0xe8] sm:$0xff] %v3460
                  %v3462 = vld [vmem:[%s3440 + $0x50] sm:$0xff]
                  %3463 = vst [vmem:[%s3441 + $0x118] sm:$0xff] %v3462
                  %v3464 = vld [vmem:[%s3440 + $0x58] sm:$0xff]
                  %3465 = vst [vmem:[%s3441 + $0x120] sm:$0xff] %v3464
                  %v3466 = vld [vmem:[%s3440 + $0x60] sm:$0xff]
                  %3467 = vst [vmem:[%s3441 + $0x150] sm:$0xff] %v3466
                  %v3468 = vld [vmem:[%s3440 + $0x68] sm:$0xff]
                  %3469 = vst [vmem:[%s3441 + $0x158] sm:$0xff] %v3468
                  %v3470 = vld [vmem:[%s3440 + $0x70] sm:$0xff]
                  %3471 = vst [vmem:[%s3441 + $0x188] sm:$0xff] %v3470
                  %v3472 = vld [vmem:[%s3440 + $0x78] sm:$0xff]
                  %3473 = vst [vmem:[%s3441 + $0x190] sm:$0xff] %v3472
                  %v3474 = vld [vmem:[%s3440 + $0x80] sm:$0xff]
                  %3475 = vst [vmem:[%s3441 + $0x1c0] sm:$0xff] %v3474
                  %v3476 = vld [vmem:[%s3440 + $0x88] sm:$0xff]
                  %3477 = vst [vmem:[%s3441 + $0x1c8] sm:$0xff] %v3476
                  %v3478 = vld [vmem:[%s3440 + $0x90] sm:$0xff]
                  %3479 = vst [vmem:[%s3441 + $0x1f8] sm:$0xff] %v3478
                  %v3480 = vld [vmem:[%s3440 + $0x98] sm:$0xff]
                  %3481 = vst [vmem:[%s3441 + $0x200] sm:$0xff] %v3480
                  %v3482 = vld [vmem:[%s3440 + $0xa0] sm:$0xff]
                  %3483 = vst [vmem:[%s3441 + $0x230] sm:$0xff] %v3482
                  %v3484 = vld [vmem:[%s3440 + $0xa8] sm:$0xff]
                  %3485 = vst [vmem:[%s3441 + $0x238] sm:$0xff] %v3484
                  %v3486 = vld [vmem:[%s3440 + $0xb0] sm:$0xff]
                  %3487 = vst [vmem:[%s3441 + $0x268] sm:$0xff] %v3486
                  %v3488 = vld [vmem:[%s3440 + $0xb8] sm:$0xff]
                  %3489 = vst [vmem:[%s3441 + $0x270] sm:$0xff] %v3488
                  %v3490 = vld [vmem:[%s3440 + $0xc0] sm:$0xff]
                  %3491 = vst [vmem:[%s3441 + $0x2a0] sm:$0xff] %v3490
                  %v3492 = vld [vmem:[%s3440 + $0xc8] sm:$0xff]
                  %3493 = vst [vmem:[%s3441 + $0x2a8] sm:$0xff] %v3492
                  %v3494 = vld [vmem:[%s3440 + $0xd0] sm:$0xff]
                  %3495 = vst [vmem:[%s3441 + $0x2d8] sm:$0xff] %v3494
                  %v3496 = vld [vmem:[%s3440 + $0xd8] sm:$0xff]
                  %3497 = vst [vmem:[%s3441 + $0x2e0] sm:$0xff] %v3496
                  %v3498 = vld [vmem:[%s3440 + $0xe0] sm:$0xff]
                  %3499 = vst [vmem:[%s3441 + $0x310] sm:$0xff] %v3498
                  %v3500 = vld [vmem:[%s3440 + $0xe8] sm:$0xff]
                  %3501 = vst [vmem:[%s3441 + $0x318] sm:$0xff] %v3500
                  %v3502 = vld [vmem:[%s3440 + $0xf0] sm:$0xff]
                  %3503 = vst [vmem:[%s3441 + $0x348] sm:$0xff] %v3502
                  %v3504 = vld [vmem:[%s3440 + $0xf8] sm:$0xff]
                  %3505 = vst [vmem:[%s3441 + $0x350] sm:$0xff] %v3504
                  %s3506 = sadd.s32 1, %s3439
                  %p3507 = scmp.ge.s32.totalorder %s3506, %s3432
                  %s3508 = scalar_select %p3507, 0, %s3506
                  %s3509 = smul.u32 %s3508, 16
                  %s3510 = smul.u32 %s3508, 16
                  %s3511 = scalar_lea.vmem %s3359, %s3509 [#allocation4]
                  %s3512 = scalar_lea.vmem %s3372, %s3510
                $region190: #{conv_bn_add_relu_conv.1} parent=184 // loop_footer
                  %s3436 = sadd.s32 %s3434, 1
                $region191: #{conv_bn_add_relu_conv.1} parent=184 // loop_footer_branch
                  %3433 = sbr.rel target = $region187
                $region192: #{conv_bn_add_relu_conv.1} parent=184 // loop_exit
                  _
                %s3513 = sshrl.u32 %s3431, 1
                %s3514 = sand.u32 %s3431, 1
                %s3515 = smul.u32 %s3513, 2
                %s3516 = smul.u32 8, %s3515
                %s3517 = scalar_lea.vmem %s3359, %s3516 [#allocation4]
                %s3518 = smul.u32 8, %s3515
                %s3519 = scalar_lea.vmem %s3372, %s3518
                // While loop
                $region193: #{conv_bn_add_relu_conv.1} parent=184 // loop_pre_header
                  _
                $region194: #{conv_bn_add_relu_conv.1} parent=184 // loop_header
                  %s3521 = sphi 0, %s3523
                  %p3522 = scmp.ge.s32.totalorder %s3521, %s3514
                  %s3526 = sphi 0, %s3563
                  %s3527 = sphi %s3517, %s3566
                  %s3528 = sphi %s3519, %s3567
                $region195: #{conv_bn_add_relu_conv.1} parent=184 // loop_header_branch
                  %3525 = sbr.rel (%p3522) target = $region199
                $region196: #{conv_bn_add_relu_conv.1} parent=184 // loop_body
                  %v3529 = vld [vmem:[%s3527] sm:$0xff]
                  %3530 = vst [vmem:[%s3528] sm:$0xff] %v3529
                  %v3531 = vld [vmem:[%s3527 + $0x10] sm:$0xff]
                  %3532 = vst [vmem:[%s3528 + $0x38] sm:$0xff] %v3531
                  %v3533 = vld [vmem:[%s3527 + $0x20] sm:$0xff]
                  %3534 = vst [vmem:[%s3528 + $0x70] sm:$0xff] %v3533
                  %v3535 = vld [vmem:[%s3527 + $0x30] sm:$0xff]
                  %3536 = vst [vmem:[%s3528 + $0xa8] sm:$0xff] %v3535
                  %v3537 = vld [vmem:[%s3527 + $0x40] sm:$0xff]
                  %3538 = vst [vmem:[%s3528 + $0xe0] sm:$0xff] %v3537
                  %v3539 = vld [vmem:[%s3527 + $0x50] sm:$0xff]
                  %3540 = vst [vmem:[%s3528 + $0x118] sm:$0xff] %v3539
                  %v3541 = vld [vmem:[%s3527 + $0x60] sm:$0xff]
                  %3542 = vst [vmem:[%s3528 + $0x150] sm:$0xff] %v3541
                  %v3543 = vld [vmem:[%s3527 + $0x70] sm:$0xff]
                  %3544 = vst [vmem:[%s3528 + $0x188] sm:$0xff] %v3543
                  %v3545 = vld [vmem:[%s3527 + $0x80] sm:$0xff]
                  %3546 = vst [vmem:[%s3528 + $0x1c0] sm:$0xff] %v3545
                  %v3547 = vld [vmem:[%s3527 + $0x90] sm:$0xff]
                  %3548 = vst [vmem:[%s3528 + $0x1f8] sm:$0xff] %v3547
                  %v3549 = vld [vmem:[%s3527 + $0xa0] sm:$0xff]
                  %3550 = vst [vmem:[%s3528 + $0x230] sm:$0xff] %v3549
                  %v3551 = vld [vmem:[%s3527 + $0xb0] sm:$0xff]
                  %3552 = vst [vmem:[%s3528 + $0x268] sm:$0xff] %v3551
                  %v3553 = vld [vmem:[%s3527 + $0xc0] sm:$0xff]
                  %3554 = vst [vmem:[%s3528 + $0x2a0] sm:$0xff] %v3553
                  %v3555 = vld [vmem:[%s3527 + $0xd0] sm:$0xff]
                  %3556 = vst [vmem:[%s3528 + $0x2d8] sm:$0xff] %v3555
                  %v3557 = vld [vmem:[%s3527 + $0xe0] sm:$0xff]
                  %3558 = vst [vmem:[%s3528 + $0x310] sm:$0xff] %v3557
                  %v3559 = vld [vmem:[%s3527 + $0xf0] sm:$0xff]
                  %3560 = vst [vmem:[%s3528 + $0x348] sm:$0xff] %v3559
                  %s3561 = sadd.s32 1, %s3526
                  %p3562 = scmp.ge.s32.totalorder %s3561, %s3514
                  %s3563 = scalar_select %p3562, 0, %s3561
                  %s3564 = smul.u32 %s3563, 8
                  %s3565 = smul.u32 %s3563, 8
                  %s3566 = scalar_lea.vmem %s3517, %s3564 [#allocation4]
                  %s3567 = scalar_lea.vmem %s3519, %s3565
                $region197: #{conv_bn_add_relu_conv.1} parent=184 // loop_footer
                  %s3523 = sadd.s32 %s3521, 1
                $region198: #{conv_bn_add_relu_conv.1} parent=184 // loop_footer_branch
                  %3520 = sbr.rel target = $region194
                $region199: #{conv_bn_add_relu_conv.1} parent=184 // loop_exit
                  _
              $region185: #{conv_bn_add_relu_conv.1} parent=169 // pred_fallthru
                _
              %p3568 = pneg %p3427
              // Predicated region
              $region200: #{conv_bn_add_relu_conv.1} parent=169 // pred_check
                _
              $region201: #{conv_bn_add_relu_conv.1} parent=169 // pred_check_branch
                %3570 = sbr.rel (%p3427) target = $region203
              $region202: #{conv_bn_add_relu_conv.1} parent=169 // pred_region
                %s3571 = sand.u32 %s3373, 7
                %s3572 = ssub.s32 %s3373, %s3571
                %s3573 = scalar_lea.vmem %s3359, %s3572 [#allocation4]
                %s3574 = ssub.s32 %s3373, %s3571
                %s3575 = scalar_lea.vmem %s3372, %s3574
                %s3576 = sshrl.u32 %s3373, 3
                %s3577 = sshrl.u32 %s3576, 1
                // While loop
                $region204: #{conv_bn_add_relu_conv.1} parent=202 // loop_pre_header
                  _
                $region205: #{conv_bn_add_relu_conv.1} parent=202 // loop_header
                  %s3579 = sphi 0, %s3581
                  %p3580 = scmp.ge.s32.totalorder %s3579, %s3577
                  %s3584 = sphi 0, %s3653
                  %s3585 = sphi %s3359, %s3656
                  %s3586 = sphi %s3372, %s3657
                $region206: #{conv_bn_add_relu_conv.1} parent=202 // loop_header_branch
                  %3583 = sbr.rel (%p3580) target = $region210
                $region207: #{conv_bn_add_relu_conv.1} parent=202 // loop_body
                  %v3587 = vld [vmem:[%s3585] sm:$0xff]
                  %3588 = vst [vmem:[%s3586] sm:$0xff] %v3587
                  %v3589 = vld [vmem:[%s3585 + $0x8] sm:$0xff]
                  %3590 = vst [vmem:[%s3586 + $0x8] sm:$0xff] %v3589
                  %v3591 = vld [vmem:[%s3585 + $0x10] sm:$0xff]
                  %3592 = vst [vmem:[%s3586 + $0x38] sm:$0xff] %v3591
                  %v3593 = vld [vmem:[%s3585 + $0x18] sm:$0xff]
                  %3594 = vst [vmem:[%s3586 + $0x40] sm:$0xff] %v3593
                  %v3595 = vld [vmem:[%s3585 + $0x20] sm:$0xff]
                  %3596 = vst [vmem:[%s3586 + $0x70] sm:$0xff] %v3595
                  %v3597 = vld [vmem:[%s3585 + $0x28] sm:$0xff]
                  %3598 = vst [vmem:[%s3586 + $0x78] sm:$0xff] %v3597
                  %v3599 = vld [vmem:[%s3585 + $0x30] sm:$0xff]
                  %3600 = vst [vmem:[%s3586 + $0xa8] sm:$0xff] %v3599
                  %v3601 = vld [vmem:[%s3585 + $0x38] sm:$0xff]
                  %3602 = vst [vmem:[%s3586 + $0xb0] sm:$0xff] %v3601
                  %v3603 = vld [vmem:[%s3585 + $0x40] sm:$0xff]
                  %3604 = vst [vmem:[%s3586 + $0xe0] sm:$0xff] %v3603
                  %v3605 = vld [vmem:[%s3585 + $0x48] sm:$0xff]
                  %3606 = vst [vmem:[%s3586 + $0xe8] sm:$0xff] %v3605
                  %v3607 = vld [vmem:[%s3585 + $0x50] sm:$0xff]
                  %3608 = vst [vmem:[%s3586 + $0x118] sm:$0xff] %v3607
                  %v3609 = vld [vmem:[%s3585 + $0x58] sm:$0xff]
                  %3610 = vst [vmem:[%s3586 + $0x120] sm:$0xff] %v3609
                  %v3611 = vld [vmem:[%s3585 + $0x60] sm:$0xff]
                  %3612 = vst [vmem:[%s3586 + $0x150] sm:$0xff] %v3611
                  %v3613 = vld [vmem:[%s3585 + $0x68] sm:$0xff]
                  %3614 = vst [vmem:[%s3586 + $0x158] sm:$0xff] %v3613
                  %v3615 = vld [vmem:[%s3585 + $0x70] sm:$0xff]
                  %3616 = vst [vmem:[%s3586 + $0x188] sm:$0xff] %v3615
                  %v3617 = vld [vmem:[%s3585 + $0x78] sm:$0xff]
                  %3618 = vst [vmem:[%s3586 + $0x190] sm:$0xff] %v3617
                  %v3619 = vld [vmem:[%s3585 + $0x80] sm:$0xff]
                  %3620 = vst [vmem:[%s3586 + $0x1c0] sm:$0xff] %v3619
                  %v3621 = vld [vmem:[%s3585 + $0x88] sm:$0xff]
                  %3622 = vst [vmem:[%s3586 + $0x1c8] sm:$0xff] %v3621
                  %v3623 = vld [vmem:[%s3585 + $0x90] sm:$0xff]
                  %3624 = vst [vmem:[%s3586 + $0x1f8] sm:$0xff] %v3623
                  %v3625 = vld [vmem:[%s3585 + $0x98] sm:$0xff]
                  %3626 = vst [vmem:[%s3586 + $0x200] sm:$0xff] %v3625
                  %v3627 = vld [vmem:[%s3585 + $0xa0] sm:$0xff]
                  %3628 = vst [vmem:[%s3586 + $0x230] sm:$0xff] %v3627
                  %v3629 = vld [vmem:[%s3585 + $0xa8] sm:$0xff]
                  %3630 = vst [vmem:[%s3586 + $0x238] sm:$0xff] %v3629
                  %v3631 = vld [vmem:[%s3585 + $0xb0] sm:$0xff]
                  %3632 = vst [vmem:[%s3586 + $0x268] sm:$0xff] %v3631
                  %v3633 = vld [vmem:[%s3585 + $0xb8] sm:$0xff]
                  %3634 = vst [vmem:[%s3586 + $0x270] sm:$0xff] %v3633
                  %v3635 = vld [vmem:[%s3585 + $0xc0] sm:$0xff]
                  %3636 = vst [vmem:[%s3586 + $0x2a0] sm:$0xff] %v3635
                  %v3637 = vld [vmem:[%s3585 + $0xc8] sm:$0xff]
                  %3638 = vst [vmem:[%s3586 + $0x2a8] sm:$0xff] %v3637
                  %v3639 = vld [vmem:[%s3585 + $0xd0] sm:$0xff]
                  %3640 = vst [vmem:[%s3586 + $0x2d8] sm:$0xff] %v3639
                  %v3641 = vld [vmem:[%s3585 + $0xd8] sm:$0xff]
                  %3642 = vst [vmem:[%s3586 + $0x2e0] sm:$0xff] %v3641
                  %v3643 = vld [vmem:[%s3585 + $0xe0] sm:$0xff]
                  %3644 = vst [vmem:[%s3586 + $0x310] sm:$0xff] %v3643
                  %v3645 = vld [vmem:[%s3585 + $0xe8] sm:$0xff]
                  %3646 = vst [vmem:[%s3586 + $0x318] sm:$0xff] %v3645
                  %v3647 = vld [vmem:[%s3585 + $0xf0] sm:$0xff]
                  %3648 = vst [vmem:[%s3586 + $0x348] sm:$0xff] %v3647
                  %v3649 = vld [vmem:[%s3585 + $0xf8] sm:$0xff]
                  %3650 = vst [vmem:[%s3586 + $0x350] sm:$0xff] %v3649
                  %s3651 = sadd.s32 1, %s3584
                  %p3652 = scmp.ge.s32.totalorder %s3651, %s3577
                  %s3653 = scalar_select %p3652, 0, %s3651
                  %s3654 = smul.u32 %s3653, 16
                  %s3655 = smul.u32 %s3653, 16
                  %s3656 = scalar_lea.vmem %s3359, %s3654 [#allocation4]
                  %s3657 = scalar_lea.vmem %s3372, %s3655
                $region208: #{conv_bn_add_relu_conv.1} parent=202 // loop_footer
                  %s3581 = sadd.s32 %s3579, 1
                $region209: #{conv_bn_add_relu_conv.1} parent=202 // loop_footer_branch
                  %3578 = sbr.rel target = $region205
                $region210: #{conv_bn_add_relu_conv.1} parent=202 // loop_exit
                  _
                %s3658 = sshrl.u32 %s3576, 1
                %s3659 = sand.u32 %s3576, 1
                %s3660 = smul.u32 %s3658, 2
                %s3661 = smul.u32 8, %s3660
                %s3662 = scalar_lea.vmem %s3359, %s3661 [#allocation4]
                %s3663 = smul.u32 8, %s3660
                %s3664 = scalar_lea.vmem %s3372, %s3663
                // While loop
                $region211: #{conv_bn_add_relu_conv.1} parent=202 // loop_pre_header
                  _
                $region212: #{conv_bn_add_relu_conv.1} parent=202 // loop_header
                  %s3666 = sphi 0, %s3668
                  %p3667 = scmp.ge.s32.totalorder %s3666, %s3659
                  %s3671 = sphi 0, %s3708
                  %s3672 = sphi %s3662, %s3711
                  %s3673 = sphi %s3664, %s3712
                $region213: #{conv_bn_add_relu_conv.1} parent=202 // loop_header_branch
                  %3670 = sbr.rel (%p3667) target = $region217
                $region214: #{conv_bn_add_relu_conv.1} parent=202 // loop_body
                  %v3674 = vld [vmem:[%s3672] sm:$0xff]
                  %3675 = vst [vmem:[%s3673] sm:$0xff] %v3674
                  %v3676 = vld [vmem:[%s3672 + $0x10] sm:$0xff]
                  %3677 = vst [vmem:[%s3673 + $0x38] sm:$0xff] %v3676
                  %v3678 = vld [vmem:[%s3672 + $0x20] sm:$0xff]
                  %3679 = vst [vmem:[%s3673 + $0x70] sm:$0xff] %v3678
                  %v3680 = vld [vmem:[%s3672 + $0x30] sm:$0xff]
                  %3681 = vst [vmem:[%s3673 + $0xa8] sm:$0xff] %v3680
                  %v3682 = vld [vmem:[%s3672 + $0x40] sm:$0xff]
                  %3683 = vst [vmem:[%s3673 + $0xe0] sm:$0xff] %v3682
                  %v3684 = vld [vmem:[%s3672 + $0x50] sm:$0xff]
                  %3685 = vst [vmem:[%s3673 + $0x118] sm:$0xff] %v3684
                  %v3686 = vld [vmem:[%s3672 + $0x60] sm:$0xff]
                  %3687 = vst [vmem:[%s3673 + $0x150] sm:$0xff] %v3686
                  %v3688 = vld [vmem:[%s3672 + $0x70] sm:$0xff]
                  %3689 = vst [vmem:[%s3673 + $0x188] sm:$0xff] %v3688
                  %v3690 = vld [vmem:[%s3672 + $0x80] sm:$0xff]
                  %3691 = vst [vmem:[%s3673 + $0x1c0] sm:$0xff] %v3690
                  %v3692 = vld [vmem:[%s3672 + $0x90] sm:$0xff]
                  %3693 = vst [vmem:[%s3673 + $0x1f8] sm:$0xff] %v3692
                  %v3694 = vld [vmem:[%s3672 + $0xa0] sm:$0xff]
                  %3695 = vst [vmem:[%s3673 + $0x230] sm:$0xff] %v3694
                  %v3696 = vld [vmem:[%s3672 + $0xb0] sm:$0xff]
                  %3697 = vst [vmem:[%s3673 + $0x268] sm:$0xff] %v3696
                  %v3698 = vld [vmem:[%s3672 + $0xc0] sm:$0xff]
                  %3699 = vst [vmem:[%s3673 + $0x2a0] sm:$0xff] %v3698
                  %v3700 = vld [vmem:[%s3672 + $0xd0] sm:$0xff]
                  %3701 = vst [vmem:[%s3673 + $0x2d8] sm:$0xff] %v3700
                  %v3702 = vld [vmem:[%s3672 + $0xe0] sm:$0xff]
                  %3703 = vst [vmem:[%s3673 + $0x310] sm:$0xff] %v3702
                  %v3704 = vld [vmem:[%s3672 + $0xf0] sm:$0xff]
                  %3705 = vst [vmem:[%s3673 + $0x348] sm:$0xff] %v3704
                  %s3706 = sadd.s32 1, %s3671
                  %p3707 = scmp.ge.s32.totalorder %s3706, %s3659
                  %s3708 = scalar_select %p3707, 0, %s3706
                  %s3709 = smul.u32 %s3708, 8
                  %s3710 = smul.u32 %s3708, 8
                  %s3711 = scalar_lea.vmem %s3662, %s3709 [#allocation4]
                  %s3712 = scalar_lea.vmem %s3664, %s3710
                $region215: #{conv_bn_add_relu_conv.1} parent=202 // loop_footer
                  %s3668 = sadd.s32 %s3666, 1
                $region216: #{conv_bn_add_relu_conv.1} parent=202 // loop_footer_branch
                  %3665 = sbr.rel target = $region212
                $region217: #{conv_bn_add_relu_conv.1} parent=202 // loop_exit
                  _
                %s3713 = sshll.u32 1, %s3571
                %s3714 = ssub.s32 %s3713, 1
                loop: start=0, step=1, limit=1
                $region218: #{conv_bn_add_relu_conv.1} parent=202 // loop_pre_header
                  _
                $region219: #{conv_bn_add_relu_conv.1} parent=202 // loop_header
                  %s3716 = sphi 0, %s3720
                  %p3717 = scmp.ge.s32.totalorder %s3716, 1
                  %s3721 = sphi %s3573, %s3573
                  %s3722 = sphi %s3575, %s3575
                $region220: #{conv_bn_add_relu_conv.1} parent=202 // loop_header_branch
                  %3719 = sbr.rel (%p3717) target = $region224
                $region221: #{conv_bn_add_relu_conv.1} parent=202 // loop_body
                  %v3723 = vld [vmem:[%s3721] sm:%s3714]
                  %3724 = vst [vmem:[%s3722] sm:%s3714] %v3723
                  %v3725 = vld [vmem:[%s3721 + $0x10] sm:%s3714]
                  %3726 = vst [vmem:[%s3722 + $0x38] sm:%s3714] %v3725
                  %v3727 = vld [vmem:[%s3721 + $0x20] sm:%s3714]
                  %3728 = vst [vmem:[%s3722 + $0x70] sm:%s3714] %v3727
                  %v3729 = vld [vmem:[%s3721 + $0x30] sm:%s3714]
                  %3730 = vst [vmem:[%s3722 + $0xa8] sm:%s3714] %v3729
                  %v3731 = vld [vmem:[%s3721 + $0x40] sm:%s3714]
                  %3732 = vst [vmem:[%s3722 + $0xe0] sm:%s3714] %v3731
                  %v3733 = vld [vmem:[%s3721 + $0x50] sm:%s3714]
                  %3734 = vst [vmem:[%s3722 + $0x118] sm:%s3714] %v3733
                  %v3735 = vld [vmem:[%s3721 + $0x60] sm:%s3714]
                  %3736 = vst [vmem:[%s3722 + $0x150] sm:%s3714] %v3735
                  %v3737 = vld [vmem:[%s3721 + $0x70] sm:%s3714]
                  %3738 = vst [vmem:[%s3722 + $0x188] sm:%s3714] %v3737
                  %v3739 = vld [vmem:[%s3721 + $0x80] sm:%s3714]
                  %3740 = vst [vmem:[%s3722 + $0x1c0] sm:%s3714] %v3739
                  %v3741 = vld [vmem:[%s3721 + $0x90] sm:%s3714]
                  %3742 = vst [vmem:[%s3722 + $0x1f8] sm:%s3714] %v3741
                  %v3743 = vld [vmem:[%s3721 + $0xa0] sm:%s3714]
                  %3744 = vst [vmem:[%s3722 + $0x230] sm:%s3714] %v3743
                  %v3745 = vld [vmem:[%s3721 + $0xb0] sm:%s3714]
                  %3746 = vst [vmem:[%s3722 + $0x268] sm:%s3714] %v3745
                  %v3747 = vld [vmem:[%s3721 + $0xc0] sm:%s3714]
                  %3748 = vst [vmem:[%s3722 + $0x2a0] sm:%s3714] %v3747
                  %v3749 = vld [vmem:[%s3721 + $0xd0] sm:%s3714]
                  %3750 = vst [vmem:[%s3722 + $0x2d8] sm:%s3714] %v3749
                  %v3751 = vld [vmem:[%s3721 + $0xe0] sm:%s3714]
                  %3752 = vst [vmem:[%s3722 + $0x310] sm:%s3714] %v3751
                  %v3753 = vld [vmem:[%s3721 + $0xf0] sm:%s3714]
                  %3754 = vst [vmem:[%s3722 + $0x348] sm:%s3714] %v3753
                $region222: #{conv_bn_add_relu_conv.1} parent=202 // loop_footer
                  %s3720 = sadd.s32 1, %s3716
                $region223: #{conv_bn_add_relu_conv.1} parent=202 // loop_footer_branch
                  %3715 = sbr.rel target = $region219
                $region224: #{conv_bn_add_relu_conv.1} parent=202 // loop_exit
                  _
              $region203: #{conv_bn_add_relu_conv.1} parent=169 // pred_fallthru
                _
            $region170: #{conv_bn_add_relu_conv.1} parent=165 // pred_fallthru
              _
            // Predicated region
            $region171: #{conv_bn_add_relu_conv.1} parent=165 // pred_check
              %p3381 = pneg %p3377
            $region172: #{conv_bn_add_relu_conv.1} parent=165 // pred_check_branch
              %3383 = sbr.rel (%p3381) target = $region174
            $region173: #{conv_bn_add_relu_conv.1} parent=165 // pred_region
              %s3384 = sshll.u32 1, %s3373
              %s3385 = ssub.s32 %s3384, 1
              loop: start=0, step=1, limit=1
              $region175: #{conv_bn_add_relu_conv.1} parent=173 // loop_pre_header
                _
              $region176: #{conv_bn_add_relu_conv.1} parent=173 // loop_header
                %s3387 = sphi 0, %s3391
                %p3388 = scmp.ge.s32.totalorder %s3387, 1
                %s3392 = sphi %s3359, %s3359
                %s3393 = sphi %s3372, %s3372
              $region177: #{conv_bn_add_relu_conv.1} parent=173 // loop_header_branch
                %3390 = sbr.rel (%p3388) target = $region181
              $region178: #{conv_bn_add_relu_conv.1} parent=173 // loop_body
                %v3394 = vld [vmem:[%s3392] sm:%s3385]
                %3395 = vst [vmem:[%s3393] sm:%s3385] %v3394
                %v3396 = vld [vmem:[%s3392 + $0x10] sm:%s3385]
                %3397 = vst [vmem:[%s3393 + $0x38] sm:%s3385] %v3396
                %v3398 = vld [vmem:[%s3392 + $0x20] sm:%s3385]
                %3399 = vst [vmem:[%s3393 + $0x70] sm:%s3385] %v3398
                %v3400 = vld [vmem:[%s3392 + $0x30] sm:%s3385]
                %3401 = vst [vmem:[%s3393 + $0xa8] sm:%s3385] %v3400
                %v3402 = vld [vmem:[%s3392 + $0x40] sm:%s3385]
                %3403 = vst [vmem:[%s3393 + $0xe0] sm:%s3385] %v3402
                %v3404 = vld [vmem:[%s3392 + $0x50] sm:%s3385]
                %3405 = vst [vmem:[%s3393 + $0x118] sm:%s3385] %v3404
                %v3406 = vld [vmem:[%s3392 + $0x60] sm:%s3385]
                %3407 = vst [vmem:[%s3393 + $0x150] sm:%s3385] %v3406
                %v3408 = vld [vmem:[%s3392 + $0x70] sm:%s3385]
                %3409 = vst [vmem:[%s3393 + $0x188] sm:%s3385] %v3408
                %v3410 = vld [vmem:[%s3392 + $0x80] sm:%s3385]
                %3411 = vst [vmem:[%s3393 + $0x1c0] sm:%s3385] %v3410
                %v3412 = vld [vmem:[%s3392 + $0x90] sm:%s3385]
                %3413 = vst [vmem:[%s3393 + $0x1f8] sm:%s3385] %v3412
                %v3414 = vld [vmem:[%s3392 + $0xa0] sm:%s3385]
                %3415 = vst [vmem:[%s3393 + $0x230] sm:%s3385] %v3414
                %v3416 = vld [vmem:[%s3392 + $0xb0] sm:%s3385]
                %3417 = vst [vmem:[%s3393 + $0x268] sm:%s3385] %v3416
                %v3418 = vld [vmem:[%s3392 + $0xc0] sm:%s3385]
                %3419 = vst [vmem:[%s3393 + $0x2a0] sm:%s3385] %v3418
                %v3420 = vld [vmem:[%s3392 + $0xd0] sm:%s3385]
                %3421 = vst [vmem:[%s3393 + $0x2d8] sm:%s3385] %v3420
                %v3422 = vld [vmem:[%s3392 + $0xe0] sm:%s3385]
                %3423 = vst [vmem:[%s3393 + $0x310] sm:%s3385] %v3422
                %v3424 = vld [vmem:[%s3392 + $0xf0] sm:%s3385]
                %3425 = vst [vmem:[%s3393 + $0x348] sm:%s3385] %v3424
              $region179: #{conv_bn_add_relu_conv.1} parent=173 // loop_footer
                %s3391 = sadd.s32 1, %s3387
              $region180: #{conv_bn_add_relu_conv.1} parent=173 // loop_footer_branch
                %3386 = sbr.rel target = $region176
              $region181: #{conv_bn_add_relu_conv.1} parent=173 // loop_exit
                _
            $region174: #{conv_bn_add_relu_conv.1} parent=165 // pred_fallthru
              _
          $region166: #{conv_bn_add_relu_conv.1} parent=161 // pred_fallthru
            _
          %3755 = vnop
        $region162: #{conv_bn_add_relu_conv.1} parent=149 // pred_fallthru
          _
      $region150: #{conv_bn_add_relu_conv.1} parent=5 // pred_fallthru
        _
      %p3756 = scmp.le.s32.totalorder 2, %s11
      // Predicated region
      $region225: #{conv_bn_add_relu_conv.1} parent=5 // pred_check
        %p3757 = pneg %p3756
      $region226: #{conv_bn_add_relu_conv.1} parent=5 // pred_check_branch
        %3759 = sbr.rel (%p3757) target = $region228
      $region227: #{conv_bn_add_relu_conv.1} parent=5 // pred_region
        %s3760 = ssub.s32 %s11, 2
        // Predicated region
        $region229: #{conv_bn_add_relu_conv.1} parent=227 // pred_check
          %p3761 = pneg %p173
        $region230: #{conv_bn_add_relu_conv.1} parent=227 // pred_check_branch
          %3763 = sbr.rel (%p3761) target = $region232
        $region231: #{conv_bn_add_relu_conv.1} parent=227 // pred_region
          %s3764 = sand.u32 %s158, 1
          %s3765 = sand.u32 %s158, 1
          %s3766 = smul.addr %s3765, 256
          %s3767 = scalar_lea.vmem [#allocation4], %s3766
        $region232: #{conv_bn_add_relu_conv.1} parent=227 // pred_fallthru
          _
      $region228: #{conv_bn_add_relu_conv.1} parent=5 // pred_fallthru
        _
    $region6: #{conv_bn_add_relu_conv.1} parent=1 // loop_footer
      %s15 = sadd.s32 1, %s11
    $region7: #{conv_bn_add_relu_conv.1} parent=1 // loop_footer_branch
      %10 = sbr.rel target = $region3
    $region8: #{conv_bn_add_relu_conv.1} parent=1 // loop_exit
      _

</llo_original>
